<compile_context>
chip_gen: v7x
topology: tpu7x:2x2x1
jax: 0.10.0
libtpu: 0.0.40
codegen_flags: <defaults>
</compile_context>

<pallas_src>
import functools
import numpy as np

import jax
import jax.numpy as jnp
from jax.experimental import pallas as pl
from jax.experimental.pallas import tpu as pltpu  # noqa: F401  (kept for TPU-specific tuning hooks)

BN_EPS = 1e-5

# ------------------------------- configuration --------------------------------
# (self-consistent other_architecture=True branch; PyTorch defaults build a
#  shape-inconsistent decoder — same config as the validated v1)
Z_STRUCT_SIZE = 5
BIG_KERNEL_SIZE = 8
HIDDEN_FILTERS_1 = 8
HIDDEN_FILTERS_2 = Z_STRUCT_SIZE           # two_conv_layer=True => hf2 = z_struct_size
ENC_K1 = BIG_KERNEL_SIZE                   # BK_in_first_layer=True
ENC_K2 = 3
STRUCT_RESHAPE = (8, 3, 3)                 # (struct_hidden_filters_2, w2, w2)
PROD_RESHAPE = STRUCT_RESHAPE[0] * STRUCT_RESHAPE[1] * STRUCT_RESHAPE[2]   # 72
STRUCT_HIDDEN_DIM = 64
DEC_N_FILTER_1 = 8
DEC_N_FILTER_2 = 8                         # equals STRUCT_RESHAPE[0]
DEC_K1, DEC_K2 = 4, 3
DEC_S1, DEC_S2 = 2, 2
NC = 1

IN_H = IN_W = 16
IN_TOTAL = NC * IN_H * IN_W                # 256
ENC1_H = IN_H - ENC_K1 + 1                 # 9
ENC1_HW = ENC1_H * ENC1_H                  # 81
ENC1_TOTAL = HIDDEN_FILTERS_1 * ENC1_HW    # 648
ENC2_H = ENC1_H - ENC_K2 + 1               # 7
ENC2_HW = ENC2_H * ENC2_H                  # 49
ENC2_TOTAL = HIDDEN_FILTERS_2 * ENC2_HW    # 245
CT1_H = (STRUCT_RESHAPE[1] - 1) * DEC_S2 + DEC_K2   # 7
CT1_HW = CT1_H * CT1_H                     # 49
CT1_TOTAL = DEC_N_FILTER_1 * CT1_HW        # 392
CT2_H = (CT1_H - 1) * DEC_S1 + DEC_K1      # 16
CT2_TOTAL = NC * CT2_H * CT2_H             # 256

Z_OUT_LANES = 128                          # lane-dense z_struct output block width
VEC_ROWS, VEC_LANES = 8, 512               # coalesced small-operand slab


# ===================== dense conv operators (built ONCE at pack time) =====================
def conv2d_dense_operator(w, H, W):
    """T s.t. vec_c(Conv2d_valid_s1(x)) = vec_c(x) @ T, vec_c = channel-major (c,h,w) flatten.
    w: (Cout, Cin, kh, kw)."""
    Cout, Cin, kh, kw = w.shape
    Ho, Wo = H - kh + 1, W - kw + 1
    wn = np.asarray(w, np.float32)
    T = np.zeros((Cin * H * W, Cout * Ho * Wo), np.float32)
    ho = np.repeat(np.arange(Ho), Wo)
    wo = np.tile(np.arange(Wo), Ho)
    cols_base = ho * Wo + wo
    for co in range(Cout):
        for ci in range(Cin):
            for i in range(kh):
                for j in range(kw):
                    rows = ci * H * W + (ho + i) * W + (wo + j)
                    cols = co * Ho * Wo + cols_base
                    T[rows, cols] += wn[co, ci, i, j]
    return jnp.asarray(T)


def conv_transpose2d_dense_operator(wt, H, W, stride):
    """T s.t. vec_c(ConvTranspose2d(x)) = vec_c(x) @ T (padding=0, output_padding=0).
    wt: PyTorch layout (Cin, Cout, kh, kw)."""
    Cin, Cout, kh, kw = wt.shape
    Ho, Wo = (H - 1) * stride + kh, (W - 1) * stride + kw
    wn = np.asarray(wt, np.float32)
    T = np.zeros((Cin * H * W, Cout * Ho * Wo), np.float32)
    h = np.repeat(np.arange(H), W)
    w_ = np.tile(np.arange(W), H)
    rows_base = h * W + w_
    for ci in range(Cin):
        for co in range(Cout):
            for i in range(kh):
                for j in range(kw):
                    rows = ci * H * W + rows_base
                    cols = co * Ho * Wo + (h * stride + i) * Wo + (w_ * stride + j)
                    T[rows, cols] += wn[ci, co, i, j]
    return jnp.asarray(T)


def channel_indicator(n_ch, hw):
    """(n_ch*hw, n_ch) 0/1 matrix: column c selects the lanes of channel c."""
    m = np.zeros((n_ch * hw, n_ch), np.float32)
    for c in range(n_ch):
        m[c * hw:(c + 1) * hw, c] = 1.0
    return m


# ================================ fused Pallas kernel ================================
def _fused_forward_kernel(x_ref, t1_ref, t2_ref, m1_ref, m1t_ref, m2_ref, m2t_ref,
                          wl1_ref, wl2_ref, tct1_ref, tct2_ref, vec_ref,
                          xr_ref, z_ref, *, b_real):
    f32 = jnp.float32
    b_pad = x_ref.shape[0]
    vec = vec_ref[...]                                            # (8, 512) f32 slab

    def bn_relu(y, gamma, beta, ind, ind_t, hw):
        """Training-mode BatchNorm2d (batch stats, biased var) + ReLU on a
        channel-major-flattened block, using MXU matmuls against a 0/1 channel
        indicator instead of per-channel lane slicing / XLU reductions.
        y: (b_pad, C*hw) conv output (padded batch rows are all-zero by construction).
        gamma/beta: (1, C).  ind: (C*hw, C).  ind_t: (C, C*hw)."""
        n = float(b_real) * float(hw)
        colsum = jnp.sum(y, axis=0, keepdims=True)                # (1, C*hw)
        colsq = jnp.sum(y * y, axis=0, keepdims=True)             # (1, C*hw)
        stats = jnp.dot(jnp.concatenate([colsum, colsq], axis=0), ind,
                        preferred_element_type=f32)               # (2, C): [sum; sumsq]
        mean = stats[0:1, :] / n
        var = jnp.maximum(stats[1:2, :] / n - mean * mean, 0.0)   # biased batch variance
        scale = gamma * jax.lax.rsqrt(var + BN_EPS)               # (1, C)
        shift = beta - mean * scale                               # (1, C)
        ss = jnp.dot(jnp.concatenate([scale, shift], axis=0), ind_t,
                     preferred_element_type=f32)                  # (2, C*hw) expanded
        return jnp.maximum(y * ss[0:1, :] + ss[1:2, :], 0.0)      # fused affine + ReLU

    # ------------------------------ encoder_struct ------------------------------
    x = x_ref[...]                                                # (b_pad, 256) f32
    y1 = jnp.dot(x, t1_ref[...].astype(f32),
                 preferred_element_type=f32)                      # Conv2d(1,8,k=8) -> (b_pad, 648)
    a1 = bn_relu(y1, vec[0:1, 0:HIDDEN_FILTERS_1], vec[1:2, 0:HIDDEN_FILTERS_1],
                 m1_ref[...], m1t_ref[...], ENC1_HW)
    if b_real != b_pad:
        # Zero the padded batch rows (they became ReLU(shift) after BN1) so they do not
        # corrupt the next layer's BatchNorm statistics.
        rows = jax.lax.broadcasted_iota(jnp.int32, a1.shape, 0)
        a1 = jnp.where(rows < b_real, a1, 0.0)
    y2 = jnp.dot(a1, t2_ref[...].astype(f32),
                 preferred_element_type=f32)                      # Conv2d(8,5,k=3) -> (b_pad, 245)
    a2 = bn_relu(y2, vec[0:1, 128:128 + HIDDEN_FILTERS_2],
                 vec[1:2, 128:128 + HIDDEN_FILTERS_2],
                 m2_ref[...], m2t_ref[...], ENC2_HW)

    # AdaptiveMaxPool2d((1,1)) -> (b_pad, 5)
    zcols = [jnp.max(a2[:, c * ENC2_HW:(c + 1) * ENC2_HW], axis=1, keepdims=True)
             for c in range(Z_STRUCT_SIZE)]
    z = jnp.concatenate(zcols, axis=1)

    # lane-dense z output: (b_pad, 128) block, first 5 lanes hold z_struct
    z_ref[...] = jnp.zeros((b_pad, Z_OUT_LANES), f32)
    z_ref[:, 0:Z_STRUCT_SIZE] = z

    # ------------------------------ decoder_struct ------------------------------
    d1 = jnp.maximum(jnp.dot(z, wl1_ref[...], preferred_element_type=f32)
                     + vec[2:3, 0:STRUCT_HIDDEN_DIM], 0.0)                       # (b_pad, 64)
    d2 = jnp.maximum(jnp.dot(d1, wl2_ref[...].astype(f32), preferred_element_type=f32)
                     + vec[3:4, 0:PROD_RESHAPE], 0.0)                            # (b_pad, 72)
    a3 = jnp.maximum(jnp.dot(d2, tct1_ref[...].astype(f32), preferred_element_type=f32)
                     + vec[4:5, 0:CT1_TOTAL], 0.0)                               # (b_pad, 392)
    y4 = (jnp.dot(a3, tct2_ref[...].astype(f32), preferred_element_type=f32)
          + vec[5:6, 0:CT2_TOTAL])                                               # (b_pad, 256)
    xr_ref[...] = jax.nn.sigmoid(y4).astype(xr_ref.dtype)


def encoder_decoder_forward(packed, x):
    """x: (B, 1, 16, 16) NCHW -> (x_recons (B,1,16,16), z_struct (B,5))."""
    B = x.shape[0]
    b_pad = max(8, ((B + 7) // 8) * 8)        # fill the 8-sublane dim of every vreg / MXU pass
    x_flat = x.reshape(B, IN_TOTAL).astype(jnp.float32)   # contiguous (free) reshape
    if b_pad != B:
        x_flat = jnp.pad(x_flat, ((0, b_pad - B), (0, 0)))

    operands = (x_flat,
                packed["t1"], packed["t2"],
                packed["m1"], packed["m1t"], packed["m2"], packed["m2t"],
                packed["wl1"], packed["wl2"],
                packed["tct1"], packed["tct2"],
                packed["vec"])
    out_shape = (jax.ShapeDtypeStruct((b_pad, CT2_TOTAL), jnp.float32),
                 jax.ShapeDtypeStruct((b_pad, Z_OUT_LANES), jnp.float32))

    # Grid-less call: whole arrays live in VMEM, no per-step pipeline overhead.
    xr_flat, z_pad = pl.pallas_call(
        functools.partial(_fused_forward_kernel, b_real=B),
        out_shape=out_shape,
    )(*operands)
    return (xr_flat[:B].reshape(B, NC, CT2_H, CT2_H),
            z_pad[:B, :Z_STRUCT_SIZE])


# ================================ parameters ================================
def init_params(key):
    def kaiming(k, shape, fan_in):
        return (jnp.sqrt(2.0 / fan_in) * jax.random.normal(k, shape)).astype(jnp.float32)

    ks = jax.random.split(key, 10)
    return {
        # encoder (conv biases omitted: zero-initialized AND exactly cancelled by the
        # training-mode BatchNorm that immediately follows each conv)
        "enc_w1": kaiming(ks[0], (HIDDEN_FILTERS_1, NC, ENC_K1, ENC_K1), NC * ENC_K1 * ENC_K1),
        "bn1_g": jnp.ones((HIDDEN_FILTERS_1,), jnp.float32),
        "bn1_b": jnp.zeros((HIDDEN_FILTERS_1,), jnp.float32),
        "enc_w2": kaiming(ks[1], (HIDDEN_FILTERS_2, HIDDEN_FILTERS_1, ENC_K2, ENC_K2),
                          HIDDEN_FILTERS_1 * ENC_K2 * ENC_K2),
        "bn2_g": jnp.ones((HIDDEN_FILTERS_2,), jnp.float32),
        "bn2_b": jnp.zeros((HIDDEN_FILTERS_2,), jnp.float32),
        # decoder (other_architecture=True branch)
        "dec_lin1_w": kaiming(ks[2], (Z_STRUCT_SIZE, STRUCT_HIDDEN_DIM), Z_STRUCT_SIZE),
        "dec_lin1_b": 0.1 * jax.random.normal(ks[3], (STRUCT_HIDDEN_DIM,), jnp.float32),
        "dec_lin2_w": kaiming(ks[4], (STRUCT_HIDDEN_DIM, PROD_RESHAPE), STRUCT_HIDDEN_DIM),
        "dec_lin2_b": 0.1 * jax.random.normal(ks[5], (PROD_RESHAPE,), jnp.float32),
        "dec_ct1_w": kaiming(ks[6], (DEC_N_FILTER_2, DEC_N_FILTER_1, DEC_K2, DEC_K2),
                             DEC_N_FILTER_2 * DEC_K2 * DEC_K2),
        "dec_ct1_b": 0.1 * jax.random.normal(ks[7], (DEC_N_FILTER_1,), jnp.float32),
        "dec_ct2_w": kaiming(ks[8], (DEC_N_FILTER_1, NC, DEC_K1, DEC_K1),
                             DEC_N_FILTER_1 * DEC_K1 * DEC_K1),
        "dec_ct2_b": 0.1 * jax.random.normal(ks[9], (NC,), jnp.float32),
    }


def pack_params(p):
    """One-time re-packing of raw module parameters into kernel-ready operands."""
    bf16 = jnp.bfloat16
    t1 = conv2d_dense_operator(p["enc_w1"], IN_H, IN_W)                                # (256, 648)
    t2 = conv2d_dense_operator(p["enc_w2"], ENC1_H, ENC1_H)                            # (648, 245)
    tct1 = conv_transpose2d_dense_operator(p["dec_ct1_w"],
                                           STRUCT_RESHAPE[1], STRUCT_RESHAPE[2], DEC_S2)  # (72, 392)
    tct2 = conv_transpose2d_dense_operator(p["dec_ct2_w"], CT1_H, CT1_H, DEC_S1)       # (392, 256)

    m1 = channel_indicator(HIDDEN_FILTERS_1, ENC1_HW)                                  # (648, 8)
    m2 = channel_indicator(HIDDEN_FILTERS_2, ENC2_HW)                                  # (245, 5)

    # Coalesce all tiny per-layer vectors into one (8, 512) slab -> a single DMA.
    vec = np.zeros((VEC_ROWS, VEC_LANES), np.float32)
    vec[0, 0:HIDDEN_FILTERS_1] = np.asarray(p["bn1_g"])
    vec[1, 0:HIDDEN_FILTERS_1] = np.asarray(p["bn1_b"])
    vec[0, 128:128 + HIDDEN_FILTERS_2] = np.asarray(p["bn2_g"])
    vec[1, 128:128 + HIDDEN_FILTERS_2] = np.asarray(p["bn2_b"])
    vec[2, 0:STRUCT_HIDDEN_DIM] = np.asarray(p["dec_lin1_b"])
    vec[3, 0:PROD_RESHAPE] = np.asarray(p["dec_lin2_b"])
    vec[4, 0:CT1_TOTAL] = np.repeat(np.asarray(p["dec_ct1_b"]), CT1_HW)
    vec[5, 0:CT2_TOTAL] = np.repeat(np.asarray(p["dec_ct2_b"]), CT2_H * CT2_H)

    return {
        # Big operator matrices stored in bf16 (halves weight DMA); upcast in-kernel so
        # the matmul math stays f32 and matches a bf16-rounded-weight reference.
        "t1": t1.astype(bf16),
        "t2": t2.astype(bf16),
        "tct1": tct1.astype(bf16),
        "tct2": tct2.astype(bf16),
        "wl2": p["dec_lin2_w"].astype(bf16),                       # (64, 72)
        "wl1": p["dec_lin1_w"].astype(jnp.float32),                # (5, 64) tiny, keep f32
        # 0/1 channel-indicator matrices for the MXU-based BatchNorm (exact in f32)
        "m1": jnp.asarray(m1), "m1t": jnp.asarray(np.ascontiguousarray(m1.T)),
        "m2": jnp.asarray(m2), "m2t": jnp.asarray(np.ascontiguousarray(m2.T)),
        "vec": jnp.asarray(vec),
    }


# ============================== pure-JAX reference ==============================
def _ref_forward(params, x):
    """Reference forward (lax.conv based) used only to validate the fused kernel.
    The big weights are rounded to bf16 exactly like the packed kernel operands."""
    dn = ("NCHW", "OIHW", "NCHW")
    q = lambda w: w.astype(jnp.bfloat16).astype(jnp.float32)

    def bn_relu(y, g, b):
        mean = jnp.mean(y, axis=(0, 2, 3), keepdims=True)
        var = jnp.mean((y - mean) ** 2, axis=(0, 2, 3), keepdims=True)
        yh = (y - mean) * jax.lax.rsqrt(var + BN_EPS)
        return jax.nn.relu(g.reshape(1, -1, 1, 1) * yh + b.reshape(1, -1, 1, 1))

    h = jax.lax.conv_general_dilated(x, q(params["enc_w1"]), (1, 1), "VALID",
                                     dimension_numbers=dn)
    h = bn_relu(h, params["bn1_g"], params["bn1_b"])
    h = jax.lax.conv_general_dilated(h, q(params["enc_w2"]), (1, 1), "VALID",
                                     dimension_numbers=dn)
    h = bn_relu(h, params["bn2_g"], params["bn2_b"])
    z = jnp.max(h, axis=(2, 3))

    d = jax.nn.relu(z @ params["dec_lin1_w"] + params["dec_lin1_b"])
    d = jax.nn.relu(d @ q(params["dec_lin2_w"]) + params["dec_lin2_b"])
    d = d.reshape(-1, *STRUCT_RESHAPE)

    def convT(xx, wt, b, s):
        k = wt.shape[2]
        w_conv = jnp.flip(wt, (2, 3)).transpose(1, 0, 2, 3)
        y = jax.lax.conv_general_dilated(xx, w_conv, (1, 1),
                                         padding=[(k - 1, k - 1), (k - 1, k - 1)],
                                         lhs_dilation=(s, s), dimension_numbers=dn)
        return y + b.reshape(1, -1, 1, 1)

    d = jax.nn.relu(convT(d, q(params["dec_ct1_w"]), params["dec_ct1_b"], DEC_S2))
    xr = jax.nn.sigmoid(convT(d, q(params["dec_ct2_w"]), params["dec_ct2_b"], DEC_S1))
    return xr, z


# ==================================== main ====================================
if __name__ == "__main__":
    key = jax.random.PRNGKey(0)
    pkey, xkey = jax.random.split(key)
    params = init_params(pkey)
    packed = pack_params(params)                       # one-time, outside the forward path

    x = jax.random.normal(xkey, (2, NC, IN_H, IN_W), dtype=jnp.float32)

    fwd = jax.jit(encoder_decoder_forward)
    x_recons, z_struct = fwd(packed, x)
    jax.block_until_ready((x_recons, z_struct))

    # shape / sanity checks
    assert x_recons.shape == (2, NC, IN_H, IN_W), x_recons.shape
    assert z_struct.shape == (2, Z_STRUCT_SIZE), z_struct.shape
    assert bool(jnp.all(jnp.isfinite(x_recons))) and bool(jnp.all(jnp.isfinite(z_struct)))
    assert bool(jnp.all(x_recons >= 0.0)) and bool(jnp.all(x_recons <= 1.0))  # sigmoid output

    # numerical check against a pure-JAX reference of the same module
    xr_ref, z_ref_out = jax.jit(_ref_forward)(params, x)
    assert bool(jnp.allclose(z_struct, z_ref_out, rtol=1e-3, atol=1e-3))
    assert bool(jnp.allclose(x_recons, xr_ref, rtol=1e-3, atol=1e-3))

    print("KERNEL_OK")
</pallas_src>

<mosaic_0001>
module attributes {stable_mosaic.version = 11 : i64} {
  func.func @_fused_forward_kernel(%arg0: memref<8x256xf32, #tpu.memory_space<vmem>>, %arg1: memref<256x648xbf16, #tpu.memory_space<vmem>>, %arg2: memref<648x245xbf16, #tpu.memory_space<vmem>>, %arg3: memref<648x8xf32, #tpu.memory_space<vmem>>, %arg4: memref<8x648xf32, #tpu.memory_space<vmem>>, %arg5: memref<245x5xf32, #tpu.memory_space<vmem>>, %arg6: memref<5x245xf32, #tpu.memory_space<vmem>>, %arg7: memref<5x64xf32, #tpu.memory_space<vmem>>, %arg8: memref<64x72xbf16, #tpu.memory_space<vmem>>, %arg9: memref<72x392xbf16, #tpu.memory_space<vmem>>, %arg10: memref<392x256xbf16, #tpu.memory_space<vmem>>, %arg11: memref<8x512xf32, #tpu.memory_space<vmem>>, %arg12: memref<8x256xf32, #tpu.memory_space<vmem>>, %arg13: memref<8x128xf32, #tpu.memory_space<vmem>>) attributes {dimension_semantics = [], scalar_prefetch = 0 : i64, scratch_operands = 0 : i64, tpu.core_type = #tpu.core_type<tc>} {
    %c0 = arith.constant 0 : index
    %c0_0 = arith.constant 0 : index
    %0 = vector.load %arg11[%c0, %c0_0] : memref<8x512xf32, #tpu.memory_space<vmem>>, vector<8x512xf32>
    %c0_1 = arith.constant 0 : index
    %c0_2 = arith.constant 0 : index
    %1 = vector.load %arg0[%c0_1, %c0_2] : memref<8x256xf32, #tpu.memory_space<vmem>>, vector<8x256xf32>
    %c0_3 = arith.constant 0 : index
    %c0_4 = arith.constant 0 : index
    %2 = vector.load %arg1[%c0_3, %c0_4] : memref<256x648xbf16, #tpu.memory_space<vmem>>, vector<256x648xbf16>
    %3 = arith.extf %2 : vector<256x648xbf16> to vector<256x648xf32>
    %cst = arith.constant dense<0.000000e+00> : vector<8x648xf32>
    %4 = tpu.matmul %1, %3, %cst {dimension_numbers = #tpu.dot_dimension_numbers<[1], [0], [0], [1], [0, 0, 1, 1], [], []>} : vector<8x256xf32>, vector<256x648xf32>, vector<8x648xf32> -> vector<8x648xf32>
    %5 = vector.extract_strided_slice %0 {offsets = [0, 0], sizes = [1, 8], strides = [1, 1]} : vector<8x512xf32> to vector<1x8xf32>
    %6 = vector.extract_strided_slice %0 {offsets = [1, 0], sizes = [1, 8], strides = [1, 1]} : vector<8x512xf32> to vector<1x8xf32>
    %c0_5 = arith.constant 0 : index
    %c0_6 = arith.constant 0 : index
    %7 = vector.load %arg3[%c0_5, %c0_6] : memref<648x8xf32, #tpu.memory_space<vmem>>, vector<648x8xf32>
    %c0_7 = arith.constant 0 : index
    %c0_8 = arith.constant 0 : index
    %8 = vector.load %arg4[%c0_7, %c0_8] : memref<8x648xf32, #tpu.memory_space<vmem>>, vector<8x648xf32>
    %cst_9 = arith.constant dense<0.000000e+00> : vector<648xf32>
    %9 = vector.multi_reduction <add>, %4, %cst_9 [0] : vector<8x648xf32> to vector<648xf32>
    %10 = vector.shape_cast %9 : vector<648xf32> to vector<1x648xf32>
    %11 = arith.mulf %4, %4 : vector<8x648xf32>
    %cst_10 = arith.constant dense<0.000000e+00> : vector<648xf32>
    %12 = vector.multi_reduction <add>, %11, %cst_10 [0] : vector<8x648xf32> to vector<648xf32>
    %13 = vector.shape_cast %12 : vector<648xf32> to vector<1x648xf32>
    %14 = tpu.concatenate %10, %13 in 0 : vector<1x648xf32>, vector<1x648xf32> -> vector<2x648xf32>
    %cst_11 = arith.constant dense<0.000000e+00> : vector<2x8xf32>
    %15 = tpu.matmul %14, %7, %cst_11 {dimension_numbers = #tpu.dot_dimension_numbers<[1], [0], [0], [1], [0, 0, 1, 1], [], []>} : vector<2x648xf32>, vector<648x8xf32>, vector<2x8xf32> -> vector<2x8xf32>
    %16 = vector.extract_strided_slice %15 {offsets = [0, 0], sizes = [1, 8], strides = [1, 1]} : vector<2x8xf32> to vector<1x8xf32>
    %cst_12 = arith.constant 1.620000e+02 : f32
    %17 = vector.broadcast %cst_12 : f32 to vector<1x8xf32>
    %18 = arith.divf %16, %17 : vector<1x8xf32>
    %19 = vector.extract_strided_slice %15 {offsets = [1, 0], sizes = [1, 8], strides = [1, 1]} : vector<2x8xf32> to vector<1x8xf32>
    %cst_13 = arith.constant 1.620000e+02 : f32
    %20 = vector.broadcast %cst_13 : f32 to vector<1x8xf32>
    %21 = arith.divf %19, %20 : vector<1x8xf32>
    %22 = arith.mulf %18, %18 : vector<1x8xf32>
    %23 = arith.subf %21, %22 : vector<1x8xf32>
    %cst_14 = arith.constant 0.000000e+00 : f32
    %24 = vector.broadcast %cst_14 : f32 to vector<1x8xf32>
    %25 = arith.maximumf %23, %24 : vector<1x8xf32>
    %cst_15 = arith.constant 9.99999974E-6 : f32
    %26 = vector.broadcast %cst_15 : f32 to vector<1x8xf32>
    %27 = arith.addf %25, %26 : vector<1x8xf32>
    %28 = math.rsqrt %27 : vector<1x8xf32>
    %29 = arith.mulf %5, %28 : vector<1x8xf32>
    %30 = arith.mulf %18, %29 : vector<1x8xf32>
    %31 = arith.subf %6, %30 : vector<1x8xf32>
    %32 = tpu.concatenate %29, %31 in 0 : vector<1x8xf32>, vector<1x8xf32> -> vector<2x8xf32>
    %cst_16 = arith.constant dense<0.000000e+00> : vector<2x648xf32>
    %33 = tpu.matmul %32, %8, %cst_16 {dimension_numbers = #tpu.dot_dimension_numbers<[1], [0], [0], [1], [0, 0, 1, 1], [], []>} : vector<2x8xf32>, vector<8x648xf32>, vector<2x648xf32> -> vector<2x648xf32>
    %34 = vector.extract_strided_slice %33 {offsets = [0, 0], sizes = [1, 648], strides = [1, 1]} : vector<2x648xf32> to vector<1x648xf32>
    %35 = vector.broadcast %34 : vector<1x648xf32> to vector<8x648xf32>
    %36 = arith.mulf %4, %35 : vector<8x648xf32>
    %37 = vector.extract_strided_slice %33 {offsets = [1, 0], sizes = [1, 648], strides = [1, 1]} : vector<2x648xf32> to vector<1x648xf32>
    %38 = vector.broadcast %37 : vector<1x648xf32> to vector<8x648xf32>
    %39 = arith.addf %36, %38 : vector<8x648xf32>
    %cst_17 = arith.constant 0.000000e+00 : f32
    %40 = vector.broadcast %cst_17 : f32 to vector<8x648xf32>
    %41 = arith.maximumf %39, %40 : vector<8x648xf32>
    %42 = tpu.iota {dimensions = array<i32: 0>} : vector<8x648xi32>
    %c2_i32 = arith.constant 2 : i32
    %43 = vector.broadcast %c2_i32 : i32 to vector<8x648xi32>
    %44 = arith.cmpi slt, %42, %43 : vector<8x648xi32>
    %cst_18 = arith.constant 0.000000e+00 : f32
    %45 = vector.broadcast %cst_18 : f32 to vector<8x648xf32>
    %46 = arith.select %44, %41, %45 : vector<8x648xi1>, vector<8x648xf32>
    %c0_19 = arith.constant 0 : index
    %c0_20 = arith.constant 0 : index
    %47 = vector.load %arg2[%c0_19, %c0_20] : memref<648x245xbf16, #tpu.memory_space<vmem>>, vector<648x245xbf16>
    %48 = arith.extf %47 : vector<648x245xbf16> to vector<648x245xf32>
    %cst_21 = arith.constant dense<0.000000e+00> : vector<8x245xf32>
    %49 = tpu.matmul %46, %48, %cst_21 {dimension_numbers = #tpu.dot_dimension_numbers<[1], [0], [0], [1], [0, 0, 1, 1], [], []>} : vector<8x648xf32>, vector<648x245xf32>, vector<8x245xf32> -> vector<8x245xf32>
    %50 = vector.extract_strided_slice %0 {offsets = [0, 128], sizes = [1, 5], strides = [1, 1]} : vector<8x512xf32> to vector<1x5xf32>
    %51 = vector.extract_strided_slice %0 {offsets = [1, 128], sizes = [1, 5], strides = [1, 1]} : vector<8x512xf32> to vector<1x5xf32>
    %c0_22 = arith.constant 0 : index
    %c0_23 = arith.constant 0 : index
    %52 = vector.load %arg5[%c0_22, %c0_23] : memref<245x5xf32, #tpu.memory_space<vmem>>, vector<245x5xf32>
    %c0_24 = arith.constant 0 : index
    %c0_25 = arith.constant 0 : index
    %53 = vector.load %arg6[%c0_24, %c0_25] : memref<5x245xf32, #tpu.memory_space<vmem>>, vector<5x245xf32>
    %cst_26 = arith.constant dense<0.000000e+00> : vector<245xf32>
    %54 = vector.multi_reduction <add>, %49, %cst_26 [0] : vector<8x245xf32> to vector<245xf32>
    %55 = vector.shape_cast %54 : vector<245xf32> to vector<1x245xf32>
    %56 = arith.mulf %49, %49 : vector<8x245xf32>
    %cst_27 = arith.constant dense<0.000000e+00> : vector<245xf32>
    %57 = vector.multi_reduction <add>, %56, %cst_27 [0] : vector<8x245xf32> to vector<245xf32>
    %58 = vector.shape_cast %57 : vector<245xf32> to vector<1x245xf32>
    %59 = tpu.concatenate %55, %58 in 0 : vector<1x245xf32>, vector<1x245xf32> -> vector<2x245xf32>
    %cst_28 = arith.constant dense<0.000000e+00> : vector<2x5xf32>
    %60 = tpu.matmul %59, %52, %cst_28 {dimension_numbers = #tpu.dot_dimension_numbers<[1], [0], [0], [1], [0, 0, 1, 1], [], []>} : vector<2x245xf32>, vector<245x5xf32>, vector<2x5xf32> -> vector<2x5xf32>
    %61 = vector.extract_strided_slice %60 {offsets = [0, 0], sizes = [1, 5], strides = [1, 1]} : vector<2x5xf32> to vector<1x5xf32>
    %cst_29 = arith.constant 9.800000e+01 : f32
    %62 = vector.broadcast %cst_29 : f32 to vector<1x5xf32>
    %63 = arith.divf %61, %62 : vector<1x5xf32>
    %64 = vector.extract_strided_slice %60 {offsets = [1, 0], sizes = [1, 5], strides = [1, 1]} : vector<2x5xf32> to vector<1x5xf32>
    %cst_30 = arith.constant 9.800000e+01 : f32
    %65 = vector.broadcast %cst_30 : f32 to vector<1x5xf32>
    %66 = arith.divf %64, %65 : vector<1x5xf32>
    %67 = arith.mulf %63, %63 : vector<1x5xf32>
    %68 = arith.subf %66, %67 : vector<1x5xf32>
    %cst_31 = arith.constant 0.000000e+00 : f32
    %69 = vector.broadcast %cst_31 : f32 to vector<1x5xf32>
    %70 = arith.maximumf %68, %69 : vector<1x5xf32>
    %cst_32 = arith.constant 9.99999974E-6 : f32
    %71 = vector.broadcast %cst_32 : f32 to vector<1x5xf32>
    %72 = arith.addf %70, %71 : vector<1x5xf32>
    %73 = math.rsqrt %72 : vector<1x5xf32>
    %74 = arith.mulf %50, %73 : vector<1x5xf32>
    %75 = arith.mulf %63, %74 : vector<1x5xf32>
    %76 = arith.subf %51, %75 : vector<1x5xf32>
    %77 = tpu.concatenate %74, %76 in 0 : vector<1x5xf32>, vector<1x5xf32> -> vector<2x5xf32>
    %cst_33 = arith.constant dense<0.000000e+00> : vector<2x245xf32>
    %78 = tpu.matmul %77, %53, %cst_33 {dimension_numbers = #tpu.dot_dimension_numbers<[1], [0], [0], [1], [0, 0, 1, 1], [], []>} : vector<2x5xf32>, vector<5x245xf32>, vector<2x245xf32> -> vector<2x245xf32>
    %79 = vector.extract_strided_slice %78 {offsets = [0, 0], sizes = [1, 245], strides = [1, 1]} : vector<2x245xf32> to vector<1x245xf32>
    %80 = vector.broadcast %79 : vector<1x245xf32> to vector<8x245xf32>
    %81 = arith.mulf %49, %80 : vector<8x245xf32>
    %82 = vector.extract_strided_slice %78 {offsets = [1, 0], sizes = [1, 245], strides = [1, 1]} : vector<2x245xf32> to vector<1x245xf32>
    %83 = vector.broadcast %82 : vector<1x245xf32> to vector<8x245xf32>
    %84 = arith.addf %81, %83 : vector<8x245xf32>
    %cst_34 = arith.constant 0.000000e+00 : f32
    %85 = vector.broadcast %cst_34 : f32 to vector<8x245xf32>
    %86 = arith.maximumf %84, %85 : vector<8x245xf32>
    %87 = vector.extract_strided_slice %86 {offsets = [0, 0], sizes = [8, 49], strides = [1, 1]} : vector<8x245xf32> to vector<8x49xf32>
    %cst_35 = arith.constant dense<0xFF800000> : vector<8xf32>
    %88 = vector.multi_reduction <maximumf>, %87, %cst_35 [1] : vector<8x49xf32> to vector<8xf32>
    %89 = vector.shape_cast %88 : vector<8xf32> to vector<8x1xf32>
    %90 = vector.extract_strided_slice %86 {offsets = [0, 49], sizes = [8, 49], strides = [1, 1]} : vector<8x245xf32> to vector<8x49xf32>
    %cst_36 = arith.constant dense<0xFF800000> : vector<8xf32>
    %91 = vector.multi_reduction <maximumf>, %90, %cst_36 [1] : vector<8x49xf32> to vector<8xf32>
    %92 = vector.shape_cast %91 : vector<8xf32> to vector<8x1xf32>
    %93 = vector.extract_strided_slice %86 {offsets = [0, 98], sizes = [8, 49], strides = [1, 1]} : vector<8x245xf32> to vector<8x49xf32>
    %cst_37 = arith.constant dense<0xFF800000> : vector<8xf32>
    %94 = vector.multi_reduction <maximumf>, %93, %cst_37 [1] : vector<8x49xf32> to vector<8xf32>
    %95 = vector.shape_cast %94 : vector<8xf32> to vector<8x1xf32>
    %96 = vector.extract_strided_slice %86 {offsets = [0, 147], sizes = [8, 49], strides = [1, 1]} : vector<8x245xf32> to vector<8x49xf32>
    %cst_38 = arith.constant dense<0xFF800000> : vector<8xf32>
    %97 = vector.multi_reduction <maximumf>, %96, %cst_38 [1] : vector<8x49xf32> to vector<8xf32>
    %98 = vector.shape_cast %97 : vector<8xf32> to vector<8x1xf32>
    %99 = vector.extract_strided_slice %86 {offsets = [0, 196], sizes = [8, 49], strides = [1, 1]} : vector<8x245xf32> to vector<8x49xf32>
    %cst_39 = arith.constant dense<0xFF800000> : vector<8xf32>
    %100 = vector.multi_reduction <maximumf>, %99, %cst_39 [1] : vector<8x49xf32> to vector<8xf32>
    %101 = vector.shape_cast %100 : vector<8xf32> to vector<8x1xf32>
    %102 = tpu.concatenate %89, %92, %95, %98, %101 in 1 : vector<8x1xf32>, vector<8x1xf32>, vector<8x1xf32>, vector<8x1xf32>, vector<8x1xf32> -> vector<8x5xf32>
    %cst_40 = arith.constant 0.000000e+00 : f32
    %103 = vector.broadcast %cst_40 : f32 to vector<8x128xf32>
    %c0_41 = arith.constant 0 : index
    %c0_42 = arith.constant 0 : index
    %104 = vector.load %arg13[%c0_41, %c0_42] : memref<8x128xf32, #tpu.memory_space<vmem>>, vector<8x128xf32>
    tpu.vector_store %arg13[%c0_41, %c0_42], %103 {strides = array<i32>} : memref<8x128xf32, #tpu.memory_space<vmem>>, vector<8x128xf32>,
    %c0_43 = arith.constant 0 : index
    %c0_44 = arith.constant 0 : index
    %105 = vector.load %arg13[%c0_43, %c0_44] : memref<8x128xf32, #tpu.memory_space<vmem>>, vector<8x5xf32>
    tpu.vector_store %arg13[%c0_43, %c0_44], %102 {strides = array<i32>} : memref<8x128xf32, #tpu.memory_space<vmem>>, vector<8x5xf32>,
    %c0_45 = arith.constant 0 : index
    %c0_46 = arith.constant 0 : index
    %106 = vector.load %arg7[%c0_45, %c0_46] : memref<5x64xf32, #tpu.memory_space<vmem>>, vector<5x64xf32>
    %cst_47 = arith.constant dense<0.000000e+00> : vector<8x64xf32>
    %107 = tpu.matmul %102, %106, %cst_47 {dimension_numbers = #tpu.dot_dimension_numbers<[1], [0], [0], [1], [0, 0, 1, 1], [], []>} : vector<8x5xf32>, vector<5x64xf32>, vector<8x64xf32> -> vector<8x64xf32>
    %108 = vector.extract_strided_slice %0 {offsets = [2, 0], sizes = [1, 64], strides = [1, 1]} : vector<8x512xf32> to vector<1x64xf32>
    %109 = vector.broadcast %108 : vector<1x64xf32> to vector<8x64xf32>
    %110 = arith.addf %107, %109 : vector<8x64xf32>
    %cst_48 = arith.constant 0.000000e+00 : f32
    %111 = vector.broadcast %cst_48 : f32 to vector<8x64xf32>
    %112 = arith.maximumf %110, %111 : vector<8x64xf32>
    %c0_49 = arith.constant 0 : index
    %c0_50 = arith.constant 0 : index
    %113 = vector.load %arg8[%c0_49, %c0_50] : memref<64x72xbf16, #tpu.memory_space<vmem>>, vector<64x72xbf16>
    %114 = arith.extf %113 : vector<64x72xbf16> to vector<64x72xf32>
    %cst_51 = arith.constant dense<0.000000e+00> : vector<8x72xf32>
    %115 = tpu.matmul %112, %114, %cst_51 {dimension_numbers = #tpu.dot_dimension_numbers<[1], [0], [0], [1], [0, 0, 1, 1], [], []>} : vector<8x64xf32>, vector<64x72xf32>, vector<8x72xf32> -> vector<8x72xf32>
    %116 = vector.extract_strided_slice %0 {offsets = [3, 0], sizes = [1, 72], strides = [1, 1]} : vector<8x512xf32> to vector<1x72xf32>
    %117 = vector.broadcast %116 : vector<1x72xf32> to vector<8x72xf32>
    %118 = arith.addf %115, %117 : vector<8x72xf32>
    %cst_52 = arith.constant 0.000000e+00 : f32
    %119 = vector.broadcast %cst_52 : f32 to vector<8x72xf32>
    %120 = arith.maximumf %118, %119 : vector<8x72xf32>
    %c0_53 = arith.constant 0 : index
    %c0_54 = arith.constant 0 : index
    %121 = vector.load %arg9[%c0_53, %c0_54] : memref<72x392xbf16, #tpu.memory_space<vmem>>, vector<72x392xbf16>
    %122 = arith.extf %121 : vector<72x392xbf16> to vector<72x392xf32>
    %cst_55 = arith.constant dense<0.000000e+00> : vector<8x392xf32>
    %123 = tpu.matmul %120, %122, %cst_55 {dimension_numbers = #tpu.dot_dimension_numbers<[1], [0], [0], [1], [0, 0, 1, 1], [], []>} : vector<8x72xf32>, vector<72x392xf32>, vector<8x392xf32> -> vector<8x392xf32>
    %124 = vector.extract_strided_slice %0 {offsets = [4, 0], sizes = [1, 392], strides = [1, 1]} : vector<8x512xf32> to vector<1x392xf32>
    %125 = vector.broadcast %124 : vector<1x392xf32> to vector<8x392xf32>
    %126 = arith.addf %123, %125 : vector<8x392xf32>
    %cst_56 = arith.constant 0.000000e+00 : f32
    %127 = vector.broadcast %cst_56 : f32 to vector<8x392xf32>
    %128 = arith.maximumf %126, %127 : vector<8x392xf32>
    %c0_57 = arith.constant 0 : index
    %c0_58 = arith.constant 0 : index
    %129 = vector.load %arg10[%c0_57, %c0_58] : memref<392x256xbf16, #tpu.memory_space<vmem>>, vector<392x256xbf16>
    %130 = arith.extf %129 : vector<392x256xbf16> to vector<392x256xf32>
    %cst_59 = arith.constant dense<0.000000e+00> : vector<8x256xf32>
    %131 = tpu.matmul %128, %130, %cst_59 {dimension_numbers = #tpu.dot_dimension_numbers<[1], [0], [0], [1], [0, 0, 1, 1], [], []>} : vector<8x392xf32>, vector<392x256xf32>, vector<8x256xf32> -> vector<8x256xf32>
    %132 = vector.extract_strided_slice %0 {offsets = [5, 0], sizes = [1, 256], strides = [1, 1]} : vector<8x512xf32> to vector<1x256xf32>
    %133 = vector.broadcast %132 : vector<1x256xf32> to vector<8x256xf32>
    %134 = arith.addf %131, %133 : vector<8x256xf32>
    %135 = arith.negf %134 : vector<8x256xf32>
    %136 = math.exp %135 : vector<8x256xf32>
    %cst_60 = arith.constant 1.000000e+00 : f32
    %137 = vector.broadcast %cst_60 : f32 to vector<8x256xf32>
    %138 = arith.addf %137, %136 : vector<8x256xf32>
    %139 = arith.divf %137, %138 : vector<8x256xf32>
    %c0_61 = arith.constant 0 : index
    %c0_62 = arith.constant 0 : index
    %140 = vector.load %arg12[%c0_61, %c0_62] : memref<8x256xf32, #tpu.memory_space<vmem>>, vector<8x256xf32>
    tpu.vector_store %arg12[%c0_61, %c0_62], %139 {strides = array<i32>} : memref<8x256xf32, #tpu.memory_space<vmem>>, vector<8x256xf32>,
    return
  }
}

</mosaic_0001>

<llo_original>
// kernel: encoder_decoder_forward.1
$region0: #{encoder_decoder_forward.1}
  #allocation0 [shape = 'u32[]', space=smem, size = 0x4, offset = 0x4, fixed_abs, tag = 'smem constant byte address 0x4 - core index']
  #allocation1 [shape = 'u32[144,128]{1,0:T(1,128)}', space=vmem, size = 0x12000, scoped, tag = 'internal scratch']
  %s0 = inlined_call_operand.vmem [shape: f32[8,256], index: 0, kind: input, shape index: {}]
  %s1 = inlined_call_operand.vmem [shape: bf16[256,648], index: 1, kind: input, shape index: {}]
  %s2 = inlined_call_operand.vmem [shape: bf16[648,245], index: 2, kind: input, shape index: {}]
  %s3 = inlined_call_operand.vmem [shape: f32[648,8], index: 3, kind: input, shape index: {}]
  %s4 = inlined_call_operand.vmem [shape: f32[8,648], index: 4, kind: input, shape index: {}]
  %s5 = inlined_call_operand.vmem [shape: f32[245,5], index: 5, kind: input, shape index: {}]
  %s6 = inlined_call_operand.vmem [shape: f32[5,245], index: 6, kind: input, shape index: {}]
  %s7 = inlined_call_operand.vmem [shape: f32[5,64], index: 7, kind: input, shape index: {}]
  %s8 = inlined_call_operand.vmem [shape: bf16[64,72], index: 8, kind: input, shape index: {}]
  %s9 = inlined_call_operand.vmem [shape: bf16[72,392], index: 9, kind: input, shape index: {}]
  %s10 = inlined_call_operand.vmem [shape: bf16[392,256], index: 10, kind: input, shape index: {}]
  %s11 = inlined_call_operand.vmem [shape: f32[8,512], index: 11, kind: input, shape index: {}]
  %s12 = inlined_call_operand.vmem [shape: f32[8,256], index: 12, kind: output, shape index: {0}]
  %s13 = inlined_call_operand.vmem [shape: f32[8,128], index: 13, kind: output, shape index: {1}]
  %14 = xla_tuple %s12, %s13
  %s15 = sld [smem:[#allocation0]]
  $region66: #{encoder_decoder_forward.1} parent=0
    _
  %s17 = ssub.s32 1, %s15
  %s18 = scalar_select 0, %s17, %s15
  // Predicated region
  $region2: #{encoder_decoder_forward.1} parent=0 // pred_check
    _
  $region3: #{encoder_decoder_forward.1} parent=0 // pred_check_branch
    %20 = sbr.rel (0) target = $region5
  $region4: #{encoder_decoder_forward.1} parent=0 // pred_region
    _
  $region5: #{encoder_decoder_forward.1} parent=0 // pred_fallthru
    _
  // Predicated region
  $region6: #{encoder_decoder_forward.1} parent=0 // pred_check
    _
  $region7: #{encoder_decoder_forward.1} parent=0 // pred_check_branch
    %22 = sbr.rel (0) target = $region9
  $region8: #{encoder_decoder_forward.1} parent=0 // pred_region
    _
  $region9: #{encoder_decoder_forward.1} parent=0 // pred_fallthru
    _
  // Predicated region
  $region10: #{encoder_decoder_forward.1} parent=0 // pred_check
    _
  $region11: #{encoder_decoder_forward.1} parent=0 // pred_check_branch
    %24 = sbr.rel (0) target = $region13
  $region12: #{encoder_decoder_forward.1} parent=0 // pred_region
    _
  $region13: #{encoder_decoder_forward.1} parent=0 // pred_fallthru
    _
  // Predicated region
  $region14: #{encoder_decoder_forward.1} parent=0 // pred_check
    _
  $region15: #{encoder_decoder_forward.1} parent=0 // pred_check_branch
    %26 = sbr.rel (0) target = $region17
  $region16: #{encoder_decoder_forward.1} parent=0 // pred_region
    _
  $region17: #{encoder_decoder_forward.1} parent=0 // pred_fallthru
    _
  // Predicated region
  $region18: #{encoder_decoder_forward.1} parent=0 // pred_check
    _
  $region19: #{encoder_decoder_forward.1} parent=0 // pred_check_branch
    %28 = sbr.rel (0) target = $region21
  $region20: #{encoder_decoder_forward.1} parent=0 // pred_region
    _
  $region21: #{encoder_decoder_forward.1} parent=0 // pred_fallthru
    _
  // Predicated region
  $region22: #{encoder_decoder_forward.1} parent=0 // pred_check
    _
  $region23: #{encoder_decoder_forward.1} parent=0 // pred_check_branch
    %30 = sbr.rel (0) target = $region25
  $region24: #{encoder_decoder_forward.1} parent=0 // pred_region
    _
  $region25: #{encoder_decoder_forward.1} parent=0 // pred_fallthru
    _
  // Predicated region
  $region26: #{encoder_decoder_forward.1} parent=0 // pred_check
    _
  $region27: #{encoder_decoder_forward.1} parent=0 // pred_check_branch
    %32 = sbr.rel (0) target = $region29
  $region28: #{encoder_decoder_forward.1} parent=0 // pred_region
    _
  $region29: #{encoder_decoder_forward.1} parent=0 // pred_fallthru
    _
  // Predicated region
  $region30: #{encoder_decoder_forward.1} parent=0 // pred_check
    _
  $region31: #{encoder_decoder_forward.1} parent=0 // pred_check_branch
    %34 = sbr.rel (0) target = $region33
  $region32: #{encoder_decoder_forward.1} parent=0 // pred_region
    _
  $region33: #{encoder_decoder_forward.1} parent=0 // pred_fallthru
    _
  // Predicated region
  $region34: #{encoder_decoder_forward.1} parent=0 // pred_check
    _
  $region35: #{encoder_decoder_forward.1} parent=0 // pred_check_branch
    %36 = sbr.rel (0) target = $region37
  $region36: #{encoder_decoder_forward.1} parent=0 // pred_region
    _
  $region37: #{encoder_decoder_forward.1} parent=0 // pred_fallthru
    _
  // Predicated region
  $region38: #{encoder_decoder_forward.1} parent=0 // pred_check
    _
  $region39: #{encoder_decoder_forward.1} parent=0 // pred_check_branch
    %38 = sbr.rel (0) target = $region41
  $region40: #{encoder_decoder_forward.1} parent=0 // pred_region
    _
  $region41: #{encoder_decoder_forward.1} parent=0 // pred_fallthru
    _
  // Predicated region
  $region42: #{encoder_decoder_forward.1} parent=0 // pred_check
    _
  $region43: #{encoder_decoder_forward.1} parent=0 // pred_check_branch
    %40 = sbr.rel (0) target = $region45
  $region44: #{encoder_decoder_forward.1} parent=0 // pred_region
    _
  $region45: #{encoder_decoder_forward.1} parent=0 // pred_fallthru
    _
  // Predicated region
  $region46: #{encoder_decoder_forward.1} parent=0 // pred_check
    _
  $region47: #{encoder_decoder_forward.1} parent=0 // pred_check_branch
    %42 = sbr.rel (0) target = $region49
  $region48: #{encoder_decoder_forward.1} parent=0 // pred_region
    _
  $region49: #{encoder_decoder_forward.1} parent=0 // pred_fallthru
    _
  %v43 = vld [vmem:[%s11] sm:$0xff]
  %v44 = vld [vmem:[%s11 + $0x8] sm:$0xff]
  %v45 = vld [vmem:[%s11 + $0x10] sm:$0xff]
  %v46 = vld [vmem:[%s11 + $0x18] sm:$0xff]
  %v47 = vld [vmem:[%s0] sm:$0xff]
  %v48 = vld [vmem:[%s0 + $0x8] sm:$0xff]
  %v49 = vld [vmem:[%s1] sm:$0xff]
  %v50 = vld [vmem:[%s1 + $0x8] sm:$0xff]
  %v51 = vld [vmem:[%s1 + $0x10] sm:$0xff]
  %v52 = vld [vmem:[%s1 + $0x18] sm:$0xff]
  %v53 = vld [vmem:[%s1 + $0x20] sm:$0xff]
  %v54 = vld [vmem:[%s1 + $0x28] sm:$0xff]
  %v55 = vld [vmem:[%s1 + $0x30] sm:$0xff]
  %v56 = vld [vmem:[%s1 + $0x38] sm:$0xff]
  %v57 = vld [vmem:[%s1 + $0x40] sm:$0xff]
  %v58 = vld [vmem:[%s1 + $0x48] sm:$0xff]
  %v59 = vld [vmem:[%s1 + $0x50] sm:$0xff]
  %v60 = vld [vmem:[%s1 + $0x58] sm:$0xff]
  %v61 = vld [vmem:[%s1 + $0x60] sm:$0xff]
  %v62 = vld [vmem:[%s1 + $0x68] sm:$0xff]
  %v63 = vld [vmem:[%s1 + $0x70] sm:$0xff]
  %v64 = vld [vmem:[%s1 + $0x78] sm:$0xff]
  %v65 = vld [vmem:[%s1 + $0x80] sm:$0xff]
  %v66 = vld [vmem:[%s1 + $0x88] sm:$0xff]
  %v67 = vld [vmem:[%s1 + $0x90] sm:$0xff]
  %v68 = vld [vmem:[%s1 + $0x98] sm:$0xff]
  %v69 = vld [vmem:[%s1 + $0xa0] sm:$0xff]
  %v70 = vld [vmem:[%s1 + $0xa8] sm:$0xff]
  %v71 = vld [vmem:[%s1 + $0xb0] sm:$0xff]
  %v72 = vld [vmem:[%s1 + $0xb8] sm:$0xff]
  %v73 = vld [vmem:[%s1 + $0xc0] sm:$0xff]
  %v74 = vld [vmem:[%s1 + $0xc8] sm:$0xff]
  %v75 = vld [vmem:[%s1 + $0xd0] sm:$0xff]
  %v76 = vld [vmem:[%s1 + $0xd8] sm:$0xff]
  %v77 = vld [vmem:[%s1 + $0xe0] sm:$0xff]
  %v78 = vld [vmem:[%s1 + $0xe8] sm:$0xff]
  %v79 = vld [vmem:[%s1 + $0xf0] sm:$0xff]
  %v80 = vld [vmem:[%s1 + $0xf8] sm:$0xff]
  %v81 = vld [vmem:[%s1 + $0x100] sm:$0xff]
  %v82 = vld [vmem:[%s1 + $0x108] sm:$0xff]
  %v83 = vld [vmem:[%s1 + $0x110] sm:$0xff]
  %v84 = vld [vmem:[%s1 + $0x118] sm:$0xff]
  %v85 = vld [vmem:[%s1 + $0x120] sm:$0xff]
  %v86 = vld [vmem:[%s1 + $0x128] sm:$0xff]
  %v87 = vld [vmem:[%s1 + $0x130] sm:$0xff]
  %v88 = vld [vmem:[%s1 + $0x138] sm:$0xff]
  %v89 = vld [vmem:[%s1 + $0x140] sm:$0xff]
  %v90 = vld [vmem:[%s1 + $0x148] sm:$0xff]
  %v91 = vld [vmem:[%s1 + $0x150] sm:$0xff]
  %v92 = vld [vmem:[%s1 + $0x158] sm:$0xff]
  %v93 = vld [vmem:[%s1 + $0x160] sm:$0xff]
  %v94 = vld [vmem:[%s1 + $0x168] sm:$0xff]
  %v95 = vld [vmem:[%s1 + $0x170] sm:$0xff]
  %v96 = vld [vmem:[%s1 + $0x178] sm:$0xff]
  %v97 = vld [vmem:[%s1 + $0x180] sm:$0xff]
  %v98 = vld [vmem:[%s1 + $0x188] sm:$0xff]
  %v99 = vld [vmem:[%s1 + $0x190] sm:$0xff]
  %v100 = vld [vmem:[%s1 + $0x198] sm:$0xff]
  %v101 = vld [vmem:[%s1 + $0x1a0] sm:$0xff]
  %v102 = vld [vmem:[%s1 + $0x1a8] sm:$0xff]
  %v103 = vld [vmem:[%s1 + $0x1b0] sm:$0xff]
  %v104 = vld [vmem:[%s1 + $0x1b8] sm:$0xff]
  %v105 = vld [vmem:[%s1 + $0x1c0] sm:$0xff]
  %v106 = vld [vmem:[%s1 + $0x1c8] sm:$0xff]
  %v107 = vld [vmem:[%s1 + $0x1d0] sm:$0xff]
  %v108 = vld [vmem:[%s1 + $0x1d8] sm:$0xff]
  %v109 = vld [vmem:[%s1 + $0x1e0] sm:$0xff]
  %v110 = vld [vmem:[%s1 + $0x1e8] sm:$0xff]
  %v111 = vld [vmem:[%s1 + $0x1f0] sm:$0xff]
  %v112 = vld [vmem:[%s1 + $0x1f8] sm:$0xff]
  %v113 = vld [vmem:[%s1 + $0x200] sm:$0xff]
  %v114 = vld [vmem:[%s1 + $0x208] sm:$0xff]
  %v115 = vld [vmem:[%s1 + $0x210] sm:$0xff]
  %v116 = vld [vmem:[%s1 + $0x218] sm:$0xff]
  %v117 = vld [vmem:[%s1 + $0x220] sm:$0xff]
  %v118 = vld [vmem:[%s1 + $0x228] sm:$0xff]
  %v119 = vld [vmem:[%s1 + $0x230] sm:$0xff]
  %v120 = vld [vmem:[%s1 + $0x238] sm:$0xff]
  %v121 = vld [vmem:[%s1 + $0x240] sm:$0xff]
  %v122 = vld [vmem:[%s1 + $0x248] sm:$0xff]
  %v123 = vld [vmem:[%s1 + $0x250] sm:$0xff]
  %v124 = vld [vmem:[%s1 + $0x258] sm:$0xff]
  %v125 = vld [vmem:[%s1 + $0x260] sm:$0xff]
  %v126 = vld [vmem:[%s1 + $0x268] sm:$0xff]
  %v127 = vld [vmem:[%s1 + $0x270] sm:$0xff]
  %v128 = vld [vmem:[%s1 + $0x278] sm:$0xff]
  %v129 = vld [vmem:[%s1 + $0x280] sm:$0xff]
  %v130 = vld [vmem:[%s1 + $0x288] sm:$0xff]
  %v131 = vld [vmem:[%s1 + $0x290] sm:$0xff]
  %v132 = vld [vmem:[%s1 + $0x298] sm:$0xff]
  %v133 = vld [vmem:[%s1 + $0x2a0] sm:$0xff]
  %v134 = vld [vmem:[%s1 + $0x2a8] sm:$0xff]
  %v135 = vld [vmem:[%s1 + $0x2b0] sm:$0xff]
  %v136 = vld [vmem:[%s1 + $0x2b8] sm:$0xff]
  %v137 = vld [vmem:[%s1 + $0x2c0] sm:$0xff]
  %v138 = vld [vmem:[%s1 + $0x2c8] sm:$0xff]
  %v139 = vld [vmem:[%s1 + $0x2d0] sm:$0xff]
  %v140 = vld [vmem:[%s1 + $0x2d8] sm:$0xff]
  %v141 = vld [vmem:[%s1 + $0x2e0] sm:$0xff]
  %v142 = vld [vmem:[%s1 + $0x2e8] sm:$0xff]
  %v143 = vld [vmem:[%s1 + $0x2f0] sm:$0xff]
  %v144 = vld [vmem:[%s1 + $0x2f8] sm:$0xff]
  %v145 = vunpack.c.l.bf16 %v49
  %v146 = vunpack.c.h.bf16 %v49
  %v147 = vunpack.c.l.bf16 %v50
  %v148 = vunpack.c.h.bf16 %v50
  %v149 = vunpack.c.l.bf16 %v51
  %v150 = vunpack.c.h.bf16 %v51
  %v151 = vunpack.c.l.bf16 %v52
  %v152 = vunpack.c.h.bf16 %v52
  %v153 = vunpack.c.l.bf16 %v53
  %v154 = vunpack.c.h.bf16 %v53
  %v155 = vunpack.c.l.bf16 %v54
  %v156 = vunpack.c.h.bf16 %v54
  %v157 = vunpack.c.l.bf16 %v55
  %v158 = vunpack.c.h.bf16 %v55
  %v159 = vunpack.c.l.bf16 %v56
  %v160 = vunpack.c.h.bf16 %v56
  %v161 = vunpack.c.l.bf16 %v57
  %v162 = vunpack.c.h.bf16 %v57
  %v163 = vunpack.c.l.bf16 %v58
  %v164 = vunpack.c.h.bf16 %v58
  %v165 = vunpack.c.l.bf16 %v59
  %v166 = vunpack.c.h.bf16 %v59
  %v167 = vunpack.c.l.bf16 %v60
  %v168 = vunpack.c.h.bf16 %v60
  %v169 = vunpack.c.l.bf16 %v61
  %v170 = vunpack.c.h.bf16 %v61
  %v171 = vunpack.c.l.bf16 %v62
  %v172 = vunpack.c.h.bf16 %v62
  %v173 = vunpack.c.l.bf16 %v63
  %v174 = vunpack.c.h.bf16 %v63
  %v175 = vunpack.c.l.bf16 %v64
  %v176 = vunpack.c.h.bf16 %v64
  %v177 = vunpack.c.l.bf16 %v65
  %v178 = vunpack.c.h.bf16 %v65
  %v179 = vunpack.c.l.bf16 %v66
  %v180 = vunpack.c.h.bf16 %v66
  %v181 = vunpack.c.l.bf16 %v67
  %v182 = vunpack.c.h.bf16 %v67
  %v183 = vunpack.c.l.bf16 %v68
  %v184 = vunpack.c.h.bf16 %v68
  %v185 = vunpack.c.l.bf16 %v69
  %v186 = vunpack.c.h.bf16 %v69
  %v187 = vunpack.c.l.bf16 %v70
  %v188 = vunpack.c.h.bf16 %v70
  %v189 = vunpack.c.l.bf16 %v71
  %v190 = vunpack.c.h.bf16 %v71
  %v191 = vunpack.c.l.bf16 %v72
  %v192 = vunpack.c.h.bf16 %v72
  %v193 = vunpack.c.l.bf16 %v73
  %v194 = vunpack.c.h.bf16 %v73
  %v195 = vunpack.c.l.bf16 %v74
  %v196 = vunpack.c.h.bf16 %v74
  %v197 = vunpack.c.l.bf16 %v75
  %v198 = vunpack.c.h.bf16 %v75
  %v199 = vunpack.c.l.bf16 %v76
  %v200 = vunpack.c.h.bf16 %v76
  %v201 = vunpack.c.l.bf16 %v77
  %v202 = vunpack.c.h.bf16 %v77
  %v203 = vunpack.c.l.bf16 %v78
  %v204 = vunpack.c.h.bf16 %v78
  %v205 = vunpack.c.l.bf16 %v79
  %v206 = vunpack.c.h.bf16 %v79
  %v207 = vunpack.c.l.bf16 %v80
  %v208 = vunpack.c.h.bf16 %v80
  %v209 = vunpack.c.l.bf16 %v81
  %v210 = vunpack.c.h.bf16 %v81
  %v211 = vunpack.c.l.bf16 %v82
  %v212 = vunpack.c.h.bf16 %v82
  %v213 = vunpack.c.l.bf16 %v83
  %v214 = vunpack.c.h.bf16 %v83
  %v215 = vunpack.c.l.bf16 %v84
  %v216 = vunpack.c.h.bf16 %v84
  %v217 = vunpack.c.l.bf16 %v85
  %v218 = vunpack.c.h.bf16 %v85
  %v219 = vunpack.c.l.bf16 %v86
  %v220 = vunpack.c.h.bf16 %v86
  %v221 = vunpack.c.l.bf16 %v87
  %v222 = vunpack.c.h.bf16 %v87
  %v223 = vunpack.c.l.bf16 %v88
  %v224 = vunpack.c.h.bf16 %v88
  %v225 = vunpack.c.l.bf16 %v89
  %v226 = vunpack.c.h.bf16 %v89
  %v227 = vunpack.c.l.bf16 %v90
  %v228 = vunpack.c.h.bf16 %v90
  %v229 = vunpack.c.l.bf16 %v91
  %v230 = vunpack.c.h.bf16 %v91
  %v231 = vunpack.c.l.bf16 %v92
  %v232 = vunpack.c.h.bf16 %v92
  %v233 = vunpack.c.l.bf16 %v93
  %v234 = vunpack.c.h.bf16 %v93
  %v235 = vunpack.c.l.bf16 %v94
  %v236 = vunpack.c.h.bf16 %v94
  %v237 = vunpack.c.l.bf16 %v95
  %v238 = vunpack.c.h.bf16 %v95
  %v239 = vunpack.c.l.bf16 %v96
  %v240 = vunpack.c.h.bf16 %v96
  %v241 = vunpack.c.l.bf16 %v97
  %v242 = vunpack.c.h.bf16 %v97
  %v243 = vunpack.c.l.bf16 %v98
  %v244 = vunpack.c.h.bf16 %v98
  %v245 = vunpack.c.l.bf16 %v99
  %v246 = vunpack.c.h.bf16 %v99
  %v247 = vunpack.c.l.bf16 %v100
  %v248 = vunpack.c.h.bf16 %v100
  %v249 = vunpack.c.l.bf16 %v101
  %v250 = vunpack.c.h.bf16 %v101
  %v251 = vunpack.c.l.bf16 %v102
  %v252 = vunpack.c.h.bf16 %v102
  %v253 = vunpack.c.l.bf16 %v103
  %v254 = vunpack.c.h.bf16 %v103
  %v255 = vunpack.c.l.bf16 %v104
  %v256 = vunpack.c.h.bf16 %v104
  %v257 = vunpack.c.l.bf16 %v105
  %v258 = vunpack.c.h.bf16 %v105
  %v259 = vunpack.c.l.bf16 %v106
  %v260 = vunpack.c.h.bf16 %v106
  %v261 = vunpack.c.l.bf16 %v107
  %v262 = vunpack.c.h.bf16 %v107
  %v263 = vunpack.c.l.bf16 %v108
  %v264 = vunpack.c.h.bf16 %v108
  %v265 = vunpack.c.l.bf16 %v109
  %v266 = vunpack.c.h.bf16 %v109
  %v267 = vunpack.c.l.bf16 %v110
  %v268 = vunpack.c.h.bf16 %v110
  %v269 = vunpack.c.l.bf16 %v111
  %v270 = vunpack.c.h.bf16 %v111
  %v271 = vunpack.c.l.bf16 %v112
  %v272 = vunpack.c.h.bf16 %v112
  %v273 = vunpack.c.l.bf16 %v113
  %v274 = vunpack.c.h.bf16 %v113
  %v275 = vunpack.c.l.bf16 %v114
  %v276 = vunpack.c.h.bf16 %v114
  %v277 = vunpack.c.l.bf16 %v115
  %v278 = vunpack.c.h.bf16 %v115
  %v279 = vunpack.c.l.bf16 %v116
  %v280 = vunpack.c.h.bf16 %v116
  %v281 = vunpack.c.l.bf16 %v117
  %v282 = vunpack.c.h.bf16 %v117
  %v283 = vunpack.c.l.bf16 %v118
  %v284 = vunpack.c.h.bf16 %v118
  %v285 = vunpack.c.l.bf16 %v119
  %v286 = vunpack.c.h.bf16 %v119
  %v287 = vunpack.c.l.bf16 %v120
  %v288 = vunpack.c.h.bf16 %v120
  %v289 = vunpack.c.l.bf16 %v121
  %v290 = vunpack.c.h.bf16 %v121
  %v291 = vunpack.c.l.bf16 %v122
  %v292 = vunpack.c.h.bf16 %v122
  %v293 = vunpack.c.l.bf16 %v123
  %v294 = vunpack.c.h.bf16 %v123
  %v295 = vunpack.c.l.bf16 %v124
  %v296 = vunpack.c.h.bf16 %v124
  %v297 = vunpack.c.l.bf16 %v125
  %v298 = vunpack.c.h.bf16 %v125
  %v299 = vunpack.c.l.bf16 %v126
  %v300 = vunpack.c.h.bf16 %v126
  %v301 = vunpack.c.l.bf16 %v127
  %v302 = vunpack.c.h.bf16 %v127
  %v303 = vunpack.c.l.bf16 %v128
  %v304 = vunpack.c.h.bf16 %v128
  %v305 = vunpack.c.l.bf16 %v129
  %v306 = vunpack.c.h.bf16 %v129
  %v307 = vunpack.c.l.bf16 %v130
  %v308 = vunpack.c.h.bf16 %v130
  %v309 = vunpack.c.l.bf16 %v131
  %v310 = vunpack.c.h.bf16 %v131
  %v311 = vunpack.c.l.bf16 %v132
  %v312 = vunpack.c.h.bf16 %v132
  %v313 = vunpack.c.l.bf16 %v133
  %v314 = vunpack.c.h.bf16 %v133
  %v315 = vunpack.c.l.bf16 %v134
  %v316 = vunpack.c.h.bf16 %v134
  %v317 = vunpack.c.l.bf16 %v135
  %v318 = vunpack.c.h.bf16 %v135
  %v319 = vunpack.c.l.bf16 %v136
  %v320 = vunpack.c.h.bf16 %v136
  %v321 = vunpack.c.l.bf16 %v137
  %v322 = vunpack.c.h.bf16 %v137
  %v323 = vunpack.c.l.bf16 %v138
  %v324 = vunpack.c.h.bf16 %v138
  %v325 = vunpack.c.l.bf16 %v139
  %v326 = vunpack.c.h.bf16 %v139
  %v327 = vunpack.c.l.bf16 %v140
  %v328 = vunpack.c.h.bf16 %v140
  %v329 = vunpack.c.l.bf16 %v141
  %v330 = vunpack.c.h.bf16 %v141
  %v331 = vunpack.c.l.bf16 %v142
  %v332 = vunpack.c.h.bf16 %v142
  %v333 = vunpack.c.l.bf16 %v143
  %v334 = vunpack.c.h.bf16 %v143
  %v335 = vunpack.c.l.bf16 %v144
  %v336 = vunpack.c.h.bf16 %v144
  %337 = vmatprep.subr.mxu0 %v146
  %338 = vmatpush1.msra.mxu0 %v145
  %339 = vmatprep.subr.mxu0 %v152
  %340 = vmatpush1.msra.mxu0 %v151
  %341 = vmatprep.subr.mxu0 %v158
  %342 = vmatpush1.msra.mxu0 %v157
  %343 = vmatprep.subr.mxu0 %v164
  %344 = vmatpush1.msra.mxu0 %v163
  %345 = vmatprep.subr.mxu0 %v170
  %346 = vmatpush1.msra.mxu0 %v169
  %347 = vmatprep.subr.mxu0 %v176
  %348 = vmatpush1.msra.mxu0 %v175
  %349 = vmatprep.subr.mxu0 %v182
  %350 = vmatpush1.msra.mxu0 %v181
  %351 = vmatprep.subr.mxu0 %v188
  %352 = vmatpush1.msra.mxu0 %v187
  %353 = vmatprep.subr.mxu0 %v194
  %354 = vmatpush1.msra.mxu0 %v193
  %355 = vmatprep.subr.mxu0 %v200
  %356 = vmatpush1.msra.mxu0 %v199
  %357 = vmatprep.subr.mxu0 %v206
  %358 = vmatpush1.msra.mxu0 %v205
  %359 = vmatprep.subr.mxu0 %v212
  %360 = vmatpush1.msra.mxu0 %v211
  %361 = vmatprep.subr.mxu0 %v218
  %362 = vmatpush1.msra.mxu0 %v217
  %363 = vmatprep.subr.mxu0 %v224
  %364 = vmatpush1.msra.mxu0 %v223
  %365 = vmatprep.subr.mxu0 %v230
  %366 = vmatpush1.msra.mxu0 %v229
  %367 = vmatprep.subr.mxu0 %v236
  %368 = vmatpush1.msra.mxu0 %v235
  %369 = vmatprep.subr.mxu0 %v242
  %370 = vmatpush1.msra.mxu0 %v241
  %371 = vmatprep.subr.mxu0 %v248
  %372 = vmatpush1.msra.mxu0 %v247
  %373 = vmatprep.subr.mxu0 %v254
  %374 = vmatpush1.msra.mxu0 %v253
  %375 = vmatprep.subr.mxu0 %v260
  %376 = vmatpush1.msra.mxu0 %v259
  %377 = vmatprep.subr.mxu0 %v266
  %378 = vmatpush1.msra.mxu0 %v265
  %379 = vmatprep.subr.mxu0 %v272
  %380 = vmatpush1.msra.mxu0 %v271
  %381 = vmatprep.subr.mxu0 %v278
  %382 = vmatpush1.msra.mxu0 %v277
  %383 = vmatprep.subr.mxu0 %v284
  %384 = vmatpush1.msra.mxu0 %v283
  %385 = vmatprep.subr.mxu0 %v290
  %386 = vmatpush1.msra.mxu0 %v289
  %387 = vmatprep.subr.mxu0 %v296
  %388 = vmatpush1.msra.mxu0 %v295
  %389 = vmatprep.subr.mxu0 %v302
  %390 = vmatpush1.msra.mxu0 %v301
  %391 = vmatprep.subr.mxu0 %v308
  %392 = vmatpush1.msra.mxu0 %v307
  %393 = vmatprep.subr.mxu0 %v314
  %394 = vmatpush1.msra.mxu0 %v313
  %395 = vmatprep.subr.mxu0 %v320
  %396 = vmatpush1.msra.mxu0 %v319
  %397 = vmatprep.subr.mxu0 %v326
  %398 = vmatpush1.msra.mxu0 %v325
  %399 = vmatprep.subr.mxu0 %v332
  %400 = vmatpush1.msra.mxu0 %v331
  %401 = vmatprep.mubr.f32.mxu0 %v48
  %402 = vmatmul.mubr.f32.gmra.mrb[0].mxu0 %v47
  %v403 = vpop.f32.mrb[0].mxu0
  %v404 = vadd.f32 0.0, %v403
  %v405 = vpop.f32.mrb[0].mxu0
  %v406 = vadd.f32 0.0, %v405
  %407 = vdwg.mxu0
  %408 = vmatprep.subr.mxu0 %v148
  %409 = vmatpush1.msra.mxu0 %v147
  %410 = vmatprep.subr.mxu0 %v154
  %411 = vmatpush1.msra.mxu0 %v153
  %412 = vmatprep.subr.mxu0 %v160
  %413 = vmatpush1.msra.mxu0 %v159
  %414 = vmatprep.subr.mxu0 %v166
  %415 = vmatpush1.msra.mxu0 %v165
  %416 = vmatprep.subr.mxu0 %v172
  %417 = vmatpush1.msra.mxu0 %v171
  %418 = vmatprep.subr.mxu0 %v178
  %419 = vmatpush1.msra.mxu0 %v177
  %420 = vmatprep.subr.mxu0 %v184
  %421 = vmatpush1.msra.mxu0 %v183
  %422 = vmatprep.subr.mxu0 %v190
  %423 = vmatpush1.msra.mxu0 %v189
  %424 = vmatprep.subr.mxu0 %v196
  %425 = vmatpush1.msra.mxu0 %v195
  %426 = vmatprep.subr.mxu0 %v202
  %427 = vmatpush1.msra.mxu0 %v201
  %428 = vmatprep.subr.mxu0 %v208
  %429 = vmatpush1.msra.mxu0 %v207
  %430 = vmatprep.subr.mxu0 %v214
  %431 = vmatpush1.msra.mxu0 %v213
  %432 = vmatprep.subr.mxu0 %v220
  %433 = vmatpush1.msra.mxu0 %v219
  %434 = vmatprep.subr.mxu0 %v226
  %435 = vmatpush1.msra.mxu0 %v225
  %436 = vmatprep.subr.mxu0 %v232
  %437 = vmatpush1.msra.mxu0 %v231
  %438 = vmatprep.subr.mxu0 %v238
  %439 = vmatpush1.msra.mxu0 %v237
  %440 = vmatprep.subr.mxu0 %v244
  %441 = vmatpush1.msra.mxu0 %v243
  %442 = vmatprep.subr.mxu0 %v250
  %443 = vmatpush1.msra.mxu0 %v249
  %444 = vmatprep.subr.mxu0 %v256
  %445 = vmatpush1.msra.mxu0 %v255
  %446 = vmatprep.subr.mxu0 %v262
  %447 = vmatpush1.msra.mxu0 %v261
  %448 = vmatprep.subr.mxu0 %v268
  %449 = vmatpush1.msra.mxu0 %v267
  %450 = vmatprep.subr.mxu0 %v274
  %451 = vmatpush1.msra.mxu0 %v273
  %452 = vmatprep.subr.mxu0 %v280
  %453 = vmatpush1.msra.mxu0 %v279
  %454 = vmatprep.subr.mxu0 %v286
  %455 = vmatpush1.msra.mxu0 %v285
  %456 = vmatprep.subr.mxu0 %v292
  %457 = vmatpush1.msra.mxu0 %v291
  %458 = vmatprep.subr.mxu0 %v298
  %459 = vmatpush1.msra.mxu0 %v297
  %460 = vmatprep.subr.mxu0 %v304
  %461 = vmatpush1.msra.mxu0 %v303
  %462 = vmatprep.subr.mxu0 %v310
  %463 = vmatpush1.msra.mxu0 %v309
  %464 = vmatprep.subr.mxu0 %v316
  %465 = vmatpush1.msra.mxu0 %v315
  %466 = vmatprep.subr.mxu0 %v322
  %467 = vmatpush1.msra.mxu0 %v321
  %468 = vmatprep.subr.mxu0 %v328
  %469 = vmatpush1.msra.mxu0 %v327
  %470 = vmatprep.subr.mxu0 %v334
  %471 = vmatpush1.msra.mxu0 %v333
  %472 = vmatprep.mubr.f32.mxu0 %v48
  %473 = vmatmul.mubr.f32.gmra.mrb[0].mxu0 %v47
  %v474 = vpop.f32.mrb[0].mxu0
  %v475 = vadd.f32 0.0, %v474
  %v476 = vpop.f32.mrb[0].mxu0
  %v477 = vadd.f32 0.0, %v476
  %478 = vdwg.mxu0
  %479 = vmatprep.subr.mxu0 %v150
  %480 = vmatpush1.msra.mxu0 %v149
  %481 = vmatprep.subr.mxu0 %v156
  %482 = vmatpush1.msra.mxu0 %v155
  %483 = vmatprep.subr.mxu0 %v162
  %484 = vmatpush1.msra.mxu0 %v161
  %485 = vmatprep.subr.mxu0 %v168
  %486 = vmatpush1.msra.mxu0 %v167
  %487 = vmatprep.subr.mxu0 %v174
  %488 = vmatpush1.msra.mxu0 %v173
  %489 = vmatprep.subr.mxu0 %v180
  %490 = vmatpush1.msra.mxu0 %v179
  %491 = vmatprep.subr.mxu0 %v186
  %492 = vmatpush1.msra.mxu0 %v185
  %493 = vmatprep.subr.mxu0 %v192
  %494 = vmatpush1.msra.mxu0 %v191
  %495 = vmatprep.subr.mxu0 %v198
  %496 = vmatpush1.msra.mxu0 %v197
  %497 = vmatprep.subr.mxu0 %v204
  %498 = vmatpush1.msra.mxu0 %v203
  %499 = vmatprep.subr.mxu0 %v210
  %500 = vmatpush1.msra.mxu0 %v209
  %501 = vmatprep.subr.mxu0 %v216
  %502 = vmatpush1.msra.mxu0 %v215
  %503 = vmatprep.subr.mxu0 %v222
  %504 = vmatpush1.msra.mxu0 %v221
  %505 = vmatprep.subr.mxu0 %v228
  %506 = vmatpush1.msra.mxu0 %v227
  %507 = vmatprep.subr.mxu0 %v234
  %508 = vmatpush1.msra.mxu0 %v233
  %509 = vmatprep.subr.mxu0 %v240
  %510 = vmatpush1.msra.mxu0 %v239
  %511 = vmatprep.subr.mxu0 %v246
  %512 = vmatpush1.msra.mxu0 %v245
  %513 = vmatprep.subr.mxu0 %v252
  %514 = vmatpush1.msra.mxu0 %v251
  %515 = vmatprep.subr.mxu0 %v258
  %516 = vmatpush1.msra.mxu0 %v257
  %517 = vmatprep.subr.mxu0 %v264
  %518 = vmatpush1.msra.mxu0 %v263
  %519 = vmatprep.subr.mxu0 %v270
  %520 = vmatpush1.msra.mxu0 %v269
  %521 = vmatprep.subr.mxu0 %v276
  %522 = vmatpush1.msra.mxu0 %v275
  %523 = vmatprep.subr.mxu0 %v282
  %524 = vmatpush1.msra.mxu0 %v281
  %525 = vmatprep.subr.mxu0 %v288
  %526 = vmatpush1.msra.mxu0 %v287
  %527 = vmatprep.subr.mxu0 %v294
  %528 = vmatpush1.msra.mxu0 %v293
  %529 = vmatprep.subr.mxu0 %v300
  %530 = vmatpush1.msra.mxu0 %v299
  %531 = vmatprep.subr.mxu0 %v306
  %532 = vmatpush1.msra.mxu0 %v305
  %533 = vmatprep.subr.mxu0 %v312
  %534 = vmatpush1.msra.mxu0 %v311
  %535 = vmatprep.subr.mxu0 %v318
  %536 = vmatpush1.msra.mxu0 %v317
  %537 = vmatprep.subr.mxu0 %v324
  %538 = vmatpush1.msra.mxu0 %v323
  %539 = vmatprep.subr.mxu0 %v330
  %540 = vmatpush1.msra.mxu0 %v329
  %541 = vmatprep.subr.mxu0 %v336
  %542 = vmatpush1.msra.mxu0 %v335
  %543 = vmatprep.mubr.f32.mxu0 %v48
  %544 = vmatmul.mubr.f32.gmra.mrb[0].mxu0 %v47
  %v545 = vpop.f32.mrb[0].mxu0
  %v546 = vadd.f32 0.0, %v545
  %v547 = vpop.f32.mrb[0].mxu0
  %v548 = vadd.f32 0.0, %v547
  %549 = vdwg.mxu0
  %v550 = vld [vmem:[%s3] sm:$0xff]
  %v551 = vld [vmem:[%s3 + $0x8] sm:$0xff]
  %v552 = vld [vmem:[%s3 + $0x10] sm:$0xff]
  %v553 = vld [vmem:[%s3 + $0x18] sm:$0xff]
  %v554 = vld [vmem:[%s3 + $0x20] sm:$0xff]
  %v555 = vld [vmem:[%s3 + $0x28] sm:$0xff]
  %v556 = vld [vmem:[%s3 + $0x30] sm:$0xff]
  %v557 = vld [vmem:[%s3 + $0x38] sm:$0xff]
  %v558 = vld [vmem:[%s3 + $0x40] sm:$0xff]
  %v559 = vld [vmem:[%s3 + $0x48] sm:$0xff]
  %v560 = vld [vmem:[%s3 + $0x50] sm:$0xff]
  %v561 = vld [vmem:[%s3 + $0x58] sm:$0xff]
  %v562 = vld [vmem:[%s3 + $0x60] sm:$0xff]
  %v563 = vld [vmem:[%s3 + $0x68] sm:$0xff]
  %v564 = vld [vmem:[%s3 + $0x70] sm:$0xff]
  %v565 = vld [vmem:[%s3 + $0x78] sm:$0xff]
  %v566 = vld [vmem:[%s3 + $0x80] sm:$0xff]
  %v567 = vld [vmem:[%s3 + $0x88] sm:$0xff]
  %v568 = vld [vmem:[%s3 + $0x90] sm:$0xff]
  %v569 = vld [vmem:[%s3 + $0x98] sm:$0xff]
  %v570 = vld [vmem:[%s3 + $0xa0] sm:$0xff]
  %v571 = vld [vmem:[%s3 + $0xa8] sm:$0xff]
  %v572 = vld [vmem:[%s3 + $0xb0] sm:$0xff]
  %v573 = vld [vmem:[%s3 + $0xb8] sm:$0xff]
  %v574 = vld [vmem:[%s3 + $0xc0] sm:$0xff]
  %v575 = vld [vmem:[%s3 + $0xc8] sm:$0xff]
  %v576 = vld [vmem:[%s3 + $0xd0] sm:$0xff]
  %v577 = vld [vmem:[%s3 + $0xd8] sm:$0xff]
  %v578 = vld [vmem:[%s3 + $0xe0] sm:$0xff]
  %v579 = vld [vmem:[%s3 + $0xe8] sm:$0xff]
  %v580 = vld [vmem:[%s3 + $0xf0] sm:$0xff]
  %v581 = vld [vmem:[%s3 + $0xf8] sm:$0xff]
  %v582 = vld [vmem:[%s3 + $0x100] sm:$0xff]
  %v583 = vld [vmem:[%s3 + $0x108] sm:$0xff]
  %v584 = vld [vmem:[%s3 + $0x110] sm:$0xff]
  %v585 = vld [vmem:[%s3 + $0x118] sm:$0xff]
  %v586 = vld [vmem:[%s3 + $0x120] sm:$0xff]
  %v587 = vld [vmem:[%s3 + $0x128] sm:$0xff]
  %v588 = vld [vmem:[%s3 + $0x130] sm:$0xff]
  %v589 = vld [vmem:[%s3 + $0x138] sm:$0xff]
  %v590 = vld [vmem:[%s3 + $0x140] sm:$0xff]
  %v591 = vld [vmem:[%s3 + $0x148] sm:$0xff]
  %v592 = vld [vmem:[%s3 + $0x150] sm:$0xff]
  %v593 = vld [vmem:[%s3 + $0x158] sm:$0xff]
  %v594 = vld [vmem:[%s3 + $0x160] sm:$0xff]
  %v595 = vld [vmem:[%s3 + $0x168] sm:$0xff]
  %v596 = vld [vmem:[%s3 + $0x170] sm:$0xff]
  %v597 = vld [vmem:[%s3 + $0x178] sm:$0xff]
  %v598 = vld [vmem:[%s3 + $0x180] sm:$0xff]
  %v599 = vld [vmem:[%s3 + $0x188] sm:$0xff]
  %v600 = vld [vmem:[%s3 + $0x190] sm:$0xff]
  %v601 = vld [vmem:[%s3 + $0x198] sm:$0xff]
  %v602 = vld [vmem:[%s3 + $0x1a0] sm:$0xff]
  %v603 = vld [vmem:[%s3 + $0x1a8] sm:$0xff]
  %v604 = vld [vmem:[%s3 + $0x1b0] sm:$0xff]
  %v605 = vld [vmem:[%s3 + $0x1b8] sm:$0xff]
  %v606 = vld [vmem:[%s3 + $0x1c0] sm:$0xff]
  %v607 = vld [vmem:[%s3 + $0x1c8] sm:$0xff]
  %v608 = vld [vmem:[%s3 + $0x1d0] sm:$0xff]
  %v609 = vld [vmem:[%s3 + $0x1d8] sm:$0xff]
  %v610 = vld [vmem:[%s3 + $0x1e0] sm:$0xff]
  %v611 = vld [vmem:[%s3 + $0x1e8] sm:$0xff]
  %v612 = vld [vmem:[%s3 + $0x1f0] sm:$0xff]
  %v613 = vld [vmem:[%s3 + $0x1f8] sm:$0xff]
  %v614 = vld [vmem:[%s3 + $0x200] sm:$0xff]
  %v615 = vld [vmem:[%s3 + $0x208] sm:$0xff]
  %v616 = vld [vmem:[%s3 + $0x210] sm:$0xff]
  %v617 = vld [vmem:[%s3 + $0x218] sm:$0xff]
  %v618 = vld [vmem:[%s3 + $0x220] sm:$0xff]
  %v619 = vld [vmem:[%s3 + $0x228] sm:$0xff]
  %v620 = vld [vmem:[%s3 + $0x230] sm:$0xff]
  %v621 = vld [vmem:[%s3 + $0x238] sm:$0xff]
  %v622 = vld [vmem:[%s3 + $0x240] sm:$0xff]
  %v623 = vld [vmem:[%s3 + $0x248] sm:$0xff]
  %v624 = vld [vmem:[%s3 + $0x250] sm:$0xff]
  %v625 = vld [vmem:[%s3 + $0x258] sm:$0xff]
  %v626 = vld [vmem:[%s3 + $0x260] sm:$0xff]
  %v627 = vld [vmem:[%s3 + $0x268] sm:$0xff]
  %v628 = vld [vmem:[%s3 + $0x270] sm:$0xff]
  %v629 = vld [vmem:[%s3 + $0x278] sm:$0xff]
  %v630 = vld [vmem:[%s3 + $0x280] sm:$0xff]
  %v631 = vld [vmem:[%s4] sm:$0xff]
  %v632 = vld [vmem:[%s4 + $0x8] sm:$0xff]
  %v633 = vld [vmem:[%s4 + $0x10] sm:$0xff]
  %v634 = vld [vmem:[%s4 + $0x18] sm:$0xff]
  %v635 = vld [vmem:[%s4 + $0x20] sm:$0xff]
  %v636 = vld [vmem:[%s4 + $0x28] sm:$0xff]
  %v637 = vrot.slane %v404, 4
  %v638 = vadd.f32 %v404, %v637
  %v639 = vrot.slane %v638, 2
  %v640 = vadd.f32 %v638, %v639
  %v641 = vrot.slane %v640, 1
  %v642 = vadd.f32 %v640, %v641
  %v643 = vrot.slane %v406, 4
  %v644 = vadd.f32 %v406, %v643
  %v645 = vrot.slane %v644, 2
  %v646 = vadd.f32 %v644, %v645
  %v647 = vrot.slane %v646, 1
  %v648 = vadd.f32 %v646, %v647
  %v649 = vrot.slane %v475, 4
  %v650 = vadd.f32 %v475, %v649
  %v651 = vrot.slane %v650, 2
  %v652 = vadd.f32 %v650, %v651
  %v653 = vrot.slane %v652, 1
  %v654 = vadd.f32 %v652, %v653
  %v655 = vrot.slane %v477, 4
  %v656 = vadd.f32 %v477, %v655
  %v657 = vrot.slane %v656, 2
  %v658 = vadd.f32 %v656, %v657
  %v659 = vrot.slane %v658, 1
  %v660 = vadd.f32 %v658, %v659
  %v661 = vrot.slane %v546, 4
  %v662 = vadd.f32 %v546, %v661
  %v663 = vrot.slane %v662, 2
  %v664 = vadd.f32 %v662, %v663
  %v665 = vrot.slane %v664, 1
  %v666 = vadd.f32 %v664, %v665
  %vm667 = vcmask 64512
  %v668 = vsel %vm667, %v548, 0.0
  %v669 = vrot.slane %v668, 4
  %v670 = vadd.f32 %v668, %v669
  %v671 = vrot.slane %v670, 2
  %v672 = vadd.f32 %v670, %v671
  %v673 = vrot.slane %v672, 1
  %v674 = vadd.f32 %v672, %v673
  %v675 = vmul.f32 %v404, %v404
  %v676 = vmul.f32 %v406, %v406
  %v677 = vmul.f32 %v475, %v475
  %v678 = vmul.f32 %v477, %v477
  %v679 = vmul.f32 %v546, %v546
  %v680 = vmul.f32 %v548, %v548
  %v681 = vrot.slane %v675, 4
  %v682 = vadd.f32 %v675, %v681
  %v683 = vrot.slane %v682, 2
  %v684 = vadd.f32 %v682, %v683
  %v685 = vrot.slane %v684, 1
  %v686 = vadd.f32 %v684, %v685
  %v687 = vrot.slane %v676, 4
  %v688 = vadd.f32 %v676, %v687
  %v689 = vrot.slane %v688, 2
  %v690 = vadd.f32 %v688, %v689
  %v691 = vrot.slane %v690, 1
  %v692 = vadd.f32 %v690, %v691
  %v693 = vrot.slane %v677, 4
  %v694 = vadd.f32 %v677, %v693
  %v695 = vrot.slane %v694, 2
  %v696 = vadd.f32 %v694, %v695
  %v697 = vrot.slane %v696, 1
  %v698 = vadd.f32 %v696, %v697
  %v699 = vrot.slane %v678, 4
  %v700 = vadd.f32 %v678, %v699
  %v701 = vrot.slane %v700, 2
  %v702 = vadd.f32 %v700, %v701
  %v703 = vrot.slane %v702, 1
  %v704 = vadd.f32 %v702, %v703
  %v705 = vrot.slane %v679, 4
  %v706 = vadd.f32 %v679, %v705
  %v707 = vrot.slane %v706, 2
  %v708 = vadd.f32 %v706, %v707
  %v709 = vrot.slane %v708, 1
  %v710 = vadd.f32 %v708, %v709
  %v711 = vsel %vm667, %v680, 0.0
  %v712 = vrot.slane %v711, 4
  %v713 = vadd.f32 %v711, %v712
  %v714 = vrot.slane %v713, 2
  %v715 = vadd.f32 %v713, %v714
  %v716 = vrot.slane %v715, 1
  %v717 = vadd.f32 %v715, %v716
  %vm718 = vcmask 1040384
  %v719 = vsel %vm718, %v642, %v686
  %v720 = vsel %vm718, %v648, %v692
  %v721 = vsel %vm718, %v654, %v698
  %v722 = vsel %vm718, %v660, %v704
  %v723 = vsel %vm718, %v666, %v710
  %v724 = vsel %vm718, %v674, %v717
  %v726 = vsel %vm667, %v724, 0
  %728 = vmatprep.subr.mxu0 0.0
  %729 = vmatpush1.msra.mxu0 %v550
  %730 = vmatprep.subr.mxu0 0.0
  %731 = vmatpush1.msra.mxu0 %v551
  %732 = vmatprep.subr.mxu0 0.0
  %733 = vmatpush1.msra.mxu0 %v552
  %734 = vmatprep.subr.mxu0 0.0
  %735 = vmatpush1.msra.mxu0 %v553
  %736 = vmatprep.subr.mxu0 0.0
  %737 = vmatpush1.msra.mxu0 %v554
  %738 = vmatprep.subr.mxu0 0.0
  %739 = vmatpush1.msra.mxu0 %v555
  %740 = vmatprep.subr.mxu0 0.0
  %741 = vmatpush1.msra.mxu0 %v556
  %742 = vmatprep.subr.mxu0 0.0
  %743 = vmatpush1.msra.mxu0 %v557
  %744 = vmatprep.subr.mxu0 0.0
  %745 = vmatpush1.msra.mxu0 %v558
  %746 = vmatprep.subr.mxu0 0.0
  %747 = vmatpush1.msra.mxu0 %v559
  %748 = vmatprep.subr.mxu0 0.0
  %749 = vmatpush1.msra.mxu0 %v560
  %750 = vmatprep.subr.mxu0 0.0
  %751 = vmatpush1.msra.mxu0 %v561
  %752 = vmatprep.subr.mxu0 0.0
  %753 = vmatpush1.msra.mxu0 %v562
  %754 = vmatprep.subr.mxu0 0.0
  %755 = vmatpush1.msra.mxu0 %v563
  %756 = vmatprep.subr.mxu0 0.0
  %757 = vmatpush1.msra.mxu0 %v564
  %758 = vmatprep.subr.mxu0 0.0
  %759 = vmatpush1.msra.mxu0 %v565
  %760 = vmatprep.subr.mxu0 0.0
  %761 = vmatpush1.msra.mxu0 %v566
  %762 = vmatprep.subr.mxu0 0.0
  %763 = vmatpush1.msra.mxu0 %v567
  %764 = vmatprep.subr.mxu0 0.0
  %765 = vmatpush1.msra.mxu0 %v568
  %766 = vmatprep.subr.mxu0 0.0
  %767 = vmatpush1.msra.mxu0 %v569
  %768 = vmatprep.subr.mxu0 0.0
  %769 = vmatpush1.msra.mxu0 %v570
  %770 = vmatprep.subr.mxu0 0.0
  %771 = vmatpush1.msra.mxu0 %v571
  %772 = vmatprep.subr.mxu0 0.0
  %773 = vmatpush1.msra.mxu0 %v572
  %774 = vmatprep.subr.mxu0 0.0
  %775 = vmatpush1.msra.mxu0 %v573
  %776 = vmatprep.subr.mxu0 0.0
  %777 = vmatpush1.msra.mxu0 %v574
  %778 = vmatprep.subr.mxu0 0.0
  %779 = vmatpush1.msra.mxu0 %v575
  %780 = vmatprep.subr.mxu0 0.0
  %781 = vmatpush1.msra.mxu0 %v576
  %782 = vmatprep.subr.mxu0 0.0
  %783 = vmatpush1.msra.mxu0 %v577
  %784 = vmatprep.subr.mxu0 0.0
  %785 = vmatpush1.msra.mxu0 %v578
  %786 = vmatprep.subr.mxu0 0.0
  %787 = vmatpush1.msra.mxu0 %v579
  %788 = vmatprep.subr.mxu0 0.0
  %789 = vmatpush1.msra.mxu0 %v580
  %790 = vmatprep.subr.mxu0 0.0
  %791 = vmatpush1.msra.mxu0 %v581
  %792 = vmatprep.mubr.f32.mxu0 %v720
  %793 = vmatmul.mubr.f32.gmra.mrb[0].mxu0 %v719
  %v794 = vpop.f32.mrb[0].mxu0
  %v795 = vadd.f32 0.0, %v794
  %v796 = vpop.f32.mrb[0].mxu0
  %797 = vdwg.mxu0
  %798 = vmatprep.subr.mxu0 0.0
  %799 = vmatpush1.msra.mxu0 %v582
  %800 = vmatprep.subr.mxu0 0.0
  %801 = vmatpush1.msra.mxu0 %v583
  %802 = vmatprep.subr.mxu0 0.0
  %803 = vmatpush1.msra.mxu0 %v584
  %804 = vmatprep.subr.mxu0 0.0
  %805 = vmatpush1.msra.mxu0 %v585
  %806 = vmatprep.subr.mxu0 0.0
  %807 = vmatpush1.msra.mxu0 %v586
  %808 = vmatprep.subr.mxu0 0.0
  %809 = vmatpush1.msra.mxu0 %v587
  %810 = vmatprep.subr.mxu0 0.0
  %811 = vmatpush1.msra.mxu0 %v588
  %812 = vmatprep.subr.mxu0 0.0
  %813 = vmatpush1.msra.mxu0 %v589
  %814 = vmatprep.subr.mxu0 0.0
  %815 = vmatpush1.msra.mxu0 %v590
  %816 = vmatprep.subr.mxu0 0.0
  %817 = vmatpush1.msra.mxu0 %v591
  %818 = vmatprep.subr.mxu0 0.0
  %819 = vmatpush1.msra.mxu0 %v592
  %820 = vmatprep.subr.mxu0 0.0
  %821 = vmatpush1.msra.mxu0 %v593
  %822 = vmatprep.subr.mxu0 0.0
  %823 = vmatpush1.msra.mxu0 %v594
  %824 = vmatprep.subr.mxu0 0.0
  %825 = vmatpush1.msra.mxu0 %v595
  %826 = vmatprep.subr.mxu0 0.0
  %827 = vmatpush1.msra.mxu0 %v596
  %828 = vmatprep.subr.mxu0 0.0
  %829 = vmatpush1.msra.mxu0 %v597
  %830 = vmatprep.subr.mxu0 0.0
  %831 = vmatpush1.msra.mxu0 %v598
  %832 = vmatprep.subr.mxu0 0.0
  %833 = vmatpush1.msra.mxu0 %v599
  %834 = vmatprep.subr.mxu0 0.0
  %835 = vmatpush1.msra.mxu0 %v600
  %836 = vmatprep.subr.mxu0 0.0
  %837 = vmatpush1.msra.mxu0 %v601
  %838 = vmatprep.subr.mxu0 0.0
  %839 = vmatpush1.msra.mxu0 %v602
  %840 = vmatprep.subr.mxu0 0.0
  %841 = vmatpush1.msra.mxu0 %v603
  %842 = vmatprep.subr.mxu0 0.0
  %843 = vmatpush1.msra.mxu0 %v604
  %844 = vmatprep.subr.mxu0 0.0
  %845 = vmatpush1.msra.mxu0 %v605
  %846 = vmatprep.subr.mxu0 0.0
  %847 = vmatpush1.msra.mxu0 %v606
  %848 = vmatprep.subr.mxu0 0.0
  %849 = vmatpush1.msra.mxu0 %v607
  %850 = vmatprep.subr.mxu0 0.0
  %851 = vmatpush1.msra.mxu0 %v608
  %852 = vmatprep.subr.mxu0 0.0
  %853 = vmatpush1.msra.mxu0 %v609
  %854 = vmatprep.subr.mxu0 0.0
  %855 = vmatpush1.msra.mxu0 %v610
  %856 = vmatprep.subr.mxu0 0.0
  %857 = vmatpush1.msra.mxu0 %v611
  %858 = vmatprep.subr.mxu0 0.0
  %859 = vmatpush1.msra.mxu0 %v612
  %860 = vmatprep.subr.mxu0 0.0
  %861 = vmatpush1.msra.mxu0 %v613
  %862 = vmatprep.mubr.f32.mxu0 %v722
  %863 = vmatmul.mubr.f32.gmra.mrb[0].mxu0 %v721
  %v864 = vpop.f32.mrb[0].mxu0
  %v865 = vadd.f32 %v795, %v864
  %v866 = vpop.f32.mrb[0].mxu0
  %867 = vdwg.mxu0
  %868 = vmatprep.subr.mxu0 0.0
  %869 = vmatpush1.msra.mxu0 %v614
  %870 = vmatprep.subr.mxu0 0.0
  %871 = vmatpush1.msra.mxu0 %v615
  %872 = vmatprep.subr.mxu0 0.0
  %873 = vmatpush1.msra.mxu0 %v616
  %874 = vmatprep.subr.mxu0 0.0
  %875 = vmatpush1.msra.mxu0 %v617
  %876 = vmatprep.subr.mxu0 0.0
  %877 = vmatpush1.msra.mxu0 %v618
  %878 = vmatprep.subr.mxu0 0.0
  %879 = vmatpush1.msra.mxu0 %v619
  %880 = vmatprep.subr.mxu0 0.0
  %881 = vmatpush1.msra.mxu0 %v620
  %882 = vmatprep.subr.mxu0 0.0
  %883 = vmatpush1.msra.mxu0 %v621
  %884 = vmatprep.subr.mxu0 0.0
  %885 = vmatpush1.msra.mxu0 %v622
  %886 = vmatprep.subr.mxu0 0.0
  %887 = vmatpush1.msra.mxu0 %v623
  %888 = vmatprep.subr.mxu0 0.0
  %889 = vmatpush1.msra.mxu0 %v624
  %890 = vmatprep.subr.mxu0 0.0
  %891 = vmatpush1.msra.mxu0 %v625
  %892 = vmatprep.subr.mxu0 0.0
  %893 = vmatpush1.msra.mxu0 %v626
  %894 = vmatprep.subr.mxu0 0.0
  %895 = vmatpush1.msra.mxu0 %v627
  %896 = vmatprep.subr.mxu0 0.0
  %897 = vmatpush1.msra.mxu0 %v628
  %898 = vmatprep.subr.mxu0 0.0
  %899 = vmatpush1.msra.mxu0 %v629
  %900 = vmatprep.subr.mxu0 0.0
  %901 = vmatpush1.msra.mxu0 %v630
  %902 = vmatprep.subr.mxu0 0.0
  %903 = vmatpush1.msra.mxu0 0.0
  %904 = vmatprep.subr.mxu0 0.0
  %905 = vmatpush1.msra.mxu0 0.0
  %906 = vmatprep.subr.mxu0 0.0
  %907 = vmatpush1.msra.mxu0 0.0
  %908 = vmatprep.subr.mxu0 0.0
  %909 = vmatpush1.msra.mxu0 0.0
  %910 = vmatprep.subr.mxu0 0.0
  %911 = vmatpush1.msra.mxu0 0.0
  %912 = vmatprep.subr.mxu0 0.0
  %913 = vmatpush1.msra.mxu0 0.0
  %914 = vmatprep.subr.mxu0 0.0
  %915 = vmatpush1.msra.mxu0 0.0
  %916 = vmatprep.subr.mxu0 0.0
  %917 = vmatpush1.msra.mxu0 0.0
  %918 = vmatprep.subr.mxu0 0.0
  %919 = vmatpush1.msra.mxu0 0.0
  %920 = vmatprep.subr.mxu0 0.0
  %921 = vmatpush1.msra.mxu0 0.0
  %922 = vmatprep.subr.mxu0 0.0
  %923 = vmatpush1.msra.mxu0 0.0
  %924 = vmatprep.subr.mxu0 0.0
  %925 = vmatpush1.msra.mxu0 0.0
  %926 = vmatprep.subr.mxu0 0.0
  %927 = vmatpush1.msra.mxu0 0.0
  %928 = vmatprep.subr.mxu0 0.0
  %929 = vmatpush1.msra.mxu0 0.0
  %930 = vmatprep.subr.mxu0 0.0
  %931 = vmatpush1.msra.mxu0 0.0
  %932 = vmatprep.mubr.f32.mxu0 %v726
  %933 = vmatmul.mubr.f32.gmra.mrb[0].mxu0 %v723
  %v934 = vpop.f32.mrb[0].mxu0
  %v935 = vadd.f32 %v865, %v934
  %v936 = vpop.f32.mrb[0].mxu0
  %937 = vdwg.mxu0
  %v938 = vrcp.pop 162.0
  %v939 = vmul.f32 %v935, %v938
  %v940 = vmul.f32 %v939, %v939
  %v942 = vrot.slane %v940, 7
  %v944 = vsub.f32 %v939, %v942
  %v945 = vmax.f32 %v944, 0.0
  %v946 = vadd.f32 %v945, 1e-05
  %v947 = vrsqrt.pop %v946
  %v949 = vrot.slane %v947, 1
  %v951 = vmul.f32 %v43, %v949
  %v952 = vmul.f32 %v939, %v951
  %v954 = vrot.slane %v952, 7
  %v956 = vsub.f32 %v43, %v954
  %v957 = vsel %vm718, %v951, %v956
  %v959 = vsel %vm667, %v957, 0
  %961 = vmatprep.subr.mxu0 %v632
  %962 = vmatpush1.msra.mxu0 %v631
  %963 = vmatprep.subr.mxu0 0.0
  %964 = vmatpush1.msra.mxu0 0.0
  %965 = vmatprep.subr.mxu0 0.0
  %966 = vmatpush1.msra.mxu0 0.0
  %967 = vmatprep.subr.mxu0 0.0
  %968 = vmatpush1.msra.mxu0 0.0
  %969 = vmatprep.subr.mxu0 0.0
  %970 = vmatpush1.msra.mxu0 0.0
  %971 = vmatprep.subr.mxu0 0.0
  %972 = vmatpush1.msra.mxu0 0.0
  %973 = vmatprep.subr.mxu0 0.0
  %974 = vmatpush1.msra.mxu0 0.0
  %975 = vmatprep.subr.mxu0 0.0
  %976 = vmatpush1.msra.mxu0 0.0
  %977 = vmatprep.subr.mxu0 0.0
  %978 = vmatpush1.msra.mxu0 0.0
  %979 = vmatprep.subr.mxu0 0.0
  %980 = vmatpush1.msra.mxu0 0.0
  %981 = vmatprep.subr.mxu0 0.0
  %982 = vmatpush1.msra.mxu0 0.0
  %983 = vmatprep.subr.mxu0 0.0
  %984 = vmatpush1.msra.mxu0 0.0
  %985 = vmatprep.subr.mxu0 0.0
  %986 = vmatpush1.msra.mxu0 0.0
  %987 = vmatprep.subr.mxu0 0.0
  %988 = vmatpush1.msra.mxu0 0.0
  %989 = vmatprep.subr.mxu0 0.0
  %990 = vmatpush1.msra.mxu0 0.0
  %991 = vmatprep.subr.mxu0 0.0
  %992 = vmatpush1.msra.mxu0 0.0
  %993 = vmatprep.subr.mxu0 0.0
  %994 = vmatpush1.msra.mxu0 0.0
  %995 = vmatprep.subr.mxu0 0.0
  %996 = vmatpush1.msra.mxu0 0.0
  %997 = vmatprep.subr.mxu0 0.0
  %998 = vmatpush1.msra.mxu0 0.0
  %999 = vmatprep.subr.mxu0 0.0
  %1000 = vmatpush1.msra.mxu0 0.0
  %1001 = vmatprep.subr.mxu0 0.0
  %1002 = vmatpush1.msra.mxu0 0.0
  %1003 = vmatprep.subr.mxu0 0.0
  %1004 = vmatpush1.msra.mxu0 0.0
  %1005 = vmatprep.subr.mxu0 0.0
  %1006 = vmatpush1.msra.mxu0 0.0
  %1007 = vmatprep.subr.mxu0 0.0
  %1008 = vmatpush1.msra.mxu0 0.0
  %1009 = vmatprep.subr.mxu0 0.0
  %1010 = vmatpush1.msra.mxu0 0.0
  %1011 = vmatprep.subr.mxu0 0.0
  %1012 = vmatpush1.msra.mxu0 0.0
  %1013 = vmatprep.subr.mxu0 0.0
  %1014 = vmatpush1.msra.mxu0 0.0
  %1015 = vmatprep.subr.mxu0 0.0
  %1016 = vmatpush1.msra.mxu0 0.0
  %1017 = vmatprep.subr.mxu0 0.0
  %1018 = vmatpush1.msra.mxu0 0.0
  %1019 = vmatprep.subr.mxu0 0.0
  %1020 = vmatpush1.msra.mxu0 0.0
  %1021 = vmatprep.subr.mxu0 0.0
  %1022 = vmatpush1.msra.mxu0 0.0
  %1023 = vmatprep.subr.mxu0 0.0
  %1024 = vmatpush1.msra.mxu0 0.0
  %1025 = vmatprep.mubr.f32.mxu0 0.0
  %1026 = vmatmul.mubr.f32.gmra.mrb[0].mxu0 %v959
  %v1027 = vpop.f32.mrb[0].mxu0
  %v1028 = vadd.f32 0.0, %v1027
  %v1029 = vpop.f32.mrb[0].mxu0
  %v1030 = vadd.f32 0.0, %v1029
  %1031 = vdwg.mxu0
  %1032 = vmatprep.subr.mxu0 %v634
  %1033 = vmatpush1.msra.mxu0 %v633
  %1034 = vmatprep.subr.mxu0 0.0
  %1035 = vmatpush1.msra.mxu0 0.0
  %1036 = vmatprep.subr.mxu0 0.0
  %1037 = vmatpush1.msra.mxu0 0.0
  %1038 = vmatprep.subr.mxu0 0.0
  %1039 = vmatpush1.msra.mxu0 0.0
  %1040 = vmatprep.subr.mxu0 0.0
  %1041 = vmatpush1.msra.mxu0 0.0
  %1042 = vmatprep.subr.mxu0 0.0
  %1043 = vmatpush1.msra.mxu0 0.0
  %1044 = vmatprep.subr.mxu0 0.0
  %1045 = vmatpush1.msra.mxu0 0.0
  %1046 = vmatprep.subr.mxu0 0.0
  %1047 = vmatpush1.msra.mxu0 0.0
  %1048 = vmatprep.subr.mxu0 0.0
  %1049 = vmatpush1.msra.mxu0 0.0
  %1050 = vmatprep.subr.mxu0 0.0
  %1051 = vmatpush1.msra.mxu0 0.0
  %1052 = vmatprep.subr.mxu0 0.0
  %1053 = vmatpush1.msra.mxu0 0.0
  %1054 = vmatprep.subr.mxu0 0.0
  %1055 = vmatpush1.msra.mxu0 0.0
  %1056 = vmatprep.subr.mxu0 0.0
  %1057 = vmatpush1.msra.mxu0 0.0
  %1058 = vmatprep.subr.mxu0 0.0
  %1059 = vmatpush1.msra.mxu0 0.0
  %1060 = vmatprep.subr.mxu0 0.0
  %1061 = vmatpush1.msra.mxu0 0.0
  %1062 = vmatprep.subr.mxu0 0.0
  %1063 = vmatpush1.msra.mxu0 0.0
  %1064 = vmatprep.subr.mxu0 0.0
  %1065 = vmatpush1.msra.mxu0 0.0
  %1066 = vmatprep.subr.mxu0 0.0
  %1067 = vmatpush1.msra.mxu0 0.0
  %1068 = vmatprep.subr.mxu0 0.0
  %1069 = vmatpush1.msra.mxu0 0.0
  %1070 = vmatprep.subr.mxu0 0.0
  %1071 = vmatpush1.msra.mxu0 0.0
  %1072 = vmatprep.subr.mxu0 0.0
  %1073 = vmatpush1.msra.mxu0 0.0
  %1074 = vmatprep.subr.mxu0 0.0
  %1075 = vmatpush1.msra.mxu0 0.0
  %1076 = vmatprep.subr.mxu0 0.0
  %1077 = vmatpush1.msra.mxu0 0.0
  %1078 = vmatprep.subr.mxu0 0.0
  %1079 = vmatpush1.msra.mxu0 0.0
  %1080 = vmatprep.subr.mxu0 0.0
  %1081 = vmatpush1.msra.mxu0 0.0
  %1082 = vmatprep.subr.mxu0 0.0
  %1083 = vmatpush1.msra.mxu0 0.0
  %1084 = vmatprep.subr.mxu0 0.0
  %1085 = vmatpush1.msra.mxu0 0.0
  %1086 = vmatprep.subr.mxu0 0.0
  %1087 = vmatpush1.msra.mxu0 0.0
  %1088 = vmatprep.subr.mxu0 0.0
  %1089 = vmatpush1.msra.mxu0 0.0
  %1090 = vmatprep.subr.mxu0 0.0
  %1091 = vmatpush1.msra.mxu0 0.0
  %1092 = vmatprep.subr.mxu0 0.0
  %1093 = vmatpush1.msra.mxu0 0.0
  %1094 = vmatprep.subr.mxu0 0.0
  %1095 = vmatpush1.msra.mxu0 0.0
  %1096 = vmatprep.mubr.f32.mxu0 0.0
  %1097 = vmatmul.mubr.f32.gmra.mrb[0].mxu0 %v959
  %v1098 = vpop.f32.mrb[0].mxu0
  %v1099 = vadd.f32 0.0, %v1098
  %v1100 = vpop.f32.mrb[0].mxu0
  %v1101 = vadd.f32 0.0, %v1100
  %1102 = vdwg.mxu0
  %1103 = vmatprep.subr.mxu0 %v636
  %1104 = vmatpush1.msra.mxu0 %v635
  %1105 = vmatprep.subr.mxu0 0.0
  %1106 = vmatpush1.msra.mxu0 0.0
  %1107 = vmatprep.subr.mxu0 0.0
  %1108 = vmatpush1.msra.mxu0 0.0
  %1109 = vmatprep.subr.mxu0 0.0
  %1110 = vmatpush1.msra.mxu0 0.0
  %1111 = vmatprep.subr.mxu0 0.0
  %1112 = vmatpush1.msra.mxu0 0.0
  %1113 = vmatprep.subr.mxu0 0.0
  %1114 = vmatpush1.msra.mxu0 0.0
  %1115 = vmatprep.subr.mxu0 0.0
  %1116 = vmatpush1.msra.mxu0 0.0
  %1117 = vmatprep.subr.mxu0 0.0
  %1118 = vmatpush1.msra.mxu0 0.0
  %1119 = vmatprep.subr.mxu0 0.0
  %1120 = vmatpush1.msra.mxu0 0.0
  %1121 = vmatprep.subr.mxu0 0.0
  %1122 = vmatpush1.msra.mxu0 0.0
  %1123 = vmatprep.subr.mxu0 0.0
  %1124 = vmatpush1.msra.mxu0 0.0
  %1125 = vmatprep.subr.mxu0 0.0
  %1126 = vmatpush1.msra.mxu0 0.0
  %1127 = vmatprep.subr.mxu0 0.0
  %1128 = vmatpush1.msra.mxu0 0.0
  %1129 = vmatprep.subr.mxu0 0.0
  %1130 = vmatpush1.msra.mxu0 0.0
  %1131 = vmatprep.subr.mxu0 0.0
  %1132 = vmatpush1.msra.mxu0 0.0
  %1133 = vmatprep.subr.mxu0 0.0
  %1134 = vmatpush1.msra.mxu0 0.0
  %1135 = vmatprep.subr.mxu0 0.0
  %1136 = vmatpush1.msra.mxu0 0.0
  %1137 = vmatprep.subr.mxu0 0.0
  %1138 = vmatpush1.msra.mxu0 0.0
  %1139 = vmatprep.subr.mxu0 0.0
  %1140 = vmatpush1.msra.mxu0 0.0
  %1141 = vmatprep.subr.mxu0 0.0
  %1142 = vmatpush1.msra.mxu0 0.0
  %1143 = vmatprep.subr.mxu0 0.0
  %1144 = vmatpush1.msra.mxu0 0.0
  %1145 = vmatprep.subr.mxu0 0.0
  %1146 = vmatpush1.msra.mxu0 0.0
  %1147 = vmatprep.subr.mxu0 0.0
  %1148 = vmatpush1.msra.mxu0 0.0
  %1149 = vmatprep.subr.mxu0 0.0
  %1150 = vmatpush1.msra.mxu0 0.0
  %1151 = vmatprep.subr.mxu0 0.0
  %1152 = vmatpush1.msra.mxu0 0.0
  %1153 = vmatprep.subr.mxu0 0.0
  %1154 = vmatpush1.msra.mxu0 0.0
  %1155 = vmatprep.subr.mxu0 0.0
  %1156 = vmatpush1.msra.mxu0 0.0
  %1157 = vmatprep.subr.mxu0 0.0
  %1158 = vmatpush1.msra.mxu0 0.0
  %1159 = vmatprep.subr.mxu0 0.0
  %1160 = vmatpush1.msra.mxu0 0.0
  %1161 = vmatprep.subr.mxu0 0.0
  %1162 = vmatpush1.msra.mxu0 0.0
  %1163 = vmatprep.subr.mxu0 0.0
  %1164 = vmatpush1.msra.mxu0 0.0
  %1165 = vmatprep.subr.mxu0 0.0
  %1166 = vmatpush1.msra.mxu0 0.0
  %1167 = vmatprep.mubr.f32.mxu0 0.0
  %1168 = vmatmul.mubr.f32.gmra.mrb[0].mxu0 %v959
  %v1169 = vpop.f32.mrb[0].mxu0
  %v1170 = vadd.f32 0.0, %v1169
  %v1171 = vpop.f32.mrb[0].mxu0
  %v1172 = vadd.f32 0.0, %v1171
  %1173 = vdwg.mxu0
  %v1174 = vlaneseq
  %v1175 = vshrl.u32 %v1174, 7
  %v1176 = vsub.s32 0, %v1175
  %v1177 = vrot.slane %v1028, %v1176
  %v1178 = vlaneseq
  %v1179 = vshrl.u32 %v1178, 7
  %v1180 = vsub.s32 0, %v1179
  %v1181 = vrot.slane %v1030, %v1180
  %v1182 = vlaneseq
  %v1183 = vshrl.u32 %v1182, 7
  %v1184 = vsub.s32 0, %v1183
  %v1185 = vrot.slane %v1099, %v1184
  %v1186 = vlaneseq
  %v1187 = vshrl.u32 %v1186, 7
  %v1188 = vsub.s32 0, %v1187
  %v1189 = vrot.slane %v1101, %v1188
  %v1190 = vlaneseq
  %v1191 = vshrl.u32 %v1190, 7
  %v1192 = vsub.s32 0, %v1191
  %v1193 = vrot.slane %v1170, %v1192
  %v1194 = vlaneseq
  %v1195 = vshrl.u32 %v1194, 7
  %v1196 = vsub.s32 0, %v1195
  %v1197 = vrot.slane %v1172, %v1196
  %v1198 = vmul.f32 %v404, %v1177
  %v1199 = vmul.f32 %v406, %v1181
  %v1200 = vmul.f32 %v475, %v1185
  %v1201 = vmul.f32 %v477, %v1189
  %v1202 = vmul.f32 %v546, %v1193
  %v1203 = vmul.f32 %v548, %v1197
  %v1204 = vlaneseq
  %v1205 = vshrl.u32 %v1204, 7
  %v1206 = vsub.s32 1, %v1205
  %v1207 = vrot.slane %v1028, %v1206
  %v1208 = vlaneseq
  %v1209 = vshrl.u32 %v1208, 7
  %v1210 = vsub.s32 1, %v1209
  %v1211 = vrot.slane %v1030, %v1210
  %v1212 = vlaneseq
  %v1213 = vshrl.u32 %v1212, 7
  %v1214 = vsub.s32 1, %v1213
  %v1215 = vrot.slane %v1099, %v1214
  %v1216 = vlaneseq
  %v1217 = vshrl.u32 %v1216, 7
  %v1218 = vsub.s32 1, %v1217
  %v1219 = vrot.slane %v1101, %v1218
  %v1220 = vlaneseq
  %v1221 = vshrl.u32 %v1220, 7
  %v1222 = vsub.s32 1, %v1221
  %v1223 = vrot.slane %v1170, %v1222
  %v1224 = vlaneseq
  %v1225 = vshrl.u32 %v1224, 7
  %v1226 = vsub.s32 1, %v1225
  %v1227 = vrot.slane %v1172, %v1226
  %v1228 = vadd.f32 %v1198, %v1207
  %v1229 = vadd.f32 %v1199, %v1211
  %v1230 = vadd.f32 %v1200, %v1215
  %v1231 = vadd.f32 %v1201, %v1219
  %v1232 = vadd.f32 %v1202, %v1223
  %v1233 = vadd.f32 %v1203, %v1227
  %v1234 = vmax.f32 %v1228, 0.0
  %v1235 = vmax.f32 %v1229, 0.0
  %v1236 = vmax.f32 %v1230, 0.0
  %v1237 = vmax.f32 %v1231, 0.0
  %v1238 = vmax.f32 %v1232, 0.0
  %v1239 = vmax.f32 %v1233, 0.0
  %v1240 = vlaneseq
  %v1241 = vshrl.u32 %v1240, 7
  %vm1242 = vcmp.lt.s32.totalorder %v1241, 2
  %v1243 = vsel %vm1242, %v1234, 0.0
  %v1244 = vsel %vm1242, %v1235, 0.0
  %v1245 = vsel %vm1242, %v1236, 0.0
  %v1246 = vsel %vm1242, %v1237, 0.0
  %v1247 = vsel %vm1242, %v1238, 0.0
  %v1248 = vsel %vm1242, %v1239, 0.0
  %v1249 = vld [vmem:[%s2] sm:$0xff]
  %v1250 = vld [vmem:[%s2 + $0x8] sm:$0xff]
  %v1251 = vld [vmem:[%s2 + $0x10] sm:$0xff]
  %v1252 = vld [vmem:[%s2 + $0x18] sm:$0xff]
  %v1253 = vld [vmem:[%s2 + $0x20] sm:$0xff]
  %v1254 = vld [vmem:[%s2 + $0x28] sm:$0xff]
  %v1255 = vld [vmem:[%s2 + $0x30] sm:$0xff]
  %v1256 = vld [vmem:[%s2 + $0x38] sm:$0xff]
  %v1257 = vld [vmem:[%s2 + $0x40] sm:$0xff]
  %v1258 = vld [vmem:[%s2 + $0x48] sm:$0xff]
  %v1259 = vld [vmem:[%s2 + $0x50] sm:$0xff]
  %v1260 = vld [vmem:[%s2 + $0x58] sm:$0xff]
  %v1261 = vld [vmem:[%s2 + $0x60] sm:$0xff]
  %v1262 = vld [vmem:[%s2 + $0x68] sm:$0xff]
  %v1263 = vld [vmem:[%s2 + $0x70] sm:$0xff]
  %v1264 = vld [vmem:[%s2 + $0x78] sm:$0xff]
  %v1265 = vld [vmem:[%s2 + $0x80] sm:$0xff]
  %v1266 = vld [vmem:[%s2 + $0x88] sm:$0xff]
  %v1267 = vld [vmem:[%s2 + $0x90] sm:$0xff]
  %v1268 = vld [vmem:[%s2 + $0x98] sm:$0xff]
  %v1269 = vld [vmem:[%s2 + $0xa0] sm:$0xff]
  %v1270 = vld [vmem:[%s2 + $0xa8] sm:$0xff]
  %v1271 = vld [vmem:[%s2 + $0xb0] sm:$0xff]
  %v1272 = vld [vmem:[%s2 + $0xb8] sm:$0xff]
  %v1273 = vld [vmem:[%s2 + $0xc0] sm:$0xff]
  %v1274 = vld [vmem:[%s2 + $0xc8] sm:$0xff]
  %v1275 = vld [vmem:[%s2 + $0xd0] sm:$0xff]
  %v1276 = vld [vmem:[%s2 + $0xd8] sm:$0xff]
  %v1277 = vld [vmem:[%s2 + $0xe0] sm:$0xff]
  %v1278 = vld [vmem:[%s2 + $0xe8] sm:$0xff]
  %v1279 = vld [vmem:[%s2 + $0xf0] sm:$0xff]
  %v1280 = vld [vmem:[%s2 + $0xf8] sm:$0xff]
  %v1281 = vld [vmem:[%s2 + $0x100] sm:$0xff]
  %v1282 = vld [vmem:[%s2 + $0x108] sm:$0xff]
  %v1283 = vld [vmem:[%s2 + $0x110] sm:$0xff]
  %v1284 = vld [vmem:[%s2 + $0x118] sm:$0xff]
  %v1285 = vld [vmem:[%s2 + $0x120] sm:$0xff]
  %v1286 = vld [vmem:[%s2 + $0x128] sm:$0xff]
  %v1287 = vld [vmem:[%s2 + $0x130] sm:$0xff]
  %v1288 = vld [vmem:[%s2 + $0x138] sm:$0xff]
  %v1289 = vld [vmem:[%s2 + $0x140] sm:$0xff]
  %v1290 = vld [vmem:[%s2 + $0x148] sm:$0xff]
  %v1291 = vld [vmem:[%s2 + $0x150] sm:$0xff]
  %v1292 = vld [vmem:[%s2 + $0x158] sm:$0xff]
  %v1293 = vld [vmem:[%s2 + $0x160] sm:$0xff]
  %v1294 = vld [vmem:[%s2 + $0x168] sm:$0xff]
  %v1295 = vld [vmem:[%s2 + $0x170] sm:$0xff]
  %v1296 = vld [vmem:[%s2 + $0x178] sm:$0xff]
  %v1297 = vld [vmem:[%s2 + $0x180] sm:$0xff]
  %v1298 = vld [vmem:[%s2 + $0x188] sm:$0xff]
  %v1299 = vld [vmem:[%s2 + $0x190] sm:$0xff]
  %v1300 = vld [vmem:[%s2 + $0x198] sm:$0xff]
  %v1301 = vld [vmem:[%s2 + $0x1a0] sm:$0xff]
  %v1302 = vld [vmem:[%s2 + $0x1a8] sm:$0xff]
  %v1303 = vld [vmem:[%s2 + $0x1b0] sm:$0xff]
  %v1304 = vld [vmem:[%s2 + $0x1b8] sm:$0xff]
  %v1305 = vld [vmem:[%s2 + $0x1c0] sm:$0xff]
  %v1306 = vld [vmem:[%s2 + $0x1c8] sm:$0xff]
  %v1307 = vld [vmem:[%s2 + $0x1d0] sm:$0xff]
  %v1308 = vld [vmem:[%s2 + $0x1d8] sm:$0xff]
  %v1309 = vld [vmem:[%s2 + $0x1e0] sm:$0xff]
  %v1310 = vld [vmem:[%s2 + $0x1e8] sm:$0xff]
  %v1311 = vld [vmem:[%s2 + $0x1f0] sm:$0xff]
  %v1312 = vld [vmem:[%s2 + $0x1f8] sm:$0xff]
  %v1313 = vld [vmem:[%s2 + $0x200] sm:$0xff]
  %v1314 = vld [vmem:[%s2 + $0x208] sm:$0xff]
  %v1315 = vld [vmem:[%s2 + $0x210] sm:$0xff]
  %v1316 = vld [vmem:[%s2 + $0x218] sm:$0xff]
  %v1317 = vld [vmem:[%s2 + $0x220] sm:$0xff]
  %v1318 = vld [vmem:[%s2 + $0x228] sm:$0xff]
  %v1319 = vld [vmem:[%s2 + $0x230] sm:$0xff]
  %v1320 = vld [vmem:[%s2 + $0x238] sm:$0xff]
  %v1321 = vld [vmem:[%s2 + $0x240] sm:$0xff]
  %v1322 = vld [vmem:[%s2 + $0x248] sm:$0xff]
  %v1323 = vld [vmem:[%s2 + $0x250] sm:$0xff]
  %v1324 = vld [vmem:[%s2 + $0x258] sm:$0xff]
  %v1325 = vld [vmem:[%s2 + $0x260] sm:$0xff]
  %v1326 = vld [vmem:[%s2 + $0x268] sm:$0xff]
  %v1327 = vld [vmem:[%s2 + $0x270] sm:$0xff]
  %v1328 = vld [vmem:[%s2 + $0x278] sm:$0xff]
  %v1329 = vld [vmem:[%s2 + $0x280] sm:$0xff]
  %v1330 = vunpack.c.l.bf16 %v1249
  %v1331 = vunpack.c.h.bf16 %v1249
  %v1332 = vunpack.c.l.bf16 %v1250
  %v1333 = vunpack.c.h.bf16 %v1250
  %v1334 = vunpack.c.l.bf16 %v1251
  %v1335 = vunpack.c.h.bf16 %v1251
  %v1336 = vunpack.c.l.bf16 %v1252
  %v1337 = vunpack.c.h.bf16 %v1252
  %v1338 = vunpack.c.l.bf16 %v1253
  %v1339 = vunpack.c.h.bf16 %v1253
  %v1340 = vunpack.c.l.bf16 %v1254
  %v1341 = vunpack.c.h.bf16 %v1254
  %v1342 = vunpack.c.l.bf16 %v1255
  %v1343 = vunpack.c.h.bf16 %v1255
  %v1344 = vunpack.c.l.bf16 %v1256
  %v1345 = vunpack.c.h.bf16 %v1256
  %v1346 = vunpack.c.l.bf16 %v1257
  %v1347 = vunpack.c.h.bf16 %v1257
  %v1348 = vunpack.c.l.bf16 %v1258
  %v1349 = vunpack.c.h.bf16 %v1258
  %v1350 = vunpack.c.l.bf16 %v1259
  %v1351 = vunpack.c.h.bf16 %v1259
  %v1352 = vunpack.c.l.bf16 %v1260
  %v1353 = vunpack.c.h.bf16 %v1260
  %v1354 = vunpack.c.l.bf16 %v1261
  %v1355 = vunpack.c.h.bf16 %v1261
  %v1356 = vunpack.c.l.bf16 %v1262
  %v1357 = vunpack.c.h.bf16 %v1262
  %v1358 = vunpack.c.l.bf16 %v1263
  %v1359 = vunpack.c.h.bf16 %v1263
  %v1360 = vunpack.c.l.bf16 %v1264
  %v1361 = vunpack.c.h.bf16 %v1264
  %v1362 = vunpack.c.l.bf16 %v1265
  %v1363 = vunpack.c.h.bf16 %v1265
  %v1364 = vunpack.c.l.bf16 %v1266
  %v1365 = vunpack.c.h.bf16 %v1266
  %v1366 = vunpack.c.l.bf16 %v1267
  %v1367 = vunpack.c.h.bf16 %v1267
  %v1368 = vunpack.c.l.bf16 %v1268
  %v1369 = vunpack.c.h.bf16 %v1268
  %v1370 = vunpack.c.l.bf16 %v1269
  %v1371 = vunpack.c.h.bf16 %v1269
  %v1372 = vunpack.c.l.bf16 %v1270
  %v1373 = vunpack.c.h.bf16 %v1270
  %v1374 = vunpack.c.l.bf16 %v1271
  %v1375 = vunpack.c.h.bf16 %v1271
  %v1376 = vunpack.c.l.bf16 %v1272
  %v1377 = vunpack.c.h.bf16 %v1272
  %v1378 = vunpack.c.l.bf16 %v1273
  %v1379 = vunpack.c.h.bf16 %v1273
  %v1380 = vunpack.c.l.bf16 %v1274
  %v1381 = vunpack.c.h.bf16 %v1274
  %v1382 = vunpack.c.l.bf16 %v1275
  %v1383 = vunpack.c.h.bf16 %v1275
  %v1384 = vunpack.c.l.bf16 %v1276
  %v1385 = vunpack.c.h.bf16 %v1276
  %v1386 = vunpack.c.l.bf16 %v1277
  %v1387 = vunpack.c.h.bf16 %v1277
  %v1388 = vunpack.c.l.bf16 %v1278
  %v1389 = vunpack.c.h.bf16 %v1278
  %v1390 = vunpack.c.l.bf16 %v1279
  %v1391 = vunpack.c.h.bf16 %v1279
  %v1392 = vunpack.c.l.bf16 %v1280
  %v1393 = vunpack.c.h.bf16 %v1280
  %v1394 = vunpack.c.l.bf16 %v1281
  %v1395 = vunpack.c.h.bf16 %v1281
  %v1396 = vunpack.c.l.bf16 %v1282
  %v1397 = vunpack.c.h.bf16 %v1282
  %v1398 = vunpack.c.l.bf16 %v1283
  %v1399 = vunpack.c.h.bf16 %v1283
  %v1400 = vunpack.c.l.bf16 %v1284
  %v1401 = vunpack.c.h.bf16 %v1284
  %v1402 = vunpack.c.l.bf16 %v1285
  %v1403 = vunpack.c.h.bf16 %v1285
  %v1404 = vunpack.c.l.bf16 %v1286
  %v1405 = vunpack.c.h.bf16 %v1286
  %v1406 = vunpack.c.l.bf16 %v1287
  %v1407 = vunpack.c.h.bf16 %v1287
  %v1408 = vunpack.c.l.bf16 %v1288
  %v1409 = vunpack.c.h.bf16 %v1288
  %v1410 = vunpack.c.l.bf16 %v1289
  %v1411 = vunpack.c.h.bf16 %v1289
  %v1412 = vunpack.c.l.bf16 %v1290
  %v1413 = vunpack.c.h.bf16 %v1290
  %v1414 = vunpack.c.l.bf16 %v1291
  %v1415 = vunpack.c.h.bf16 %v1291
  %v1416 = vunpack.c.l.bf16 %v1292
  %v1417 = vunpack.c.h.bf16 %v1292
  %v1418 = vunpack.c.l.bf16 %v1293
  %v1419 = vunpack.c.h.bf16 %v1293
  %v1420 = vunpack.c.l.bf16 %v1294
  %v1421 = vunpack.c.h.bf16 %v1294
  %v1422 = vunpack.c.l.bf16 %v1295
  %v1423 = vunpack.c.h.bf16 %v1295
  %v1424 = vunpack.c.l.bf16 %v1296
  %v1425 = vunpack.c.h.bf16 %v1296
  %v1426 = vunpack.c.l.bf16 %v1297
  %v1427 = vunpack.c.h.bf16 %v1297
  %v1428 = vunpack.c.l.bf16 %v1298
  %v1429 = vunpack.c.h.bf16 %v1298
  %v1430 = vunpack.c.l.bf16 %v1299
  %v1431 = vunpack.c.h.bf16 %v1299
  %v1432 = vunpack.c.l.bf16 %v1300
  %v1433 = vunpack.c.h.bf16 %v1300
  %v1434 = vunpack.c.l.bf16 %v1301
  %v1435 = vunpack.c.h.bf16 %v1301
  %v1436 = vunpack.c.l.bf16 %v1302
  %v1437 = vunpack.c.h.bf16 %v1302
  %v1438 = vunpack.c.l.bf16 %v1303
  %v1439 = vunpack.c.h.bf16 %v1303
  %v1440 = vunpack.c.l.bf16 %v1304
  %v1441 = vunpack.c.h.bf16 %v1304
  %v1442 = vunpack.c.l.bf16 %v1305
  %v1443 = vunpack.c.h.bf16 %v1305
  %v1444 = vunpack.c.l.bf16 %v1306
  %v1445 = vunpack.c.h.bf16 %v1306
  %v1446 = vunpack.c.l.bf16 %v1307
  %v1447 = vunpack.c.h.bf16 %v1307
  %v1448 = vunpack.c.l.bf16 %v1308
  %v1449 = vunpack.c.h.bf16 %v1308
  %v1450 = vunpack.c.l.bf16 %v1309
  %v1451 = vunpack.c.h.bf16 %v1309
  %v1452 = vunpack.c.l.bf16 %v1310
  %v1453 = vunpack.c.h.bf16 %v1310
  %v1454 = vunpack.c.l.bf16 %v1311
  %v1455 = vunpack.c.h.bf16 %v1311
  %v1456 = vunpack.c.l.bf16 %v1312
  %v1457 = vunpack.c.h.bf16 %v1312
  %v1458 = vunpack.c.l.bf16 %v1313
  %v1459 = vunpack.c.h.bf16 %v1313
  %v1460 = vunpack.c.l.bf16 %v1314
  %v1461 = vunpack.c.h.bf16 %v1314
  %v1462 = vunpack.c.l.bf16 %v1315
  %v1463 = vunpack.c.h.bf16 %v1315
  %v1464 = vunpack.c.l.bf16 %v1316
  %v1465 = vunpack.c.h.bf16 %v1316
  %v1466 = vunpack.c.l.bf16 %v1317
  %v1467 = vunpack.c.h.bf16 %v1317
  %v1468 = vunpack.c.l.bf16 %v1318
  %v1469 = vunpack.c.h.bf16 %v1318
  %v1470 = vunpack.c.l.bf16 %v1319
  %v1471 = vunpack.c.h.bf16 %v1319
  %v1472 = vunpack.c.l.bf16 %v1320
  %v1473 = vunpack.c.h.bf16 %v1320
  %v1474 = vunpack.c.l.bf16 %v1321
  %v1475 = vunpack.c.h.bf16 %v1321
  %v1476 = vunpack.c.l.bf16 %v1322
  %v1477 = vunpack.c.h.bf16 %v1322
  %v1478 = vunpack.c.l.bf16 %v1323
  %v1479 = vunpack.c.h.bf16 %v1323
  %v1480 = vunpack.c.l.bf16 %v1324
  %v1481 = vunpack.c.h.bf16 %v1324
  %v1482 = vunpack.c.l.bf16 %v1325
  %v1483 = vunpack.c.h.bf16 %v1325
  %v1484 = vunpack.c.l.bf16 %v1326
  %v1485 = vunpack.c.h.bf16 %v1326
  %v1486 = vunpack.c.l.bf16 %v1327
  %v1487 = vunpack.c.h.bf16 %v1327
  %v1488 = vunpack.c.l.bf16 %v1328
  %v1489 = vunpack.c.h.bf16 %v1328
  %v1490 = vunpack.c.l.bf16 %v1329
  %v1491 = vunpack.c.h.bf16 %v1329
  %v1493 = vsel %vm667, %v1248, 0
  %1495 = vmatprep.subr.mxu0 %v1331
  %1496 = vmatpush1.msra.mxu0 %v1330
  %1497 = vmatprep.subr.mxu0 %v1333
  %1498 = vmatpush1.msra.mxu0 %v1332
  %1499 = vmatprep.subr.mxu0 %v1335
  %1500 = vmatpush1.msra.mxu0 %v1334
  %1501 = vmatprep.subr.mxu0 %v1337
  %1502 = vmatpush1.msra.mxu0 %v1336
  %1503 = vmatprep.subr.mxu0 %v1339
  %1504 = vmatpush1.msra.mxu0 %v1338
  %1505 = vmatprep.subr.mxu0 %v1341
  %1506 = vmatpush1.msra.mxu0 %v1340
  %1507 = vmatprep.subr.mxu0 %v1343
  %1508 = vmatpush1.msra.mxu0 %v1342
  %1509 = vmatprep.subr.mxu0 %v1345
  %1510 = vmatpush1.msra.mxu0 %v1344
  %1511 = vmatprep.subr.mxu0 %v1347
  %1512 = vmatpush1.msra.mxu0 %v1346
  %1513 = vmatprep.subr.mxu0 %v1349
  %1514 = vmatpush1.msra.mxu0 %v1348
  %1515 = vmatprep.subr.mxu0 %v1351
  %1516 = vmatpush1.msra.mxu0 %v1350
  %1517 = vmatprep.subr.mxu0 %v1353
  %1518 = vmatpush1.msra.mxu0 %v1352
  %1519 = vmatprep.subr.mxu0 %v1355
  %1520 = vmatpush1.msra.mxu0 %v1354
  %1521 = vmatprep.subr.mxu0 %v1357
  %1522 = vmatpush1.msra.mxu0 %v1356
  %1523 = vmatprep.subr.mxu0 %v1359
  %1524 = vmatpush1.msra.mxu0 %v1358
  %1525 = vmatprep.subr.mxu0 %v1361
  %1526 = vmatpush1.msra.mxu0 %v1360
  %1527 = vmatprep.subr.mxu0 %v1363
  %1528 = vmatpush1.msra.mxu0 %v1362
  %1529 = vmatprep.subr.mxu0 %v1365
  %1530 = vmatpush1.msra.mxu0 %v1364
  %1531 = vmatprep.subr.mxu0 %v1367
  %1532 = vmatpush1.msra.mxu0 %v1366
  %1533 = vmatprep.subr.mxu0 %v1369
  %1534 = vmatpush1.msra.mxu0 %v1368
  %1535 = vmatprep.subr.mxu0 %v1371
  %1536 = vmatpush1.msra.mxu0 %v1370
  %1537 = vmatprep.subr.mxu0 %v1373
  %1538 = vmatpush1.msra.mxu0 %v1372
  %1539 = vmatprep.subr.mxu0 %v1375
  %1540 = vmatpush1.msra.mxu0 %v1374
  %1541 = vmatprep.subr.mxu0 %v1377
  %1542 = vmatpush1.msra.mxu0 %v1376
  %1543 = vmatprep.subr.mxu0 %v1379
  %1544 = vmatpush1.msra.mxu0 %v1378
  %1545 = vmatprep.subr.mxu0 %v1381
  %1546 = vmatpush1.msra.mxu0 %v1380
  %1547 = vmatprep.subr.mxu0 %v1383
  %1548 = vmatpush1.msra.mxu0 %v1382
  %1549 = vmatprep.subr.mxu0 %v1385
  %1550 = vmatpush1.msra.mxu0 %v1384
  %1551 = vmatprep.subr.mxu0 %v1387
  %1552 = vmatpush1.msra.mxu0 %v1386
  %1553 = vmatprep.subr.mxu0 %v1389
  %1554 = vmatpush1.msra.mxu0 %v1388
  %1555 = vmatprep.subr.mxu0 %v1391
  %1556 = vmatpush1.msra.mxu0 %v1390
  %1557 = vmatprep.subr.mxu0 %v1393
  %1558 = vmatpush1.msra.mxu0 %v1392
  %1559 = vmatprep.mubr.f32.mxu0 %v1244
  %1560 = vmatmul.mubr.f32.gmra.mrb[0].mxu0 %v1243
  %v1561 = vpop.f32.mrb[0].mxu0
  %v1562 = vadd.f32 0.0, %v1561
  %v1563 = vpop.f32.mrb[0].mxu0
  %v1564 = vadd.f32 0.0, %v1563
  %1565 = vdwg.mxu0
  %1566 = vmatprep.subr.mxu0 %v1395
  %1567 = vmatpush1.msra.mxu0 %v1394
  %1568 = vmatprep.subr.mxu0 %v1397
  %1569 = vmatpush1.msra.mxu0 %v1396
  %1570 = vmatprep.subr.mxu0 %v1399
  %1571 = vmatpush1.msra.mxu0 %v1398
  %1572 = vmatprep.subr.mxu0 %v1401
  %1573 = vmatpush1.msra.mxu0 %v1400
  %1574 = vmatprep.subr.mxu0 %v1403
  %1575 = vmatpush1.msra.mxu0 %v1402
  %1576 = vmatprep.subr.mxu0 %v1405
  %1577 = vmatpush1.msra.mxu0 %v1404
  %1578 = vmatprep.subr.mxu0 %v1407
  %1579 = vmatpush1.msra.mxu0 %v1406
  %1580 = vmatprep.subr.mxu0 %v1409
  %1581 = vmatpush1.msra.mxu0 %v1408
  %1582 = vmatprep.subr.mxu0 %v1411
  %1583 = vmatpush1.msra.mxu0 %v1410
  %1584 = vmatprep.subr.mxu0 %v1413
  %1585 = vmatpush1.msra.mxu0 %v1412
  %1586 = vmatprep.subr.mxu0 %v1415
  %1587 = vmatpush1.msra.mxu0 %v1414
  %1588 = vmatprep.subr.mxu0 %v1417
  %1589 = vmatpush1.msra.mxu0 %v1416
  %1590 = vmatprep.subr.mxu0 %v1419
  %1591 = vmatpush1.msra.mxu0 %v1418
  %1592 = vmatprep.subr.mxu0 %v1421
  %1593 = vmatpush1.msra.mxu0 %v1420
  %1594 = vmatprep.subr.mxu0 %v1423
  %1595 = vmatpush1.msra.mxu0 %v1422
  %1596 = vmatprep.subr.mxu0 %v1425
  %1597 = vmatpush1.msra.mxu0 %v1424
  %1598 = vmatprep.subr.mxu0 %v1427
  %1599 = vmatpush1.msra.mxu0 %v1426
  %1600 = vmatprep.subr.mxu0 %v1429
  %1601 = vmatpush1.msra.mxu0 %v1428
  %1602 = vmatprep.subr.mxu0 %v1431
  %1603 = vmatpush1.msra.mxu0 %v1430
  %1604 = vmatprep.subr.mxu0 %v1433
  %1605 = vmatpush1.msra.mxu0 %v1432
  %1606 = vmatprep.subr.mxu0 %v1435
  %1607 = vmatpush1.msra.mxu0 %v1434
  %1608 = vmatprep.subr.mxu0 %v1437
  %1609 = vmatpush1.msra.mxu0 %v1436
  %1610 = vmatprep.subr.mxu0 %v1439
  %1611 = vmatpush1.msra.mxu0 %v1438
  %1612 = vmatprep.subr.mxu0 %v1441
  %1613 = vmatpush1.msra.mxu0 %v1440
  %1614 = vmatprep.subr.mxu0 %v1443
  %1615 = vmatpush1.msra.mxu0 %v1442
  %1616 = vmatprep.subr.mxu0 %v1445
  %1617 = vmatpush1.msra.mxu0 %v1444
  %1618 = vmatprep.subr.mxu0 %v1447
  %1619 = vmatpush1.msra.mxu0 %v1446
  %1620 = vmatprep.subr.mxu0 %v1449
  %1621 = vmatpush1.msra.mxu0 %v1448
  %1622 = vmatprep.subr.mxu0 %v1451
  %1623 = vmatpush1.msra.mxu0 %v1450
  %1624 = vmatprep.subr.mxu0 %v1453
  %1625 = vmatpush1.msra.mxu0 %v1452
  %1626 = vmatprep.subr.mxu0 %v1455
  %1627 = vmatpush1.msra.mxu0 %v1454
  %1628 = vmatprep.subr.mxu0 %v1457
  %1629 = vmatpush1.msra.mxu0 %v1456
  %1630 = vmatprep.mubr.f32.mxu0 %v1246
  %1631 = vmatmul.mubr.f32.gmra.mrb[0].mxu0 %v1245
  %v1632 = vpop.f32.mrb[0].mxu0
  %v1633 = vadd.f32 %v1562, %v1632
  %v1634 = vpop.f32.mrb[0].mxu0
  %v1635 = vadd.f32 %v1564, %v1634
  %1636 = vdwg.mxu0
  %1637 = vmatprep.subr.mxu0 %v1459
  %1638 = vmatpush1.msra.mxu0 %v1458
  %1639 = vmatprep.subr.mxu0 %v1461
  %1640 = vmatpush1.msra.mxu0 %v1460
  %1641 = vmatprep.subr.mxu0 %v1463
  %1642 = vmatpush1.msra.mxu0 %v1462
  %1643 = vmatprep.subr.mxu0 %v1465
  %1644 = vmatpush1.msra.mxu0 %v1464
  %1645 = vmatprep.subr.mxu0 %v1467
  %1646 = vmatpush1.msra.mxu0 %v1466
  %1647 = vmatprep.subr.mxu0 %v1469
  %1648 = vmatpush1.msra.mxu0 %v1468
  %1649 = vmatprep.subr.mxu0 %v1471
  %1650 = vmatpush1.msra.mxu0 %v1470
  %1651 = vmatprep.subr.mxu0 %v1473
  %1652 = vmatpush1.msra.mxu0 %v1472
  %1653 = vmatprep.subr.mxu0 %v1475
  %1654 = vmatpush1.msra.mxu0 %v1474
  %1655 = vmatprep.subr.mxu0 %v1477
  %1656 = vmatpush1.msra.mxu0 %v1476
  %1657 = vmatprep.subr.mxu0 %v1479
  %1658 = vmatpush1.msra.mxu0 %v1478
  %1659 = vmatprep.subr.mxu0 %v1481
  %1660 = vmatpush1.msra.mxu0 %v1480
  %1661 = vmatprep.subr.mxu0 %v1483
  %1662 = vmatpush1.msra.mxu0 %v1482
  %1663 = vmatprep.subr.mxu0 %v1485
  %1664 = vmatpush1.msra.mxu0 %v1484
  %1665 = vmatprep.subr.mxu0 %v1487
  %1666 = vmatpush1.msra.mxu0 %v1486
  %1667 = vmatprep.subr.mxu0 %v1489
  %1668 = vmatpush1.msra.mxu0 %v1488
  %1669 = vmatprep.subr.mxu0 %v1491
  %1670 = vmatpush1.msra.mxu0 %v1490
  %1671 = vmatprep.subr.mxu0 0.0
  %1672 = vmatpush1.msra.mxu0 0.0
  %1673 = vmatprep.subr.mxu0 0.0
  %1674 = vmatpush1.msra.mxu0 0.0
  %1675 = vmatprep.subr.mxu0 0.0
  %1676 = vmatpush1.msra.mxu0 0.0
  %1677 = vmatprep.subr.mxu0 0.0
  %1678 = vmatpush1.msra.mxu0 0.0
  %1679 = vmatprep.subr.mxu0 0.0
  %1680 = vmatpush1.msra.mxu0 0.0
  %1681 = vmatprep.subr.mxu0 0.0
  %1682 = vmatpush1.msra.mxu0 0.0
  %1683 = vmatprep.subr.mxu0 0.0
  %1684 = vmatpush1.msra.mxu0 0.0
  %1685 = vmatprep.subr.mxu0 0.0
  %1686 = vmatpush1.msra.mxu0 0.0
  %1687 = vmatprep.subr.mxu0 0.0
  %1688 = vmatpush1.msra.mxu0 0.0
  %1689 = vmatprep.subr.mxu0 0.0
  %1690 = vmatpush1.msra.mxu0 0.0
  %1691 = vmatprep.subr.mxu0 0.0
  %1692 = vmatpush1.msra.mxu0 0.0
  %1693 = vmatprep.subr.mxu0 0.0
  %1694 = vmatpush1.msra.mxu0 0.0
  %1695 = vmatprep.subr.mxu0 0.0
  %1696 = vmatpush1.msra.mxu0 0.0
  %1697 = vmatprep.subr.mxu0 0.0
  %1698 = vmatpush1.msra.mxu0 0.0
  %1699 = vmatprep.subr.mxu0 0.0
  %1700 = vmatpush1.msra.mxu0 0.0
  %1701 = vmatprep.mubr.f32.mxu0 %v1493
  %1702 = vmatmul.mubr.f32.gmra.mrb[0].mxu0 %v1247
  %v1703 = vpop.f32.mrb[0].mxu0
  %v1704 = vadd.f32 %v1633, %v1703
  %v1705 = vpop.f32.mrb[0].mxu0
  %v1706 = vadd.f32 %v1635, %v1705
  %1707 = vdwg.mxu0
  %v1708 = vld [vmem:[%s5] sm:$0xff]
  %v1709 = vld [vmem:[%s5 + $0x8] sm:$0xff]
  %v1710 = vld [vmem:[%s5 + $0x10] sm:$0xff]
  %v1711 = vld [vmem:[%s5 + $0x18] sm:$0xff]
  %v1712 = vld [vmem:[%s5 + $0x20] sm:$0xff]
  %v1713 = vld [vmem:[%s5 + $0x28] sm:$0xff]
  %v1714 = vld [vmem:[%s5 + $0x30] sm:$0xff]
  %v1715 = vld [vmem:[%s5 + $0x38] sm:$0xff]
  %v1716 = vld [vmem:[%s5 + $0x40] sm:$0xff]
  %v1717 = vld [vmem:[%s5 + $0x48] sm:$0xff]
  %v1718 = vld [vmem:[%s5 + $0x50] sm:$0xff]
  %v1719 = vld [vmem:[%s5 + $0x58] sm:$0xff]
  %v1720 = vld [vmem:[%s5 + $0x60] sm:$0xff]
  %v1721 = vld [vmem:[%s5 + $0x68] sm:$0xff]
  %v1722 = vld [vmem:[%s5 + $0x70] sm:$0xff]
  %v1723 = vld [vmem:[%s5 + $0x78] sm:$0xff]
  %v1724 = vld [vmem:[%s5 + $0x80] sm:$0xff]
  %v1725 = vld [vmem:[%s5 + $0x88] sm:$0xff]
  %v1726 = vld [vmem:[%s5 + $0x90] sm:$0xff]
  %v1727 = vld [vmem:[%s5 + $0x98] sm:$0xff]
  %v1728 = vld [vmem:[%s5 + $0xa0] sm:$0xff]
  %v1729 = vld [vmem:[%s5 + $0xa8] sm:$0xff]
  %v1730 = vld [vmem:[%s5 + $0xb0] sm:$0xff]
  %v1731 = vld [vmem:[%s5 + $0xb8] sm:$0xff]
  %v1732 = vld [vmem:[%s5 + $0xc0] sm:$0xff]
  %v1733 = vld [vmem:[%s5 + $0xc8] sm:$0xff]
  %v1734 = vld [vmem:[%s5 + $0xd0] sm:$0xff]
  %v1735 = vld [vmem:[%s5 + $0xd8] sm:$0xff]
  %v1736 = vld [vmem:[%s5 + $0xe0] sm:$0xff]
  %v1737 = vld [vmem:[%s5 + $0xe8] sm:$0xff]
  %v1738 = vld [vmem:[%s5 + $0xf0] sm:$0x1f]
  %v1739 = vld [vmem:[%s6] sm:$0x1f]
  %v1740 = vld [vmem:[%s6 + $0x8] sm:$0x1f]
  %v1741 = vrot.slane %v1704, 4
  %v1742 = vadd.f32 %v1704, %v1741
  %v1743 = vrot.slane %v1742, 2
  %v1744 = vadd.f32 %v1742, %v1743
  %v1745 = vrot.slane %v1744, 1
  %v1746 = vadd.f32 %v1744, %v1745
  %vm1747 = vcmask 957440
  %v1748 = vsel %vm1747, %v1706, 0.0
  %v1749 = vrot.slane %v1748, 4
  %v1750 = vadd.f32 %v1748, %v1749
  %v1751 = vrot.slane %v1750, 2
  %v1752 = vadd.f32 %v1750, %v1751
  %v1753 = vrot.slane %v1752, 1
  %v1754 = vadd.f32 %v1752, %v1753
  %v1755 = vmul.f32 %v1704, %v1704
  %v1756 = vmul.f32 %v1706, %v1706
  %v1757 = vrot.slane %v1755, 4
  %v1758 = vadd.f32 %v1755, %v1757
  %v1759 = vrot.slane %v1758, 2
  %v1760 = vadd.f32 %v1758, %v1759
  %v1761 = vrot.slane %v1760, 1
  %v1762 = vadd.f32 %v1760, %v1761
  %v1763 = vsel %vm1747, %v1756, 0.0
  %v1764 = vrot.slane %v1763, 4
  %v1765 = vadd.f32 %v1763, %v1764
  %v1766 = vrot.slane %v1765, 2
  %v1767 = vadd.f32 %v1765, %v1766
  %v1768 = vrot.slane %v1767, 1
  %v1769 = vadd.f32 %v1767, %v1768
  %v1770 = vsel %vm718, %v1746, %v1762
  %v1771 = vsel %vm718, %v1754, %v1769
  %v1773 = vsel %vm1747, %v1771, 0
  %vm1775 = vcmask 1044480
  %v1777 = vsel %vm1775, %v1738, 0
  %1779 = vmatprep.subr.mxu0 0.0
  %1780 = vmatpush1.msra.mxu0 %v1708
  %1781 = vmatprep.subr.mxu0 0.0
  %1782 = vmatpush1.msra.mxu0 %v1709
  %1783 = vmatprep.subr.mxu0 0.0
  %1784 = vmatpush1.msra.mxu0 %v1710
  %1785 = vmatprep.subr.mxu0 0.0
  %1786 = vmatpush1.msra.mxu0 %v1711
  %1787 = vmatprep.subr.mxu0 0.0
  %1788 = vmatpush1.msra.mxu0 %v1712
  %1789 = vmatprep.subr.mxu0 0.0
  %1790 = vmatpush1.msra.mxu0 %v1713
  %1791 = vmatprep.subr.mxu0 0.0
  %1792 = vmatpush1.msra.mxu0 %v1714
  %1793 = vmatprep.subr.mxu0 0.0
  %1794 = vmatpush1.msra.mxu0 %v1715
  %1795 = vmatprep.subr.mxu0 0.0
  %1796 = vmatpush1.msra.mxu0 %v1716
  %1797 = vmatprep.subr.mxu0 0.0
  %1798 = vmatpush1.msra.mxu0 %v1717
  %1799 = vmatprep.subr.mxu0 0.0
  %1800 = vmatpush1.msra.mxu0 %v1718
  %1801 = vmatprep.subr.mxu0 0.0
  %1802 = vmatpush1.msra.mxu0 %v1719
  %1803 = vmatprep.subr.mxu0 0.0
  %1804 = vmatpush1.msra.mxu0 %v1720
  %1805 = vmatprep.subr.mxu0 0.0
  %1806 = vmatpush1.msra.mxu0 %v1721
  %1807 = vmatprep.subr.mxu0 0.0
  %1808 = vmatpush1.msra.mxu0 %v1722
  %1809 = vmatprep.subr.mxu0 0.0
  %1810 = vmatpush1.msra.mxu0 %v1723
  %1811 = vmatprep.subr.mxu0 0.0
  %1812 = vmatpush1.msra.mxu0 %v1724
  %1813 = vmatprep.subr.mxu0 0.0
  %1814 = vmatpush1.msra.mxu0 %v1725
  %1815 = vmatprep.subr.mxu0 0.0
  %1816 = vmatpush1.msra.mxu0 %v1726
  %1817 = vmatprep.subr.mxu0 0.0
  %1818 = vmatpush1.msra.mxu0 %v1727
  %1819 = vmatprep.subr.mxu0 0.0
  %1820 = vmatpush1.msra.mxu0 %v1728
  %1821 = vmatprep.subr.mxu0 0.0
  %1822 = vmatpush1.msra.mxu0 %v1729
  %1823 = vmatprep.subr.mxu0 0.0
  %1824 = vmatpush1.msra.mxu0 %v1730
  %1825 = vmatprep.subr.mxu0 0.0
  %1826 = vmatpush1.msra.mxu0 %v1731
  %1827 = vmatprep.subr.mxu0 0.0
  %1828 = vmatpush1.msra.mxu0 %v1732
  %1829 = vmatprep.subr.mxu0 0.0
  %1830 = vmatpush1.msra.mxu0 %v1733
  %1831 = vmatprep.subr.mxu0 0.0
  %1832 = vmatpush1.msra.mxu0 %v1734
  %1833 = vmatprep.subr.mxu0 0.0
  %1834 = vmatpush1.msra.mxu0 %v1735
  %1835 = vmatprep.subr.mxu0 0.0
  %1836 = vmatpush1.msra.mxu0 %v1736
  %1837 = vmatprep.subr.mxu0 0.0
  %1838 = vmatpush1.msra.mxu0 %v1737
  %1839 = vmatprep.subr.mxu0 0.0
  %1840 = vmatpush1.msra.mxu0 %v1777
  %1841 = vmatprep.subr.mxu0 0.0
  %1842 = vmatpush1.msra.mxu0 0.0
  %1843 = vmatprep.mubr.f32.mxu0 %v1773
  %1844 = vmatmul.mubr.f32.gmra.mrb[0].mxu0 %v1770
  %v1845 = vpop.f32.mrb[0].mxu0
  %v1846 = vadd.f32 0.0, %v1845
  %v1847 = vpop.f32.mrb[0].mxu0
  %1848 = vdwg.mxu0
  %v1849 = vrcp.pop 98.0
  %v1850 = vmul.f32 %v1846, %v1849
  %v1851 = vmul.f32 %v1850, %v1850
  %v1853 = vrot.slane %v1851, 7
  %v1855 = vsub.f32 %v1850, %v1853
  %v1856 = vmax.f32 %v1855, 0.0
  %v1857 = vadd.f32 %v1856, 1e-05
  %v1858 = vrsqrt.pop %v1857
  %v1860 = vrot.slane %v1858, 1
  %v1862 = vmul.f32 %v44, %v1860
  %v1863 = vmul.f32 %v1850, %v1862
  %v1865 = vrot.slane %v1863, 7
  %v1867 = vsub.f32 %v44, %v1865
  %v1868 = vsel %vm718, %v1862, %v1867
  %vm1869 = vcmask 39936
  %v1871 = vsel %vm1869, %v1868, 0
  %v1874 = vsel %vm1775, %v1739, 0
  %v1877 = vsel %vm1775, %v1740, 0
  %1879 = vmatprep.subr.mxu0 %v1877
  %1880 = vmatpush1.msra.mxu0 %v1874
  %1881 = vmatprep.subr.mxu0 0.0
  %1882 = vmatpush1.msra.mxu0 0.0
  %1883 = vmatprep.subr.mxu0 0.0
  %1884 = vmatpush1.msra.mxu0 0.0
  %1885 = vmatprep.subr.mxu0 0.0
  %1886 = vmatpush1.msra.mxu0 0.0
  %1887 = vmatprep.subr.mxu0 0.0
  %1888 = vmatpush1.msra.mxu0 0.0
  %1889 = vmatprep.subr.mxu0 0.0
  %1890 = vmatpush1.msra.mxu0 0.0
  %1891 = vmatprep.subr.mxu0 0.0
  %1892 = vmatpush1.msra.mxu0 0.0
  %1893 = vmatprep.subr.mxu0 0.0
  %1894 = vmatpush1.msra.mxu0 0.0
  %1895 = vmatprep.subr.mxu0 0.0
  %1896 = vmatpush1.msra.mxu0 0.0
  %1897 = vmatprep.subr.mxu0 0.0
  %1898 = vmatpush1.msra.mxu0 0.0
  %1899 = vmatprep.subr.mxu0 0.0
  %1900 = vmatpush1.msra.mxu0 0.0
  %1901 = vmatprep.subr.mxu0 0.0
  %1902 = vmatpush1.msra.mxu0 0.0
  %1903 = vmatprep.subr.mxu0 0.0
  %1904 = vmatpush1.msra.mxu0 0.0
  %1905 = vmatprep.subr.mxu0 0.0
  %1906 = vmatpush1.msra.mxu0 0.0
  %1907 = vmatprep.subr.mxu0 0.0
  %1908 = vmatpush1.msra.mxu0 0.0
  %1909 = vmatprep.subr.mxu0 0.0
  %1910 = vmatpush1.msra.mxu0 0.0
  %1911 = vmatprep.subr.mxu0 0.0
  %1912 = vmatpush1.msra.mxu0 0.0
  %1913 = vmatprep.subr.mxu0 0.0
  %1914 = vmatpush1.msra.mxu0 0.0
  %1915 = vmatprep.subr.mxu0 0.0
  %1916 = vmatpush1.msra.mxu0 0.0
  %1917 = vmatprep.subr.mxu0 0.0
  %1918 = vmatpush1.msra.mxu0 0.0
  %1919 = vmatprep.subr.mxu0 0.0
  %1920 = vmatpush1.msra.mxu0 0.0
  %1921 = vmatprep.subr.mxu0 0.0
  %1922 = vmatpush1.msra.mxu0 0.0
  %1923 = vmatprep.subr.mxu0 0.0
  %1924 = vmatpush1.msra.mxu0 0.0
  %1925 = vmatprep.subr.mxu0 0.0
  %1926 = vmatpush1.msra.mxu0 0.0
  %1927 = vmatprep.subr.mxu0 0.0
  %1928 = vmatpush1.msra.mxu0 0.0
  %1929 = vmatprep.subr.mxu0 0.0
  %1930 = vmatpush1.msra.mxu0 0.0
  %1931 = vmatprep.subr.mxu0 0.0
  %1932 = vmatpush1.msra.mxu0 0.0
  %1933 = vmatprep.subr.mxu0 0.0
  %1934 = vmatpush1.msra.mxu0 0.0
  %1935 = vmatprep.subr.mxu0 0.0
  %1936 = vmatpush1.msra.mxu0 0.0
  %1937 = vmatprep.subr.mxu0 0.0
  %1938 = vmatpush1.msra.mxu0 0.0
  %1939 = vmatprep.subr.mxu0 0.0
  %1940 = vmatpush1.msra.mxu0 0.0
  %1941 = vmatprep.subr.mxu0 0.0
  %1942 = vmatpush1.msra.mxu0 0.0
  %1943 = vmatprep.mubr.f32.mxu0 0.0
  %1944 = vmatmul.mubr.f32.gmra.mrb[0].mxu0 %v1871
  %v1945 = vpop.f32.mrb[0].mxu0
  %v1946 = vadd.f32 0.0, %v1945
  %v1947 = vpop.f32.mrb[0].mxu0
  %v1948 = vadd.f32 0.0, %v1947
  %1949 = vdwg.mxu0
  %v1950 = vlaneseq
  %v1951 = vshrl.u32 %v1950, 7
  %v1952 = vsub.s32 0, %v1951
  %v1953 = vrot.slane %v1946, %v1952
  %v1954 = vlaneseq
  %v1955 = vshrl.u32 %v1954, 7
  %v1956 = vsub.s32 0, %v1955
  %v1957 = vrot.slane %v1948, %v1956
  %v1958 = vmul.f32 %v1704, %v1953
  %v1959 = vmul.f32 %v1706, %v1957
  %v1960 = vlaneseq
  %v1961 = vshrl.u32 %v1960, 7
  %v1962 = vsub.s32 1, %v1961
  %v1963 = vrot.slane %v1946, %v1962
  %v1964 = vlaneseq
  %v1965 = vshrl.u32 %v1964, 7
  %v1966 = vsub.s32 1, %v1965
  %v1967 = vrot.slane %v1948, %v1966
  %v1968 = vadd.f32 %v1958, %v1963
  %v1969 = vadd.f32 %v1959, %v1967
  %v1970 = vmax.f32 %v1968, 0.0
  %v1971 = vmax.f32 %v1969, 0.0
  %vm1972 = vcmask 400384
  %v1973 = vsel %vm1972, %v1970, -inf
  %1974 = vmax.xlane.f32.xlu0 %v1973
  %v1975 = vpop.xlane.xlu0 %1974
  %vm1976 = vcmask 802184
  %v1977 = vsel %vm1976, %v1970, -inf
  %1978 = vmax.xlane.f32.xlu0 %v1977
  %v1979 = vpop.xlane.xlu0 %1978
  %vm1980 = vcmask 1048336
  %v1981 = vsel %vm1980, %v1970, -inf
  %vm1982 = vcmask 154624
  %v1983 = vsel %vm1982, %v1971, -inf
  %v1984 = vmax.f32 %v1981, %v1983
  %1985 = vmax.xlane.f32.xlu0 %v1984
  %v1986 = vpop.xlane.xlu0 %1985
  %vm1987 = vcmask 556184
  %v1988 = vsel %vm1987, %v1971, -inf
  %1989 = vmax.xlane.f32.xlu0 %v1988
  %v1990 = vpop.xlane.xlu0 %1989
  %vm1991 = vcmask 957984
  %v1992 = vsel %vm1991, %v1971, -inf
  %1993 = vmax.xlane.f32.xlu0 %v1992
  %v1994 = vpop.xlane.xlu0 %1993
  %vm1995 = vcmask 7168
  %v1996 = vsel %vm1995, %v1975, %v1979
  %vm1997 = vcmask 15360
  %v1998 = vsel %vm1997, %v1996, %v1986
  %vm1999 = vcmask 23552
  %v2000 = vsel %vm1999, %v1998, %v1990
  %vm2001 = vcmask 31744
  %v2002 = vsel %vm2001, %v2000, %v1994
  %2003 = vst [vmem:[%s13] sm:$0xff] 0.0
  %2004 = vst.msk [vmem:[%s13] sm:$0xff] %vm1869, %v2002
  %v2005 = vld [vmem:[%s7] sm:$0x1f]
  %v2006 = vlaneseq
  %v2007 = vshrl.u32 %v2006, 7
  %v2008 = vsub.s32 2, %v2007
  %v2009 = vrot.slane %v43, %v2008
  %v2011 = vsel %vm1869, %v2002, 0
  %v2014 = vsel %vm1775, %v2005, 0
  %2016 = vmatprep.subr.mxu0 0.0
  %2017 = vmatpush1.msra.mxu0 %v2014
  %2018 = vmatprep.subr.mxu0 0.0
  %2019 = vmatpush1.msra.mxu0 0.0
  %2020 = vmatprep.subr.mxu0 0.0
  %2021 = vmatpush1.msra.mxu0 0.0
  %2022 = vmatprep.subr.mxu0 0.0
  %2023 = vmatpush1.msra.mxu0 0.0
  %2024 = vmatprep.subr.mxu0 0.0
  %2025 = vmatpush1.msra.mxu0 0.0
  %2026 = vmatprep.subr.mxu0 0.0
  %2027 = vmatpush1.msra.mxu0 0.0
  %2028 = vmatprep.subr.mxu0 0.0
  %2029 = vmatpush1.msra.mxu0 0.0
  %2030 = vmatprep.subr.mxu0 0.0
  %2031 = vmatpush1.msra.mxu0 0.0
  %2032 = vmatprep.subr.mxu0 0.0
  %2033 = vmatpush1.msra.mxu0 0.0
  %2034 = vmatprep.subr.mxu0 0.0
  %2035 = vmatpush1.msra.mxu0 0.0
  %2036 = vmatprep.subr.mxu0 0.0
  %2037 = vmatpush1.msra.mxu0 0.0
  %2038 = vmatprep.subr.mxu0 0.0
  %2039 = vmatpush1.msra.mxu0 0.0
  %2040 = vmatprep.subr.mxu0 0.0
  %2041 = vmatpush1.msra.mxu0 0.0
  %2042 = vmatprep.subr.mxu0 0.0
  %2043 = vmatpush1.msra.mxu0 0.0
  %2044 = vmatprep.subr.mxu0 0.0
  %2045 = vmatpush1.msra.mxu0 0.0
  %2046 = vmatprep.subr.mxu0 0.0
  %2047 = vmatpush1.msra.mxu0 0.0
  %2048 = vmatprep.subr.mxu0 0.0
  %2049 = vmatpush1.msra.mxu0 0.0
  %2050 = vmatprep.subr.mxu0 0.0
  %2051 = vmatpush1.msra.mxu0 0.0
  %2052 = vmatprep.subr.mxu0 0.0
  %2053 = vmatpush1.msra.mxu0 0.0
  %2054 = vmatprep.subr.mxu0 0.0
  %2055 = vmatpush1.msra.mxu0 0.0
  %2056 = vmatprep.subr.mxu0 0.0
  %2057 = vmatpush1.msra.mxu0 0.0
  %2058 = vmatprep.subr.mxu0 0.0
  %2059 = vmatpush1.msra.mxu0 0.0
  %2060 = vmatprep.subr.mxu0 0.0
  %2061 = vmatpush1.msra.mxu0 0.0
  %2062 = vmatprep.subr.mxu0 0.0
  %2063 = vmatpush1.msra.mxu0 0.0
  %2064 = vmatprep.subr.mxu0 0.0
  %2065 = vmatpush1.msra.mxu0 0.0
  %2066 = vmatprep.subr.mxu0 0.0
  %2067 = vmatpush1.msra.mxu0 0.0
  %2068 = vmatprep.subr.mxu0 0.0
  %2069 = vmatpush1.msra.mxu0 0.0
  %2070 = vmatprep.subr.mxu0 0.0
  %2071 = vmatpush1.msra.mxu0 0.0
  %2072 = vmatprep.subr.mxu0 0.0
  %2073 = vmatpush1.msra.mxu0 0.0
  %2074 = vmatprep.subr.mxu0 0.0
  %2075 = vmatpush1.msra.mxu0 0.0
  %2076 = vmatprep.subr.mxu0 0.0
  %2077 = vmatpush1.msra.mxu0 0.0
  %2078 = vmatprep.subr.mxu0 0.0
  %2079 = vmatpush1.msra.mxu0 0.0
  %2080 = vmatprep.mubr.f32.mxu0 0.0
  %2081 = vmatmul.mubr.f32.gmra.mrb[0].mxu0 %v2011
  %v2082 = vpop.f32.mrb[0].mxu0
  %v2083 = vadd.f32 %v2009, %v2082
  %v2084 = vpop.f32.mrb[0].mxu0
  %2085 = vdwg.mxu0
  %v2086 = vmax.f32 %v2083, 0.0
  %v2087 = vld [vmem:[%s8] sm:$0xf]
  %v2088 = vld [vmem:[%s8 + $0x4] sm:$0xf]
  %v2089 = vld [vmem:[%s8 + $0x8] sm:$0xf]
  %v2090 = vld [vmem:[%s8 + $0xc] sm:$0xf]
  %v2091 = vld [vmem:[%s8 + $0x10] sm:$0xf]
  %v2092 = vld [vmem:[%s8 + $0x14] sm:$0xf]
  %v2093 = vld [vmem:[%s8 + $0x18] sm:$0xf]
  %v2094 = vld [vmem:[%s8 + $0x1c] sm:$0xf]
  %v2095 = vunpack.c.l.bf16 %v2087
  %v2096 = vunpack.c.l.bf16 %v2088
  %v2097 = vunpack.c.l.bf16 %v2089
  %v2098 = vunpack.c.l.bf16 %v2090
  %v2099 = vunpack.c.l.bf16 %v2091
  %v2100 = vunpack.c.l.bf16 %v2092
  %v2101 = vunpack.c.l.bf16 %v2093
  %v2102 = vunpack.c.l.bf16 %v2094
  %v2103 = vlaneseq
  %v2104 = vshrl.u32 %v2103, 7
  %v2105 = vsub.s32 3, %v2104
  %v2106 = vrot.slane %v43, %v2105
  %vm2107 = vcmask 523264
  %v2109 = vsel %vm2107, %v2086, 0
  %2111 = vmatprep.subr.mxu0 0.0
  %2112 = vmatpush1.msra.mxu0 %v2095
  %2113 = vmatprep.subr.mxu0 0.0
  %2114 = vmatpush1.msra.mxu0 %v2096
  %2115 = vmatprep.subr.mxu0 0.0
  %2116 = vmatpush1.msra.mxu0 %v2097
  %2117 = vmatprep.subr.mxu0 0.0
  %2118 = vmatpush1.msra.mxu0 %v2098
  %2119 = vmatprep.subr.mxu0 0.0
  %2120 = vmatpush1.msra.mxu0 %v2099
  %2121 = vmatprep.subr.mxu0 0.0
  %2122 = vmatpush1.msra.mxu0 %v2100
  %2123 = vmatprep.subr.mxu0 0.0
  %2124 = vmatpush1.msra.mxu0 %v2101
  %2125 = vmatprep.subr.mxu0 0.0
  %2126 = vmatpush1.msra.mxu0 %v2102
  %2127 = vmatprep.subr.mxu0 0.0
  %2128 = vmatpush1.msra.mxu0 0.0
  %2129 = vmatprep.subr.mxu0 0.0
  %2130 = vmatpush1.msra.mxu0 0.0
  %2131 = vmatprep.subr.mxu0 0.0
  %2132 = vmatpush1.msra.mxu0 0.0
  %2133 = vmatprep.subr.mxu0 0.0
  %2134 = vmatpush1.msra.mxu0 0.0
  %2135 = vmatprep.subr.mxu0 0.0
  %2136 = vmatpush1.msra.mxu0 0.0
  %2137 = vmatprep.subr.mxu0 0.0
  %2138 = vmatpush1.msra.mxu0 0.0
  %2139 = vmatprep.subr.mxu0 0.0
  %2140 = vmatpush1.msra.mxu0 0.0
  %2141 = vmatprep.subr.mxu0 0.0
  %2142 = vmatpush1.msra.mxu0 0.0
  %2143 = vmatprep.subr.mxu0 0.0
  %2144 = vmatpush1.msra.mxu0 0.0
  %2145 = vmatprep.subr.mxu0 0.0
  %2146 = vmatpush1.msra.mxu0 0.0
  %2147 = vmatprep.subr.mxu0 0.0
  %2148 = vmatpush1.msra.mxu0 0.0
  %2149 = vmatprep.subr.mxu0 0.0
  %2150 = vmatpush1.msra.mxu0 0.0
  %2151 = vmatprep.subr.mxu0 0.0
  %2152 = vmatpush1.msra.mxu0 0.0
  %2153 = vmatprep.subr.mxu0 0.0
  %2154 = vmatpush1.msra.mxu0 0.0
  %2155 = vmatprep.subr.mxu0 0.0
  %2156 = vmatpush1.msra.mxu0 0.0
  %2157 = vmatprep.subr.mxu0 0.0
  %2158 = vmatpush1.msra.mxu0 0.0
  %2159 = vmatprep.subr.mxu0 0.0
  %2160 = vmatpush1.msra.mxu0 0.0
  %2161 = vmatprep.subr.mxu0 0.0
  %2162 = vmatpush1.msra.mxu0 0.0
  %2163 = vmatprep.subr.mxu0 0.0
  %2164 = vmatpush1.msra.mxu0 0.0
  %2165 = vmatprep.subr.mxu0 0.0
  %2166 = vmatpush1.msra.mxu0 0.0
  %2167 = vmatprep.subr.mxu0 0.0
  %2168 = vmatpush1.msra.mxu0 0.0
  %2169 = vmatprep.subr.mxu0 0.0
  %2170 = vmatpush1.msra.mxu0 0.0
  %2171 = vmatprep.subr.mxu0 0.0
  %2172 = vmatpush1.msra.mxu0 0.0
  %2173 = vmatprep.subr.mxu0 0.0
  %2174 = vmatpush1.msra.mxu0 0.0
  %2175 = vmatprep.mubr.f32.mxu0 0.0
  %2176 = vmatmul.mubr.f32.gmra.mrb[0].mxu0 %v2109
  %v2177 = vpop.f32.mrb[0].mxu0
  %v2178 = vadd.f32 %v2106, %v2177
  %v2179 = vpop.f32.mrb[0].mxu0
  %2180 = vdwg.mxu0
  %v2181 = vmax.f32 %v2178, 0.0
  %v2182 = vld [vmem:[%s9] sm:$0xff]
  %v2183 = vld [vmem:[%s9 + $0x8] sm:$0xff]
  %v2184 = vld [vmem:[%s9 + $0x10] sm:$0xff]
  %v2185 = vld [vmem:[%s9 + $0x18] sm:$0xff]
  %v2186 = vld [vmem:[%s9 + $0x20] sm:$0xff]
  %v2187 = vld [vmem:[%s9 + $0x28] sm:$0xff]
  %v2188 = vld [vmem:[%s9 + $0x30] sm:$0xff]
  %v2189 = vld [vmem:[%s9 + $0x38] sm:$0xff]
  %v2190 = vld [vmem:[%s9 + $0x40] sm:$0xff]
  %v2191 = vld [vmem:[%s9 + $0x48] sm:$0xff]
  %v2192 = vld [vmem:[%s9 + $0x50] sm:$0xff]
  %v2193 = vld [vmem:[%s9 + $0x58] sm:$0xff]
  %v2194 = vld [vmem:[%s9 + $0x60] sm:$0xff]
  %v2195 = vld [vmem:[%s9 + $0x68] sm:$0xff]
  %v2196 = vld [vmem:[%s9 + $0x70] sm:$0xff]
  %v2197 = vld [vmem:[%s9 + $0x78] sm:$0xff]
  %v2198 = vld [vmem:[%s9 + $0x80] sm:$0xff]
  %v2199 = vld [vmem:[%s9 + $0x88] sm:$0xff]
  %v2200 = vunpack.c.l.bf16 %v2182
  %v2201 = vunpack.c.h.bf16 %v2182
  %v2202 = vunpack.c.l.bf16 %v2183
  %v2203 = vunpack.c.h.bf16 %v2183
  %v2204 = vunpack.c.l.bf16 %v2184
  %v2205 = vunpack.c.h.bf16 %v2184
  %v2206 = vunpack.c.l.bf16 %v2185
  %v2207 = vunpack.c.h.bf16 %v2185
  %v2208 = vunpack.c.l.bf16 %v2186
  %v2209 = vunpack.c.h.bf16 %v2186
  %v2210 = vunpack.c.l.bf16 %v2187
  %v2211 = vunpack.c.h.bf16 %v2187
  %v2212 = vunpack.c.l.bf16 %v2188
  %v2213 = vunpack.c.h.bf16 %v2188
  %v2214 = vunpack.c.l.bf16 %v2189
  %v2215 = vunpack.c.h.bf16 %v2189
  %v2216 = vunpack.c.l.bf16 %v2190
  %v2217 = vunpack.c.h.bf16 %v2190
  %v2218 = vunpack.c.l.bf16 %v2191
  %v2219 = vunpack.c.h.bf16 %v2191
  %v2220 = vunpack.c.l.bf16 %v2192
  %v2221 = vunpack.c.h.bf16 %v2192
  %v2222 = vunpack.c.l.bf16 %v2193
  %v2223 = vunpack.c.h.bf16 %v2193
  %v2224 = vunpack.c.l.bf16 %v2194
  %v2225 = vunpack.c.h.bf16 %v2194
  %v2226 = vunpack.c.l.bf16 %v2195
  %v2227 = vunpack.c.h.bf16 %v2195
  %v2228 = vunpack.c.l.bf16 %v2196
  %v2229 = vunpack.c.h.bf16 %v2196
  %v2230 = vunpack.c.l.bf16 %v2197
  %v2231 = vunpack.c.h.bf16 %v2197
  %v2232 = vunpack.c.l.bf16 %v2198
  %v2233 = vunpack.c.h.bf16 %v2198
  %v2234 = vunpack.c.l.bf16 %v2199
  %v2235 = vunpack.c.h.bf16 %v2199
  %v2236 = vlaneseq
  %v2237 = vshrl.u32 %v2236, 7
  %v2238 = vsub.s32 4, %v2237
  %v2239 = vrot.slane %v43, %v2238
  %v2240 = vlaneseq
  %v2241 = vshrl.u32 %v2240, 7
  %v2242 = vsub.s32 4, %v2241
  %v2243 = vrot.slane %v44, %v2242
  %v2244 = vlaneseq
  %v2245 = vshrl.u32 %v2244, 7
  %v2246 = vsub.s32 4, %v2245
  %v2247 = vrot.slane %v45, %v2246
  %v2248 = vlaneseq
  %v2249 = vshrl.u32 %v2248, 7
  %v2250 = vsub.s32 4, %v2249
  %v2251 = vrot.slane %v46, %v2250
  %vm2252 = vcmask 588800
  %v2254 = vsel %vm2252, %v2181, 0
  %2256 = vmatprep.subr.mxu0 %v2201
  %2257 = vmatpush1.msra.mxu0 %v2200
  %2258 = vmatprep.subr.mxu0 %v2205
  %2259 = vmatpush1.msra.mxu0 %v2204
  %2260 = vmatprep.subr.mxu0 %v2209
  %2261 = vmatpush1.msra.mxu0 %v2208
  %2262 = vmatprep.subr.mxu0 %v2213
  %2263 = vmatpush1.msra.mxu0 %v2212
  %2264 = vmatprep.subr.mxu0 %v2217
  %2265 = vmatpush1.msra.mxu0 %v2216
  %2266 = vmatprep.subr.mxu0 %v2221
  %2267 = vmatpush1.msra.mxu0 %v2220
  %2268 = vmatprep.subr.mxu0 %v2225
  %2269 = vmatpush1.msra.mxu0 %v2224
  %2270 = vmatprep.subr.mxu0 %v2229
  %2271 = vmatpush1.msra.mxu0 %v2228
  %2272 = vmatprep.subr.mxu0 %v2233
  %2273 = vmatpush1.msra.mxu0 %v2232
  %2274 = vmatprep.subr.mxu0 0.0
  %2275 = vmatpush1.msra.mxu0 0.0
  %2276 = vmatprep.subr.mxu0 0.0
  %2277 = vmatpush1.msra.mxu0 0.0
  %2278 = vmatprep.subr.mxu0 0.0
  %2279 = vmatpush1.msra.mxu0 0.0
  %2280 = vmatprep.subr.mxu0 0.0
  %2281 = vmatpush1.msra.mxu0 0.0
  %2282 = vmatprep.subr.mxu0 0.0
  %2283 = vmatpush1.msra.mxu0 0.0
  %2284 = vmatprep.subr.mxu0 0.0
  %2285 = vmatpush1.msra.mxu0 0.0
  %2286 = vmatprep.subr.mxu0 0.0
  %2287 = vmatpush1.msra.mxu0 0.0
  %2288 = vmatprep.subr.mxu0 0.0
  %2289 = vmatpush1.msra.mxu0 0.0
  %2290 = vmatprep.subr.mxu0 0.0
  %2291 = vmatpush1.msra.mxu0 0.0
  %2292 = vmatprep.subr.mxu0 0.0
  %2293 = vmatpush1.msra.mxu0 0.0
  %2294 = vmatprep.subr.mxu0 0.0
  %2295 = vmatpush1.msra.mxu0 0.0
  %2296 = vmatprep.subr.mxu0 0.0
  %2297 = vmatpush1.msra.mxu0 0.0
  %2298 = vmatprep.subr.mxu0 0.0
  %2299 = vmatpush1.msra.mxu0 0.0
  %2300 = vmatprep.subr.mxu0 0.0
  %2301 = vmatpush1.msra.mxu0 0.0
  %2302 = vmatprep.subr.mxu0 0.0
  %2303 = vmatpush1.msra.mxu0 0.0
  %2304 = vmatprep.subr.mxu0 0.0
  %2305 = vmatpush1.msra.mxu0 0.0
  %2306 = vmatprep.subr.mxu0 0.0
  %2307 = vmatpush1.msra.mxu0 0.0
  %2308 = vmatprep.subr.mxu0 0.0
  %2309 = vmatpush1.msra.mxu0 0.0
  %2310 = vmatprep.subr.mxu0 0.0
  %2311 = vmatpush1.msra.mxu0 0.0
  %2312 = vmatprep.subr.mxu0 0.0
  %2313 = vmatpush1.msra.mxu0 0.0
  %2314 = vmatprep.subr.mxu0 0.0
  %2315 = vmatpush1.msra.mxu0 0.0
  %2316 = vmatprep.subr.mxu0 0.0
  %2317 = vmatpush1.msra.mxu0 0.0
  %2318 = vmatprep.subr.mxu0 0.0
  %2319 = vmatpush1.msra.mxu0 0.0
  %2320 = vmatprep.mubr.f32.mxu0 0.0
  %2321 = vmatmul.mubr.f32.gmra.mrb[0].mxu0 %v2254
  %v2322 = vpop.f32.mrb[0].mxu0
  %v2323 = vadd.f32 %v2239, %v2322
  %v2324 = vpop.f32.mrb[0].mxu0
  %v2325 = vadd.f32 %v2243, %v2324
  %2326 = vdwg.mxu0
  %2327 = vmatprep.subr.mxu0 %v2203
  %2328 = vmatpush1.msra.mxu0 %v2202
  %2329 = vmatprep.subr.mxu0 %v2207
  %2330 = vmatpush1.msra.mxu0 %v2206
  %2331 = vmatprep.subr.mxu0 %v2211
  %2332 = vmatpush1.msra.mxu0 %v2210
  %2333 = vmatprep.subr.mxu0 %v2215
  %2334 = vmatpush1.msra.mxu0 %v2214
  %2335 = vmatprep.subr.mxu0 %v2219
  %2336 = vmatpush1.msra.mxu0 %v2218
  %2337 = vmatprep.subr.mxu0 %v2223
  %2338 = vmatpush1.msra.mxu0 %v2222
  %2339 = vmatprep.subr.mxu0 %v2227
  %2340 = vmatpush1.msra.mxu0 %v2226
  %2341 = vmatprep.subr.mxu0 %v2231
  %2342 = vmatpush1.msra.mxu0 %v2230
  %2343 = vmatprep.subr.mxu0 %v2235
  %2344 = vmatpush1.msra.mxu0 %v2234
  %2345 = vmatprep.subr.mxu0 0.0
  %2346 = vmatpush1.msra.mxu0 0.0
  %2347 = vmatprep.subr.mxu0 0.0
  %2348 = vmatpush1.msra.mxu0 0.0
  %2349 = vmatprep.subr.mxu0 0.0
  %2350 = vmatpush1.msra.mxu0 0.0
  %2351 = vmatprep.subr.mxu0 0.0
  %2352 = vmatpush1.msra.mxu0 0.0
  %2353 = vmatprep.subr.mxu0 0.0
  %2354 = vmatpush1.msra.mxu0 0.0
  %2355 = vmatprep.subr.mxu0 0.0
  %2356 = vmatpush1.msra.mxu0 0.0
  %2357 = vmatprep.subr.mxu0 0.0
  %2358 = vmatpush1.msra.mxu0 0.0
  %2359 = vmatprep.subr.mxu0 0.0
  %2360 = vmatpush1.msra.mxu0 0.0
  %2361 = vmatprep.subr.mxu0 0.0
  %2362 = vmatpush1.msra.mxu0 0.0
  %2363 = vmatprep.subr.mxu0 0.0
  %2364 = vmatpush1.msra.mxu0 0.0
  %2365 = vmatprep.subr.mxu0 0.0
  %2366 = vmatpush1.msra.mxu0 0.0
  %2367 = vmatprep.subr.mxu0 0.0
  %2368 = vmatpush1.msra.mxu0 0.0
  %2369 = vmatprep.subr.mxu0 0.0
  %2370 = vmatpush1.msra.mxu0 0.0
  %2371 = vmatprep.subr.mxu0 0.0
  %2372 = vmatpush1.msra.mxu0 0.0
  %2373 = vmatprep.subr.mxu0 0.0
  %2374 = vmatpush1.msra.mxu0 0.0
  %2375 = vmatprep.subr.mxu0 0.0
  %2376 = vmatpush1.msra.mxu0 0.0
  %2377 = vmatprep.subr.mxu0 0.0
  %2378 = vmatpush1.msra.mxu0 0.0
  %2379 = vmatprep.subr.mxu0 0.0
  %2380 = vmatpush1.msra.mxu0 0.0
  %2381 = vmatprep.subr.mxu0 0.0
  %2382 = vmatpush1.msra.mxu0 0.0
  %2383 = vmatprep.subr.mxu0 0.0
  %2384 = vmatpush1.msra.mxu0 0.0
  %2385 = vmatprep.subr.mxu0 0.0
  %2386 = vmatpush1.msra.mxu0 0.0
  %2387 = vmatprep.subr.mxu0 0.0
  %2388 = vmatpush1.msra.mxu0 0.0
  %2389 = vmatprep.subr.mxu0 0.0
  %2390 = vmatpush1.msra.mxu0 0.0
  %2391 = vmatprep.mubr.f32.mxu0 0.0
  %2392 = vmatmul.mubr.f32.gmra.mrb[0].mxu0 %v2254
  %v2393 = vpop.f32.mrb[0].mxu0
  %v2394 = vadd.f32 %v2247, %v2393
  %v2395 = vpop.f32.mrb[0].mxu0
  %v2396 = vadd.f32 %v2251, %v2395
  %2397 = vdwg.mxu0
  %v2398 = vmax.f32 %v2323, 0.0
  %v2399 = vmax.f32 %v2325, 0.0
  %v2400 = vmax.f32 %v2394, 0.0
  %v2401 = vmax.f32 %v2396, 0.0
  %v2402 = vld [vmem:[%s10] sm:$0xff]
  %v2403 = vld [vmem:[%s10 + $0x8] sm:$0xff]
  %v2404 = vld [vmem:[%s10 + $0x10] sm:$0xff]
  %v2405 = vld [vmem:[%s10 + $0x18] sm:$0xff]
  %v2406 = vld [vmem:[%s10 + $0x20] sm:$0xff]
  %v2407 = vld [vmem:[%s10 + $0x28] sm:$0xff]
  %v2408 = vld [vmem:[%s10 + $0x30] sm:$0xff]
  %v2409 = vld [vmem:[%s10 + $0x38] sm:$0xff]
  %v2410 = vld [vmem:[%s10 + $0x40] sm:$0xff]
  %v2411 = vld [vmem:[%s10 + $0x48] sm:$0xff]
  %v2412 = vld [vmem:[%s10 + $0x50] sm:$0xff]
  %v2413 = vld [vmem:[%s10 + $0x58] sm:$0xff]
  %v2414 = vld [vmem:[%s10 + $0x60] sm:$0xff]
  %v2415 = vld [vmem:[%s10 + $0x68] sm:$0xff]
  %v2416 = vld [vmem:[%s10 + $0x70] sm:$0xff]
  %v2417 = vld [vmem:[%s10 + $0x78] sm:$0xff]
  %v2418 = vld [vmem:[%s10 + $0x80] sm:$0xff]
  %v2419 = vld [vmem:[%s10 + $0x88] sm:$0xff]
  %v2420 = vld [vmem:[%s10 + $0x90] sm:$0xff]
  %v2421 = vld [vmem:[%s10 + $0x98] sm:$0xff]
  %v2422 = vld [vmem:[%s10 + $0xa0] sm:$0xff]
  %v2423 = vld [vmem:[%s10 + $0xa8] sm:$0xff]
  %v2424 = vld [vmem:[%s10 + $0xb0] sm:$0xff]
  %v2425 = vld [vmem:[%s10 + $0xb8] sm:$0xff]
  %v2426 = vld [vmem:[%s10 + $0xc0] sm:$0xff]
  %v2427 = vld [vmem:[%s10 + $0xc8] sm:$0xff]
  %v2428 = vld [vmem:[%s10 + $0xd0] sm:$0xff]
  %v2429 = vld [vmem:[%s10 + $0xd8] sm:$0xff]
  %v2430 = vld [vmem:[%s10 + $0xe0] sm:$0xff]
  %v2431 = vld [vmem:[%s10 + $0xe8] sm:$0xff]
  %v2432 = vld [vmem:[%s10 + $0xf0] sm:$0xff]
  %v2433 = vld [vmem:[%s10 + $0xf8] sm:$0xff]
  %v2434 = vld [vmem:[%s10 + $0x100] sm:$0xff]
  %v2435 = vld [vmem:[%s10 + $0x108] sm:$0xff]
  %v2436 = vld [vmem:[%s10 + $0x110] sm:$0xff]
  %v2437 = vld [vmem:[%s10 + $0x118] sm:$0xff]
  %v2438 = vld [vmem:[%s10 + $0x120] sm:$0xff]
  %v2439 = vld [vmem:[%s10 + $0x128] sm:$0xff]
  %v2440 = vld [vmem:[%s10 + $0x130] sm:$0xff]
  %v2441 = vld [vmem:[%s10 + $0x138] sm:$0xff]
  %v2442 = vld [vmem:[%s10 + $0x140] sm:$0xff]
  %v2443 = vld [vmem:[%s10 + $0x148] sm:$0xff]
  %v2444 = vld [vmem:[%s10 + $0x150] sm:$0xff]
  %v2445 = vld [vmem:[%s10 + $0x158] sm:$0xff]
  %v2446 = vld [vmem:[%s10 + $0x160] sm:$0xff]
  %v2447 = vld [vmem:[%s10 + $0x168] sm:$0xff]
  %v2448 = vld [vmem:[%s10 + $0x170] sm:$0xff]
  %v2449 = vld [vmem:[%s10 + $0x178] sm:$0xff]
  %v2450 = vld [vmem:[%s10 + $0x180] sm:$0xff]
  %v2451 = vunpack.c.l.bf16 %v2402
  %v2452 = vunpack.c.h.bf16 %v2402
  %v2453 = vunpack.c.l.bf16 %v2403
  %v2454 = vunpack.c.h.bf16 %v2403
  %v2455 = vunpack.c.l.bf16 %v2404
  %v2456 = vunpack.c.h.bf16 %v2404
  %v2457 = vunpack.c.l.bf16 %v2405
  %v2458 = vunpack.c.h.bf16 %v2405
  %v2459 = vunpack.c.l.bf16 %v2406
  %v2460 = vunpack.c.h.bf16 %v2406
  %v2461 = vunpack.c.l.bf16 %v2407
  %v2462 = vunpack.c.h.bf16 %v2407
  %v2463 = vunpack.c.l.bf16 %v2408
  %v2464 = vunpack.c.h.bf16 %v2408
  %v2465 = vunpack.c.l.bf16 %v2409
  %v2466 = vunpack.c.h.bf16 %v2409
  %v2467 = vunpack.c.l.bf16 %v2410
  %v2468 = vunpack.c.h.bf16 %v2410
  %v2469 = vunpack.c.l.bf16 %v2411
  %v2470 = vunpack.c.h.bf16 %v2411
  %v2471 = vunpack.c.l.bf16 %v2412
  %v2472 = vunpack.c.h.bf16 %v2412
  %v2473 = vunpack.c.l.bf16 %v2413
  %v2474 = vunpack.c.h.bf16 %v2413
  %v2475 = vunpack.c.l.bf16 %v2414
  %v2476 = vunpack.c.h.bf16 %v2414
  %v2477 = vunpack.c.l.bf16 %v2415
  %v2478 = vunpack.c.h.bf16 %v2415
  %v2479 = vunpack.c.l.bf16 %v2416
  %v2480 = vunpack.c.h.bf16 %v2416
  %v2481 = vunpack.c.l.bf16 %v2417
  %v2482 = vunpack.c.h.bf16 %v2417
  %v2483 = vunpack.c.l.bf16 %v2418
  %v2484 = vunpack.c.h.bf16 %v2418
  %v2485 = vunpack.c.l.bf16 %v2419
  %v2486 = vunpack.c.h.bf16 %v2419
  %v2487 = vunpack.c.l.bf16 %v2420
  %v2488 = vunpack.c.h.bf16 %v2420
  %v2489 = vunpack.c.l.bf16 %v2421
  %v2490 = vunpack.c.h.bf16 %v2421
  %v2491 = vunpack.c.l.bf16 %v2422
  %v2492 = vunpack.c.h.bf16 %v2422
  %v2493 = vunpack.c.l.bf16 %v2423
  %v2494 = vunpack.c.h.bf16 %v2423
  %v2495 = vunpack.c.l.bf16 %v2424
  %v2496 = vunpack.c.h.bf16 %v2424
  %v2497 = vunpack.c.l.bf16 %v2425
  %v2498 = vunpack.c.h.bf16 %v2425
  %v2499 = vunpack.c.l.bf16 %v2426
  %v2500 = vunpack.c.h.bf16 %v2426
  %v2501 = vunpack.c.l.bf16 %v2427
  %v2502 = vunpack.c.h.bf16 %v2427
  %v2503 = vunpack.c.l.bf16 %v2428
  %v2504 = vunpack.c.h.bf16 %v2428
  %v2505 = vunpack.c.l.bf16 %v2429
  %v2506 = vunpack.c.h.bf16 %v2429
  %v2507 = vunpack.c.l.bf16 %v2430
  %v2508 = vunpack.c.h.bf16 %v2430
  %v2509 = vunpack.c.l.bf16 %v2431
  %v2510 = vunpack.c.h.bf16 %v2431
  %v2511 = vunpack.c.l.bf16 %v2432
  %v2512 = vunpack.c.h.bf16 %v2432
  %v2513 = vunpack.c.l.bf16 %v2433
  %v2514 = vunpack.c.h.bf16 %v2433
  %v2515 = vunpack.c.l.bf16 %v2434
  %v2516 = vunpack.c.h.bf16 %v2434
  %v2517 = vunpack.c.l.bf16 %v2435
  %v2518 = vunpack.c.h.bf16 %v2435
  %v2519 = vunpack.c.l.bf16 %v2436
  %v2520 = vunpack.c.h.bf16 %v2436
  %v2521 = vunpack.c.l.bf16 %v2437
  %v2522 = vunpack.c.h.bf16 %v2437
  %v2523 = vunpack.c.l.bf16 %v2438
  %v2524 = vunpack.c.h.bf16 %v2438
  %v2525 = vunpack.c.l.bf16 %v2439
  %v2526 = vunpack.c.h.bf16 %v2439
  %v2527 = vunpack.c.l.bf16 %v2440
  %v2528 = vunpack.c.h.bf16 %v2440
  %v2529 = vunpack.c.l.bf16 %v2441
  %v2530 = vunpack.c.h.bf16 %v2441
  %v2531 = vunpack.c.l.bf16 %v2442
  %v2532 = vunpack.c.h.bf16 %v2442
  %v2533 = vunpack.c.l.bf16 %v2443
  %v2534 = vunpack.c.h.bf16 %v2443
  %v2535 = vunpack.c.l.bf16 %v2444
  %v2536 = vunpack.c.h.bf16 %v2444
  %v2537 = vunpack.c.l.bf16 %v2445
  %v2538 = vunpack.c.h.bf16 %v2445
  %v2539 = vunpack.c.l.bf16 %v2446
  %v2540 = vunpack.c.h.bf16 %v2446
  %v2541 = vunpack.c.l.bf16 %v2447
  %v2542 = vunpack.c.h.bf16 %v2447
  %v2543 = vunpack.c.l.bf16 %v2448
  %v2544 = vunpack.c.h.bf16 %v2448
  %v2545 = vunpack.c.l.bf16 %v2449
  %v2546 = vunpack.c.h.bf16 %v2449
  %v2547 = vunpack.c.l.bf16 %v2450
  %v2548 = vunpack.c.h.bf16 %v2450
  %v2549 = vlaneseq
  %v2550 = vshrl.u32 %v2549, 7
  %v2551 = vsub.s32 5, %v2550
  %v2552 = vrot.slane %v43, %v2551
  %v2553 = vlaneseq
  %v2554 = vshrl.u32 %v2553, 7
  %v2555 = vsub.s32 5, %v2554
  %v2556 = vrot.slane %v44, %v2555
  %v2558 = vsel %vm667, %v2401, 0
  %2560 = vmatprep.subr.mxu0 %v2452
  %2561 = vmatpush1.msra.mxu0 %v2451
  %2562 = vmatprep.subr.mxu0 %v2454
  %2563 = vmatpush1.msra.mxu0 %v2453
  %2564 = vmatprep.subr.mxu0 %v2456
  %2565 = vmatpush1.msra.mxu0 %v2455
  %2566 = vmatprep.subr.mxu0 %v2458
  %2567 = vmatpush1.msra.mxu0 %v2457
  %2568 = vmatprep.subr.mxu0 %v2460
  %2569 = vmatpush1.msra.mxu0 %v2459
  %2570 = vmatprep.subr.mxu0 %v2462
  %2571 = vmatpush1.msra.mxu0 %v2461
  %2572 = vmatprep.subr.mxu0 %v2464
  %2573 = vmatpush1.msra.mxu0 %v2463
  %2574 = vmatprep.subr.mxu0 %v2466
  %2575 = vmatpush1.msra.mxu0 %v2465
  %2576 = vmatprep.subr.mxu0 %v2468
  %2577 = vmatpush1.msra.mxu0 %v2467
  %2578 = vmatprep.subr.mxu0 %v2470
  %2579 = vmatpush1.msra.mxu0 %v2469
  %2580 = vmatprep.subr.mxu0 %v2472
  %2581 = vmatpush1.msra.mxu0 %v2471
  %2582 = vmatprep.subr.mxu0 %v2474
  %2583 = vmatpush1.msra.mxu0 %v2473
  %2584 = vmatprep.subr.mxu0 %v2476
  %2585 = vmatpush1.msra.mxu0 %v2475
  %2586 = vmatprep.subr.mxu0 %v2478
  %2587 = vmatpush1.msra.mxu0 %v2477
  %2588 = vmatprep.subr.mxu0 %v2480
  %2589 = vmatpush1.msra.mxu0 %v2479
  %2590 = vmatprep.subr.mxu0 %v2482
  %2591 = vmatpush1.msra.mxu0 %v2481
  %2592 = vmatprep.subr.mxu0 %v2484
  %2593 = vmatpush1.msra.mxu0 %v2483
  %2594 = vmatprep.subr.mxu0 %v2486
  %2595 = vmatpush1.msra.mxu0 %v2485
  %2596 = vmatprep.subr.mxu0 %v2488
  %2597 = vmatpush1.msra.mxu0 %v2487
  %2598 = vmatprep.subr.mxu0 %v2490
  %2599 = vmatpush1.msra.mxu0 %v2489
  %2600 = vmatprep.subr.mxu0 %v2492
  %2601 = vmatpush1.msra.mxu0 %v2491
  %2602 = vmatprep.subr.mxu0 %v2494
  %2603 = vmatpush1.msra.mxu0 %v2493
  %2604 = vmatprep.subr.mxu0 %v2496
  %2605 = vmatpush1.msra.mxu0 %v2495
  %2606 = vmatprep.subr.mxu0 %v2498
  %2607 = vmatpush1.msra.mxu0 %v2497
  %2608 = vmatprep.subr.mxu0 %v2500
  %2609 = vmatpush1.msra.mxu0 %v2499
  %2610 = vmatprep.subr.mxu0 %v2502
  %2611 = vmatpush1.msra.mxu0 %v2501
  %2612 = vmatprep.subr.mxu0 %v2504
  %2613 = vmatpush1.msra.mxu0 %v2503
  %2614 = vmatprep.subr.mxu0 %v2506
  %2615 = vmatpush1.msra.mxu0 %v2505
  %2616 = vmatprep.subr.mxu0 %v2508
  %2617 = vmatpush1.msra.mxu0 %v2507
  %2618 = vmatprep.subr.mxu0 %v2510
  %2619 = vmatpush1.msra.mxu0 %v2509
  %2620 = vmatprep.subr.mxu0 %v2512
  %2621 = vmatpush1.msra.mxu0 %v2511
  %2622 = vmatprep.subr.mxu0 %v2514
  %2623 = vmatpush1.msra.mxu0 %v2513
  %2624 = vmatprep.mubr.f32.mxu0 %v2399
  %2625 = vmatmul.mubr.f32.gmra.mrb[0].mxu0 %v2398
  %v2626 = vpop.f32.mrb[0].mxu0
  %v2627 = vadd.f32 %v2552, %v2626
  %v2628 = vpop.f32.mrb[0].mxu0
  %v2629 = vadd.f32 %v2556, %v2628
  %2630 = vdwg.mxu0
  %2631 = vmatprep.subr.mxu0 %v2516
  %2632 = vmatpush1.msra.mxu0 %v2515
  %2633 = vmatprep.subr.mxu0 %v2518
  %2634 = vmatpush1.msra.mxu0 %v2517
  %2635 = vmatprep.subr.mxu0 %v2520
  %2636 = vmatpush1.msra.mxu0 %v2519
  %2637 = vmatprep.subr.mxu0 %v2522
  %2638 = vmatpush1.msra.mxu0 %v2521
  %2639 = vmatprep.subr.mxu0 %v2524
  %2640 = vmatpush1.msra.mxu0 %v2523
  %2641 = vmatprep.subr.mxu0 %v2526
  %2642 = vmatpush1.msra.mxu0 %v2525
  %2643 = vmatprep.subr.mxu0 %v2528
  %2644 = vmatpush1.msra.mxu0 %v2527
  %2645 = vmatprep.subr.mxu0 %v2530
  %2646 = vmatpush1.msra.mxu0 %v2529
  %2647 = vmatprep.subr.mxu0 %v2532
  %2648 = vmatpush1.msra.mxu0 %v2531
  %2649 = vmatprep.subr.mxu0 %v2534
  %2650 = vmatpush1.msra.mxu0 %v2533
  %2651 = vmatprep.subr.mxu0 %v2536
  %2652 = vmatpush1.msra.mxu0 %v2535
  %2653 = vmatprep.subr.mxu0 %v2538
  %2654 = vmatpush1.msra.mxu0 %v2537
  %2655 = vmatprep.subr.mxu0 %v2540
  %2656 = vmatpush1.msra.mxu0 %v2539
  %2657 = vmatprep.subr.mxu0 %v2542
  %2658 = vmatpush1.msra.mxu0 %v2541
  %2659 = vmatprep.subr.mxu0 %v2544
  %2660 = vmatpush1.msra.mxu0 %v2543
  %2661 = vmatprep.subr.mxu0 %v2546
  %2662 = vmatpush1.msra.mxu0 %v2545
  %2663 = vmatprep.subr.mxu0 %v2548
  %2664 = vmatpush1.msra.mxu0 %v2547
  %2665 = vmatprep.subr.mxu0 0.0
  %2666 = vmatpush1.msra.mxu0 0.0
  %2667 = vmatprep.subr.mxu0 0.0
  %2668 = vmatpush1.msra.mxu0 0.0
  %2669 = vmatprep.subr.mxu0 0.0
  %2670 = vmatpush1.msra.mxu0 0.0
  %2671 = vmatprep.subr.mxu0 0.0
  %2672 = vmatpush1.msra.mxu0 0.0
  %2673 = vmatprep.subr.mxu0 0.0
  %2674 = vmatpush1.msra.mxu0 0.0
  %2675 = vmatprep.subr.mxu0 0.0
  %2676 = vmatpush1.msra.mxu0 0.0
  %2677 = vmatprep.subr.mxu0 0.0
  %2678 = vmatpush1.msra.mxu0 0.0
  %2679 = vmatprep.subr.mxu0 0.0
  %2680 = vmatpush1.msra.mxu0 0.0
  %2681 = vmatprep.subr.mxu0 0.0
  %2682 = vmatpush1.msra.mxu0 0.0
  %2683 = vmatprep.subr.mxu0 0.0
  %2684 = vmatpush1.msra.mxu0 0.0
  %2685 = vmatprep.subr.mxu0 0.0
  %2686 = vmatpush1.msra.mxu0 0.0
  %2687 = vmatprep.subr.mxu0 0.0
  %2688 = vmatpush1.msra.mxu0 0.0
  %2689 = vmatprep.subr.mxu0 0.0
  %2690 = vmatpush1.msra.mxu0 0.0
  %2691 = vmatprep.subr.mxu0 0.0
  %2692 = vmatpush1.msra.mxu0 0.0
  %2693 = vmatprep.subr.mxu0 0.0
  %2694 = vmatpush1.msra.mxu0 0.0
  %2695 = vmatprep.mubr.f32.mxu0 %v2558
  %2696 = vmatmul.mubr.f32.gmra.mrb[0].mxu0 %v2400
  %v2697 = vpop.f32.mrb[0].mxu0
  %v2698 = vadd.f32 %v2627, %v2697
  %v2699 = vpop.f32.mrb[0].mxu0
  %v2700 = vadd.f32 %v2629, %v2699
  %2701 = vdwg.mxu0
  %v2702 = vxor.u32 %v2698, 2147483648
  %v2703 = vxor.u32 %v2700, 2147483648
  %v2704 = vmul.f32 %v2702, 1.442695
  %v2705 = vpow.pop %v2704
  %v2706 = vmul.f32 %v2703, 1.442695
  %v2707 = vpow.pop %v2706
  %v2708 = vadd.f32 %v2705, 1.0
  %v2709 = vadd.f32 %v2707, 1.0
  %v2710 = vrcp.pop %v2708
  %v2711 = vmul.f32 1.0, %v2710
  %v2712 = vrcp.pop %v2709
  %v2713 = vmul.f32 1.0, %v2712
  %2714 = vst [vmem:[%s12] sm:$0xff] %v2711
  %2715 = vst [vmem:[%s12 + $0x8] sm:$0xff] %v2713
  // Predicated region
  $region50: #{encoder_decoder_forward.1} parent=0 // pred_check
    _
  $region51: #{encoder_decoder_forward.1} parent=0 // pred_check_branch
    %2717 = sbr.rel (0) target = $region53
  $region52: #{encoder_decoder_forward.1} parent=0 // pred_region
    _
  $region53: #{encoder_decoder_forward.1} parent=0 // pred_fallthru
    _
  // Predicated region
  $region54: #{encoder_decoder_forward.1} parent=0 // pred_check
    _
  $region55: #{encoder_decoder_forward.1} parent=0 // pred_check_branch
    %2719 = sbr.rel (0) target = $region57
  $region56: #{encoder_decoder_forward.1} parent=0 // pred_region
    _
  $region57: #{encoder_decoder_forward.1} parent=0 // pred_fallthru
    _
  // Predicated region
  $region58: #{encoder_decoder_forward.1} parent=0 // pred_check
    _
  $region59: #{encoder_decoder_forward.1} parent=0 // pred_check_branch
    %2721 = sbr.rel (0) target = $region61
  $region60: #{encoder_decoder_forward.1} parent=0 // pred_region
    _
  $region61: #{encoder_decoder_forward.1} parent=0 // pred_fallthru
    _
  // Predicated region
  $region62: #{encoder_decoder_forward.1} parent=0 // pred_check
    _
  $region63: #{encoder_decoder_forward.1} parent=0 // pred_check_branch
    %2723 = sbr.rel (0) target = $region65
  $region64: #{encoder_decoder_forward.1} parent=0 // pred_region
    _
  $region65: #{encoder_decoder_forward.1} parent=0 // pred_fallthru
    _

</llo_original>
